<compile_context>
chip_gen: v5e
topology: v5e:2x2
jax: 0.10.0
libtpu: 0.0.40
codegen_flags: <defaults>
</compile_context>

<pallas_src>
import jax
import jax.numpy as jnp
from jax import lax
from jax.experimental import pallas as pl
from jax.experimental.pallas import tpu as pltpu


def _cab_kernel(x_ref, w1_ref, w2_ref, wd_ref, wu_ref, pool_ref, bc_ref,
                o_ref, xp_ref):
    # x_ref   : (Bt, H, W*C)        lane-dense input block (f32) — also the residual
    # w1_ref  : (3, (G+2)C, G*C)    conv #1 per-dy block-Toeplitz weights (bf16)
    # w2_ref  : (3, (G+2)C, G*C)    conv #2 per-dy block-Toeplitz weights (bf16)
    # wd_ref  : (C, Cr)             CA squeeze 1x1 conv (f32)
    # wu_ref  : (Cr, C)             CA excite  1x1 conv (f32)
    # pool_ref: (W*C, C)            lane-dense -> per-channel mean matrix (f32)
    # bc_ref  : (C, W*C)            per-channel -> lane-dense broadcast matrix (f32)
    # o_ref   : (Bt, H, W*C)        lane-dense output block
    # xp_ref  : (Bt, H+2, (W+2)*C)  scratch: zero-bordered padded activation (bf16)
    Bt, H, WC = x_ref.shape
    _, Hp, WpC = xp_ref.shape
    KG, NG = w1_ref.shape[1], w1_ref.shape[2]   # (G+2)*C, G*C
    C = bc_ref.shape[0]
    G = NG // C
    W = WC // C
    n_groups = W // G
    rows = Bt * H
    bf = w1_ref.dtype

    # Zero only the permanently-zero parts of the padded scratch (H border rows + the
    # 1-column W pads).  The interior is fully overwritten per conv; done every step so
    # it stays correct when the "parallel" batch axis is sharded across TensorCores.
    xp_ref[:, 0:1, :] = jnp.zeros((Bt, 1, WpC), bf)
    xp_ref[:, Hp - 1:Hp, :] = jnp.zeros((Bt, 1, WpC), bf)
    xp_ref[:, 1:1 + H, 0:C] = jnp.zeros((Bt, H, C), bf)
    xp_ref[:, 1:1 + H, WpC - C:WpC] = jnp.zeros((Bt, H, C), bf)

    def conv3x3(act_ld, w_ref):
        """act_ld: (Bt, H, W*C) bf16 activation -> (Bt*H, W*C) f32 SAME 3x3 conv."""
        xp_ref[:, 1:1 + H, C:C + WC] = act_ld
        accs = [jnp.zeros((rows, NG), jnp.float32) for _ in range(n_groups)]
        for dy in range(3):
            w_dy = w_ref[dy]                                     # (KG, NG) bf16
            for g in range(n_groups):
                # 128-aligned lane slice of the padded lane-dense rows (dy taps are
                # sublane-offset slices; dx taps live inside the Toeplitz weight).
                lhs = xp_ref[:, dy:dy + H, g * NG:g * NG + KG].reshape(rows, KG)
                accs[g] = accs[g] + jnp.dot(lhs, w_dy,
                                            preferred_element_type=jnp.float32)
        # 128-wide, 128-aligned groups -> cheap unmasked concatenate.
        return jnp.concatenate(accs, axis=-1)                    # (rows, W*C) f32

    # ---- body: conv3x3 -> ReLU -> conv3x3 (bf16 MXU operands, f32 accumulation) ----
    a1 = jnp.maximum(conv3x3(x_ref[...].astype(bf), w1_ref), 0.0)
    res = conv3x3(a1.astype(bf).reshape(Bt, H, WC), w2_ref)
    res = res.reshape(Bt, H, WC)                                 # (Bt, H, W*C) f32

    # ---- CALayer squeeze: global average pool via a tiny matmul (stays lane-dense) ----
    y = jnp.dot(jnp.sum(res, axis=1), pool_ref[...],
                preferred_element_type=jnp.float32)              # (Bt, C)

    # Stage the conv output in the output VMEM block so no big f32 value stays live
    # across the CALayer matmuls (vreg-pressure fix).
    o_ref[...] = res

    z = jnp.maximum(jnp.dot(y, wd_ref[...], preferred_element_type=jnp.float32), 0.0)
    s = jax.nn.sigmoid(jnp.dot(z, wu_ref[...], preferred_element_type=jnp.float32))
    s_ld = jnp.dot(s, bc_ref[...], preferred_element_type=jnp.float32)   # (Bt, W*C)

    # ---- scale + residual (lane-dense, unmasked full-block store) ----
    o_ref[...] = o_ref[...] * s_ld[:, None, :] + x_ref[...]


def _block_toeplitz(w_hwio, group):
    """(3, 3, C, C) HWIO conv weight -> (3, (G+2)*C, G*C) per-dy block-Toeplitz weight."""
    C = w_hwio.shape[2]
    G = group
    zero = jnp.zeros((C, C), w_hwio.dtype)
    per_dy = []
    for dy in range(3):
        block_rows = []
        for u in range(G + 2):          # input column offset within the group span
            row = [w_hwio[dy, u - v] if 0 <= u - v <= 2 else zero for v in range(G)]
            block_rows.append(jnp.concatenate(row, axis=1))
        per_dy.append(jnp.concatenate(block_rows, axis=0))
    return jnp.stack(per_dy, axis=0)


def _padded_vmem_bytes(shape, itemsize):
    s = list(shape)
    s[-1] = -(-s[-1] // 128) * 128
    if len(s) >= 2:
        s[-2] = -(-s[-2] // 8) * 8
    n = itemsize
    for d in s:
        n *= d
    return n


def cab_pallas_nhwc(x, w1, w2, wd, wu, *, block_batch=None, mxu_dtype=jnp.bfloat16):
    """CAB forward in NHWC (preferred entry point — no layout transposes).

    x: (B, H, W, C) f32; w1/w2: (3, 3, C, C) HWIO; wd: (C, Cr); wu: (Cr, C).
    """
    B, H, W, C = x.shape
    Cr = wd.shape[1]
    assert w1.shape == (3, 3, C, C) and w2.shape == (3, 3, C, C)

    # Output-column group size: aim for G*C == 128 lanes (aligned slices / stores).
    if C <= 128 and 128 % C == 0 and W % (128 // C) == 0:
        G = 128 // C
    elif W % 2 == 0:
        G = 2
    else:
        G = 1
    assert W % G == 0

    # Batch tile: at least 4 grid steps (>= 2 per TensorCore on v7x) when B allows it.
    if block_batch is None:
        target_steps = 4 if B >= 4 else B
        block_batch = max(bt for bt in range(1, B + 1)
                          if B % bt == 0 and B // bt >= target_steps)
    bt = block_batch
    assert B % bt == 0, (B, bt)

    WC = W * C
    WpC = (W + 2) * C
    KG, NG = (G + 2) * C, G * C

    # Per-dy block-Toeplitz conv weights, bf16 (MXU-native; f32 accumulation in-kernel).
    w1t = _block_toeplitz(w1, G).astype(mxu_dtype)
    w2t = _block_toeplitz(w2, G).astype(mxu_dtype)

    # Lane-dense global-average-pool / channel-broadcast matrices (exact values).
    eye = jnp.eye(C, dtype=jnp.float32)
    pool = jnp.tile(eye, (W, 1)) / float(H * W)     # (W*C, C)
    bcast = jnp.tile(eye, (1, W))                   # (C, W*C)

    x_ld = x.reshape(B, H, WC)                      # lane-dense HBM view (free reshape)

    # VMEM budget from actual (padded) block sizes + headroom.
    est = (2 * 2 * _padded_vmem_bytes((bt, H, WC), 4)                 # in + out, 2-buf
           + 2 * 2 * _padded_vmem_bytes((3, KG, NG), 2)               # conv weights
           + 2 * (_padded_vmem_bytes((C, Cr), 4) + _padded_vmem_bytes((Cr, C), 4)
                  + _padded_vmem_bytes((WC, C), 4) + _padded_vmem_bytes((C, WC), 4))
           + _padded_vmem_bytes((bt, H + 2, WpC), 2))                 # scratch
    vmem_limit = int(min(56 * 2**20, max(2 * est + 8 * 2**20, 32 * 2**20)))

    out_ld = pl.pallas_call(
        _cab_kernel,
        out_shape=jax.ShapeDtypeStruct((B, H, WC), x.dtype),
        grid_spec=pltpu.PrefetchScalarGridSpec(
            num_scalar_prefetch=0,
            grid=(B // bt,),
            in_specs=[
                pl.BlockSpec((bt, H, WC), lambda b: (b, 0, 0)),
                pl.BlockSpec((3, KG, NG), lambda b: (0, 0, 0)),
                pl.BlockSpec((3, KG, NG), lambda b: (0, 0, 0)),
                pl.BlockSpec((C, Cr), lambda b: (0, 0)),
                pl.BlockSpec((Cr, C), lambda b: (0, 0)),
                pl.BlockSpec((WC, C), lambda b: (0, 0)),
                pl.BlockSpec((C, WC), lambda b: (0, 0)),
            ],
            out_specs=pl.BlockSpec((bt, H, WC), lambda b: (b, 0, 0)),
            scratch_shapes=[
                pltpu.VMEM((bt, H + 2, WpC), mxu_dtype),   # padded lane-dense activation
            ],
        ),
        compiler_params=pltpu.CompilerParams(
            dimension_semantics=("parallel",),             # batch blocks are independent
            vmem_limit_bytes=vmem_limit,
        ),
    )(x_ld, w1t, w2t, wd, wu, pool, bcast)
    return out_ld.reshape(B, H, W, C)


def cab_pallas(x_nchw, w1, w2, wd, wu, **kwargs):
    """PyTorch-convention wrapper: x (B, C, H, W) -> (B, C, H, W)."""
    x = jnp.transpose(x_nchw, (0, 2, 3, 1))
    out = cab_pallas_nhwc(x, w1, w2, wd, wu, **kwargs)
    return jnp.transpose(out, (0, 3, 1, 2))


def cab_reference(x_nchw, w1, w2, wd, wu):
    """Pure-JAX f32 reference (mirrors the PyTorch forward)."""
    x = jnp.transpose(x_nchw, (0, 2, 3, 1))
    dn = ('NHWC', 'HWIO', 'NHWC')
    r = lax.conv_general_dilated(x, w1, (1, 1), 'SAME', dimension_numbers=dn,
                                 precision=lax.Precision.HIGHEST)
    r = jnp.maximum(r, 0.0)
    r = lax.conv_general_dilated(r, w2, (1, 1), 'SAME', dimension_numbers=dn,
                                 precision=lax.Precision.HIGHEST)
    y = jnp.mean(r, axis=(1, 2), keepdims=True)                       # (B,1,1,C)
    z = jnp.maximum(jnp.einsum('bijc,cd->bijd', y, wd), 0.0)
    s = jax.nn.sigmoid(jnp.einsum('bijd,dc->bijc', z, wu))
    out = r * s + x
    return jnp.transpose(out, (0, 3, 1, 2))


if __name__ == "__main__":
    # CAB-consistent small shapes: n_feat=32, kernel_size=3, reduction=8, bias=False, act=ReLU
    B, C, H, W = 2, 32, 16, 16
    reduction = 8
    Cr = C // reduction

    key = jax.random.PRNGKey(0)
    kx, k1, k2, kd, ku = jax.random.split(key, 5)

    x = jax.random.normal(kx, (B, C, H, W), jnp.float32)
    w1 = jax.random.normal(k1, (3, 3, C, C), jnp.float32) * (2.0 / (9 * C)) ** 0.5
    w2 = jax.random.normal(k2, (3, 3, C, C), jnp.float32) * (2.0 / (9 * C)) ** 0.5
    wd = jax.random.normal(kd, (C, Cr), jnp.float32) * (2.0 / C) ** 0.5
    wu = jax.random.normal(ku, (Cr, C), jnp.float32) * (2.0 / Cr) ** 0.5

    out = jax.block_until_ready(cab_pallas(x, w1, w2, wd, wu))
    ref = jax.block_until_ready(cab_reference(x, w1, w2, wd, wu))

    assert out.shape == (B, C, H, W), out.shape
    # bf16 MXU operands with f32 accumulation over two chained 3x3 convs.
    assert jnp.allclose(out, ref, rtol=5e-2, atol=5e-2), float(jnp.max(jnp.abs(out - ref)))
    print("KERNEL_OK")
</pallas_src>

<mosaic_0001>
module attributes {stable_mosaic.version = 11 : i64} {
  func.func @_cab_kernel(%arg0: i32, %arg1: memref<1x16x512xf32, #tpu.memory_space<vmem>>, %arg2: memref<3x192x128xbf16, #tpu.memory_space<vmem>>, %arg3: memref<3x192x128xbf16, #tpu.memory_space<vmem>>, %arg4: memref<32x4xf32, #tpu.memory_space<vmem>>, %arg5: memref<4x32xf32, #tpu.memory_space<vmem>>, %arg6: memref<512x32xf32, #tpu.memory_space<vmem>>, %arg7: memref<32x512xf32, #tpu.memory_space<vmem>>, %arg8: memref<1x16x512xf32, #tpu.memory_space<vmem>>, %arg9: memref<1x18x576xbf16, #tpu.memory_space<vmem>>) attributes {dimension_semantics = [#tpu.dimension_semantics<parallel>], iteration_bounds = array<i64: 2>, scalar_prefetch = 0 : i64, scratch_operands = 1 : i64, tpu.core_type = #tpu.core_type<tc>, window_params = [{transform_indices = @transform_0, window_bounds = array<i64: 1, 16, 512>}, {pipeline_mode = #tpu.pipeline_mode<synchronous>, transform_indices = @transform_1, window_bounds = array<i64: 3, 192, 128>}, {pipeline_mode = #tpu.pipeline_mode<synchronous>, transform_indices = @transform_2, window_bounds = array<i64: 3, 192, 128>}, {pipeline_mode = #tpu.pipeline_mode<synchronous>, transform_indices = @transform_3, window_bounds = array<i64: 32, 4>}, {pipeline_mode = #tpu.pipeline_mode<synchronous>, transform_indices = @transform_4, window_bounds = array<i64: 4, 32>}, {pipeline_mode = #tpu.pipeline_mode<synchronous>, transform_indices = @transform_5, window_bounds = array<i64: 512, 32>}, {pipeline_mode = #tpu.pipeline_mode<synchronous>, transform_indices = @transform_6, window_bounds = array<i64: 32, 512>}, {transform_indices = @transform_7, window_bounds = array<i64: 1, 16, 512>}]} {
    %cst = arith.constant 0.000000e+00 : bf16
    %0 = vector.broadcast %cst : bf16 to vector<1x1x576xbf16>
    %c0 = arith.constant 0 : index
    %c0_0 = arith.constant 0 : index
    %c0_1 = arith.constant 0 : index
    %1 = vector.load %arg9[%c0, %c0_0, %c0_1] : memref<1x18x576xbf16, #tpu.memory_space<vmem>>, vector<1x1x576xbf16>
    tpu.vector_store %arg9[%c0, %c0_0, %c0_1], %0 {strides = array<i32>} : memref<1x18x576xbf16, #tpu.memory_space<vmem>>, vector<1x1x576xbf16>,
    %cst_2 = arith.constant 0.000000e+00 : bf16
    %2 = vector.broadcast %cst_2 : bf16 to vector<1x1x576xbf16>
    %c0_3 = arith.constant 0 : index
    %c17 = arith.constant 17 : index
    %c0_4 = arith.constant 0 : index
    %3 = vector.load %arg9[%c0_3, %c17, %c0_4] : memref<1x18x576xbf16, #tpu.memory_space<vmem>>, vector<1x1x576xbf16>
    tpu.vector_store %arg9[%c0_3, %c17, %c0_4], %2 {strides = array<i32>} : memref<1x18x576xbf16, #tpu.memory_space<vmem>>, vector<1x1x576xbf16>,
    %cst_5 = arith.constant 0.000000e+00 : bf16
    %4 = vector.broadcast %cst_5 : bf16 to vector<1x16x32xbf16>
    %c0_6 = arith.constant 0 : index
    %c1 = arith.constant 1 : index
    %c0_7 = arith.constant 0 : index
    %5 = vector.load %arg9[%c0_6, %c1, %c0_7] : memref<1x18x576xbf16, #tpu.memory_space<vmem>>, vector<1x16x32xbf16>
    tpu.vector_store %arg9[%c0_6, %c1, %c0_7], %4 {strides = array<i32>} : memref<1x18x576xbf16, #tpu.memory_space<vmem>>, vector<1x16x32xbf16>,
    %cst_8 = arith.constant 0.000000e+00 : bf16
    %6 = vector.broadcast %cst_8 : bf16 to vector<1x16x32xbf16>
    %c0_9 = arith.constant 0 : index
    %c1_10 = arith.constant 1 : index
    %c544 = arith.constant 544 : index
    %7 = vector.load %arg9[%c0_9, %c1_10, %c544] : memref<1x18x576xbf16, #tpu.memory_space<vmem>>, vector<1x16x32xbf16>
    tpu.vector_store %arg9[%c0_9, %c1_10, %c544], %6 {strides = array<i32>} : memref<1x18x576xbf16, #tpu.memory_space<vmem>>, vector<1x16x32xbf16>,
    %c0_11 = arith.constant 0 : index
    %c0_12 = arith.constant 0 : index
    %c0_13 = arith.constant 0 : index
    %8 = vector.load %arg1[%c0_11, %c0_12, %c0_13] : memref<1x16x512xf32, #tpu.memory_space<vmem>>, vector<1x16x512xf32>
    %9 = arith.truncf %8 : vector<1x16x512xf32> to vector<1x16x512xbf16>
    %c0_14 = arith.constant 0 : index
    %c1_15 = arith.constant 1 : index
    %c32 = arith.constant 32 : index
    %10 = vector.load %arg9[%c0_14, %c1_15, %c32] : memref<1x18x576xbf16, #tpu.memory_space<vmem>>, vector<1x16x512xbf16>
    tpu.vector_store %arg9[%c0_14, %c1_15, %c32], %9 {strides = array<i32>} : memref<1x18x576xbf16, #tpu.memory_space<vmem>>, vector<1x16x512xbf16>,
    %cst_16 = arith.constant 0.000000e+00 : f32
    %11 = vector.broadcast %cst_16 : f32 to vector<16x128xf32>
    %cst_17 = arith.constant 0.000000e+00 : f32
    %12 = vector.broadcast %cst_17 : f32 to vector<16x128xf32>
    %cst_18 = arith.constant 0.000000e+00 : f32
    %13 = vector.broadcast %cst_18 : f32 to vector<16x128xf32>
    %cst_19 = arith.constant 0.000000e+00 : f32
    %14 = vector.broadcast %cst_19 : f32 to vector<16x128xf32>
    %c0_20 = arith.constant 0 : index
    %c0_21 = arith.constant 0 : index
    %c0_22 = arith.constant 0 : index
    %15 = vector.load %arg2[%c0_20, %c0_21, %c0_22] : memref<3x192x128xbf16, #tpu.memory_space<vmem>>, vector<1x192x128xbf16>
    %16 = vector.shape_cast %15 : vector<1x192x128xbf16> to vector<192x128xbf16>
    %c0_23 = arith.constant 0 : index
    %c0_24 = arith.constant 0 : index
    %c0_25 = arith.constant 0 : index
    %17 = vector.load %arg9[%c0_23, %c0_24, %c0_25] : memref<1x18x576xbf16, #tpu.memory_space<vmem>>, vector<1x16x192xbf16>
    %18 = vector.shape_cast %17 : vector<1x16x192xbf16> to vector<16x192xbf16>
    %cst_26 = arith.constant dense<0.000000e+00> : vector<16x128xf32>
    %19 = tpu.matmul %18, %16, %cst_26 {dimension_numbers = #tpu.dot_dimension_numbers<[1], [0], [0], [1], [0, 0, 1, 1], [], []>} : vector<16x192xbf16>, vector<192x128xbf16>, vector<16x128xf32> -> vector<16x128xf32>
    %20 = arith.addf %11, %19 : vector<16x128xf32>
    %c0_27 = arith.constant 0 : index
    %c0_28 = arith.constant 0 : index
    %c128 = arith.constant 128 : index
    %21 = vector.load %arg9[%c0_27, %c0_28, %c128] : memref<1x18x576xbf16, #tpu.memory_space<vmem>>, vector<1x16x192xbf16>
    %22 = vector.shape_cast %21 : vector<1x16x192xbf16> to vector<16x192xbf16>
    %cst_29 = arith.constant dense<0.000000e+00> : vector<16x128xf32>
    %23 = tpu.matmul %22, %16, %cst_29 {dimension_numbers = #tpu.dot_dimension_numbers<[1], [0], [0], [1], [0, 0, 1, 1], [], []>} : vector<16x192xbf16>, vector<192x128xbf16>, vector<16x128xf32> -> vector<16x128xf32>
    %24 = arith.addf %12, %23 : vector<16x128xf32>
    %c0_30 = arith.constant 0 : index
    %c0_31 = arith.constant 0 : index
    %c256 = arith.constant 256 : index
    %25 = vector.load %arg9[%c0_30, %c0_31, %c256] : memref<1x18x576xbf16, #tpu.memory_space<vmem>>, vector<1x16x192xbf16>
    %26 = vector.shape_cast %25 : vector<1x16x192xbf16> to vector<16x192xbf16>
    %cst_32 = arith.constant dense<0.000000e+00> : vector<16x128xf32>
    %27 = tpu.matmul %26, %16, %cst_32 {dimension_numbers = #tpu.dot_dimension_numbers<[1], [0], [0], [1], [0, 0, 1, 1], [], []>} : vector<16x192xbf16>, vector<192x128xbf16>, vector<16x128xf32> -> vector<16x128xf32>
    %28 = arith.addf %13, %27 : vector<16x128xf32>
    %c0_33 = arith.constant 0 : index
    %c0_34 = arith.constant 0 : index
    %c384 = arith.constant 384 : index
    %29 = vector.load %arg9[%c0_33, %c0_34, %c384] : memref<1x18x576xbf16, #tpu.memory_space<vmem>>, vector<1x16x192xbf16>
    %30 = vector.shape_cast %29 : vector<1x16x192xbf16> to vector<16x192xbf16>
    %cst_35 = arith.constant dense<0.000000e+00> : vector<16x128xf32>
    %31 = tpu.matmul %30, %16, %cst_35 {dimension_numbers = #tpu.dot_dimension_numbers<[1], [0], [0], [1], [0, 0, 1, 1], [], []>} : vector<16x192xbf16>, vector<192x128xbf16>, vector<16x128xf32> -> vector<16x128xf32>
    %32 = arith.addf %14, %31 : vector<16x128xf32>
    %c1_36 = arith.constant 1 : index
    %c0_37 = arith.constant 0 : index
    %c0_38 = arith.constant 0 : index
    %33 = vector.load %arg2[%c1_36, %c0_37, %c0_38] : memref<3x192x128xbf16, #tpu.memory_space<vmem>>, vector<1x192x128xbf16>
    %34 = vector.shape_cast %33 : vector<1x192x128xbf16> to vector<192x128xbf16>
    %c0_39 = arith.constant 0 : index
    %c1_40 = arith.constant 1 : index
    %c0_41 = arith.constant 0 : index
    %35 = vector.load %arg9[%c0_39, %c1_40, %c0_41] : memref<1x18x576xbf16, #tpu.memory_space<vmem>>, vector<1x16x192xbf16>
    %36 = vector.shape_cast %35 : vector<1x16x192xbf16> to vector<16x192xbf16>
    %cst_42 = arith.constant dense<0.000000e+00> : vector<16x128xf32>
    %37 = tpu.matmul %36, %34, %cst_42 {dimension_numbers = #tpu.dot_dimension_numbers<[1], [0], [0], [1], [0, 0, 1, 1], [], []>} : vector<16x192xbf16>, vector<192x128xbf16>, vector<16x128xf32> -> vector<16x128xf32>
    %38 = arith.addf %20, %37 : vector<16x128xf32>
    %c0_43 = arith.constant 0 : index
    %c1_44 = arith.constant 1 : index
    %c128_45 = arith.constant 128 : index
    %39 = vector.load %arg9[%c0_43, %c1_44, %c128_45] : memref<1x18x576xbf16, #tpu.memory_space<vmem>>, vector<1x16x192xbf16>
    %40 = vector.shape_cast %39 : vector<1x16x192xbf16> to vector<16x192xbf16>
    %cst_46 = arith.constant dense<0.000000e+00> : vector<16x128xf32>
    %41 = tpu.matmul %40, %34, %cst_46 {dimension_numbers = #tpu.dot_dimension_numbers<[1], [0], [0], [1], [0, 0, 1, 1], [], []>} : vector<16x192xbf16>, vector<192x128xbf16>, vector<16x128xf32> -> vector<16x128xf32>
    %42 = arith.addf %24, %41 : vector<16x128xf32>
    %c0_47 = arith.constant 0 : index
    %c1_48 = arith.constant 1 : index
    %c256_49 = arith.constant 256 : index
    %43 = vector.load %arg9[%c0_47, %c1_48, %c256_49] : memref<1x18x576xbf16, #tpu.memory_space<vmem>>, vector<1x16x192xbf16>
    %44 = vector.shape_cast %43 : vector<1x16x192xbf16> to vector<16x192xbf16>
    %cst_50 = arith.constant dense<0.000000e+00> : vector<16x128xf32>
    %45 = tpu.matmul %44, %34, %cst_50 {dimension_numbers = #tpu.dot_dimension_numbers<[1], [0], [0], [1], [0, 0, 1, 1], [], []>} : vector<16x192xbf16>, vector<192x128xbf16>, vector<16x128xf32> -> vector<16x128xf32>
    %46 = arith.addf %28, %45 : vector<16x128xf32>
    %c0_51 = arith.constant 0 : index
    %c1_52 = arith.constant 1 : index
    %c384_53 = arith.constant 384 : index
    %47 = vector.load %arg9[%c0_51, %c1_52, %c384_53] : memref<1x18x576xbf16, #tpu.memory_space<vmem>>, vector<1x16x192xbf16>
    %48 = vector.shape_cast %47 : vector<1x16x192xbf16> to vector<16x192xbf16>
    %cst_54 = arith.constant dense<0.000000e+00> : vector<16x128xf32>
    %49 = tpu.matmul %48, %34, %cst_54 {dimension_numbers = #tpu.dot_dimension_numbers<[1], [0], [0], [1], [0, 0, 1, 1], [], []>} : vector<16x192xbf16>, vector<192x128xbf16>, vector<16x128xf32> -> vector<16x128xf32>
    %50 = arith.addf %32, %49 : vector<16x128xf32>
    %c2 = arith.constant 2 : index
    %c0_55 = arith.constant 0 : index
    %c0_56 = arith.constant 0 : index
    %51 = vector.load %arg2[%c2, %c0_55, %c0_56] : memref<3x192x128xbf16, #tpu.memory_space<vmem>>, vector<1x192x128xbf16>
    %52 = vector.shape_cast %51 : vector<1x192x128xbf16> to vector<192x128xbf16>
    %c0_57 = arith.constant 0 : index
    %c2_58 = arith.constant 2 : index
    %c0_59 = arith.constant 0 : index
    %53 = vector.load %arg9[%c0_57, %c2_58, %c0_59] : memref<1x18x576xbf16, #tpu.memory_space<vmem>>, vector<1x16x192xbf16>
    %54 = vector.shape_cast %53 : vector<1x16x192xbf16> to vector<16x192xbf16>
    %cst_60 = arith.constant dense<0.000000e+00> : vector<16x128xf32>
    %55 = tpu.matmul %54, %52, %cst_60 {dimension_numbers = #tpu.dot_dimension_numbers<[1], [0], [0], [1], [0, 0, 1, 1], [], []>} : vector<16x192xbf16>, vector<192x128xbf16>, vector<16x128xf32> -> vector<16x128xf32>
    %56 = arith.addf %38, %55 : vector<16x128xf32>
    %c0_61 = arith.constant 0 : index
    %c2_62 = arith.constant 2 : index
    %c128_63 = arith.constant 128 : index
    %57 = vector.load %arg9[%c0_61, %c2_62, %c128_63] : memref<1x18x576xbf16, #tpu.memory_space<vmem>>, vector<1x16x192xbf16>
    %58 = vector.shape_cast %57 : vector<1x16x192xbf16> to vector<16x192xbf16>
    %cst_64 = arith.constant dense<0.000000e+00> : vector<16x128xf32>
    %59 = tpu.matmul %58, %52, %cst_64 {dimension_numbers = #tpu.dot_dimension_numbers<[1], [0], [0], [1], [0, 0, 1, 1], [], []>} : vector<16x192xbf16>, vector<192x128xbf16>, vector<16x128xf32> -> vector<16x128xf32>
    %60 = arith.addf %42, %59 : vector<16x128xf32>
    %c0_65 = arith.constant 0 : index
    %c2_66 = arith.constant 2 : index
    %c256_67 = arith.constant 256 : index
    %61 = vector.load %arg9[%c0_65, %c2_66, %c256_67] : memref<1x18x576xbf16, #tpu.memory_space<vmem>>, vector<1x16x192xbf16>
    %62 = vector.shape_cast %61 : vector<1x16x192xbf16> to vector<16x192xbf16>
    %cst_68 = arith.constant dense<0.000000e+00> : vector<16x128xf32>
    %63 = tpu.matmul %62, %52, %cst_68 {dimension_numbers = #tpu.dot_dimension_numbers<[1], [0], [0], [1], [0, 0, 1, 1], [], []>} : vector<16x192xbf16>, vector<192x128xbf16>, vector<16x128xf32> -> vector<16x128xf32>
    %64 = arith.addf %46, %63 : vector<16x128xf32>
    %c0_69 = arith.constant 0 : index
    %c2_70 = arith.constant 2 : index
    %c384_71 = arith.constant 384 : index
    %65 = vector.load %arg9[%c0_69, %c2_70, %c384_71] : memref<1x18x576xbf16, #tpu.memory_space<vmem>>, vector<1x16x192xbf16>
    %66 = vector.shape_cast %65 : vector<1x16x192xbf16> to vector<16x192xbf16>
    %cst_72 = arith.constant dense<0.000000e+00> : vector<16x128xf32>
    %67 = tpu.matmul %66, %52, %cst_72 {dimension_numbers = #tpu.dot_dimension_numbers<[1], [0], [0], [1], [0, 0, 1, 1], [], []>} : vector<16x192xbf16>, vector<192x128xbf16>, vector<16x128xf32> -> vector<16x128xf32>
    %68 = arith.addf %50, %67 : vector<16x128xf32>
    %69 = tpu.concatenate %56, %60, %64, %68 in 1 : vector<16x128xf32>, vector<16x128xf32>, vector<16x128xf32>, vector<16x128xf32> -> vector<16x512xf32>
    %cst_73 = arith.constant 0.000000e+00 : f32
    %70 = vector.broadcast %cst_73 : f32 to vector<16x512xf32>
    %71 = arith.maximumf %69, %70 : vector<16x512xf32>
    %72 = arith.truncf %71 : vector<16x512xf32> to vector<16x512xbf16>
    %73 = vector.shape_cast %72 : vector<16x512xbf16> to vector<1x16x512xbf16>
    %c0_74 = arith.constant 0 : index
    %c1_75 = arith.constant 1 : index
    %c32_76 = arith.constant 32 : index
    %74 = vector.load %arg9[%c0_74, %c1_75, %c32_76] : memref<1x18x576xbf16, #tpu.memory_space<vmem>>, vector<1x16x512xbf16>
    tpu.vector_store %arg9[%c0_74, %c1_75, %c32_76], %73 {strides = array<i32>} : memref<1x18x576xbf16, #tpu.memory_space<vmem>>, vector<1x16x512xbf16>,
    %cst_77 = arith.constant 0.000000e+00 : f32
    %75 = vector.broadcast %cst_77 : f32 to vector<16x128xf32>
    %cst_78 = arith.constant 0.000000e+00 : f32
    %76 = vector.broadcast %cst_78 : f32 to vector<16x128xf32>
    %cst_79 = arith.constant 0.000000e+00 : f32
    %77 = vector.broadcast %cst_79 : f32 to vector<16x128xf32>
    %cst_80 = arith.constant 0.000000e+00 : f32
    %78 = vector.broadcast %cst_80 : f32 to vector<16x128xf32>
    %c0_81 = arith.constant 0 : index
    %c0_82 = arith.constant 0 : index
    %c0_83 = arith.constant 0 : index
    %79 = vector.load %arg3[%c0_81, %c0_82, %c0_83] : memref<3x192x128xbf16, #tpu.memory_space<vmem>>, vector<1x192x128xbf16>
    %80 = vector.shape_cast %79 : vector<1x192x128xbf16> to vector<192x128xbf16>
    %c0_84 = arith.constant 0 : index
    %c0_85 = arith.constant 0 : index
    %c0_86 = arith.constant 0 : index
    %81 = vector.load %arg9[%c0_84, %c0_85, %c0_86] : memref<1x18x576xbf16, #tpu.memory_space<vmem>>, vector<1x16x192xbf16>
    %82 = vector.shape_cast %81 : vector<1x16x192xbf16> to vector<16x192xbf16>
    %cst_87 = arith.constant dense<0.000000e+00> : vector<16x128xf32>
    %83 = tpu.matmul %82, %80, %cst_87 {dimension_numbers = #tpu.dot_dimension_numbers<[1], [0], [0], [1], [0, 0, 1, 1], [], []>} : vector<16x192xbf16>, vector<192x128xbf16>, vector<16x128xf32> -> vector<16x128xf32>
    %84 = arith.addf %75, %83 : vector<16x128xf32>
    %c0_88 = arith.constant 0 : index
    %c0_89 = arith.constant 0 : index
    %c128_90 = arith.constant 128 : index
    %85 = vector.load %arg9[%c0_88, %c0_89, %c128_90] : memref<1x18x576xbf16, #tpu.memory_space<vmem>>, vector<1x16x192xbf16>
    %86 = vector.shape_cast %85 : vector<1x16x192xbf16> to vector<16x192xbf16>
    %cst_91 = arith.constant dense<0.000000e+00> : vector<16x128xf32>
    %87 = tpu.matmul %86, %80, %cst_91 {dimension_numbers = #tpu.dot_dimension_numbers<[1], [0], [0], [1], [0, 0, 1, 1], [], []>} : vector<16x192xbf16>, vector<192x128xbf16>, vector<16x128xf32> -> vector<16x128xf32>
    %88 = arith.addf %76, %87 : vector<16x128xf32>
    %c0_92 = arith.constant 0 : index
    %c0_93 = arith.constant 0 : index
    %c256_94 = arith.constant 256 : index
    %89 = vector.load %arg9[%c0_92, %c0_93, %c256_94] : memref<1x18x576xbf16, #tpu.memory_space<vmem>>, vector<1x16x192xbf16>
    %90 = vector.shape_cast %89 : vector<1x16x192xbf16> to vector<16x192xbf16>
    %cst_95 = arith.constant dense<0.000000e+00> : vector<16x128xf32>
    %91 = tpu.matmul %90, %80, %cst_95 {dimension_numbers = #tpu.dot_dimension_numbers<[1], [0], [0], [1], [0, 0, 1, 1], [], []>} : vector<16x192xbf16>, vector<192x128xbf16>, vector<16x128xf32> -> vector<16x128xf32>
    %92 = arith.addf %77, %91 : vector<16x128xf32>
    %c0_96 = arith.constant 0 : index
    %c0_97 = arith.constant 0 : index
    %c384_98 = arith.constant 384 : index
    %93 = vector.load %arg9[%c0_96, %c0_97, %c384_98] : memref<1x18x576xbf16, #tpu.memory_space<vmem>>, vector<1x16x192xbf16>
    %94 = vector.shape_cast %93 : vector<1x16x192xbf16> to vector<16x192xbf16>
    %cst_99 = arith.constant dense<0.000000e+00> : vector<16x128xf32>
    %95 = tpu.matmul %94, %80, %cst_99 {dimension_numbers = #tpu.dot_dimension_numbers<[1], [0], [0], [1], [0, 0, 1, 1], [], []>} : vector<16x192xbf16>, vector<192x128xbf16>, vector<16x128xf32> -> vector<16x128xf32>
    %96 = arith.addf %78, %95 : vector<16x128xf32>
    %c1_100 = arith.constant 1 : index
    %c0_101 = arith.constant 0 : index
    %c0_102 = arith.constant 0 : index
    %97 = vector.load %arg3[%c1_100, %c0_101, %c0_102] : memref<3x192x128xbf16, #tpu.memory_space<vmem>>, vector<1x192x128xbf16>
    %98 = vector.shape_cast %97 : vector<1x192x128xbf16> to vector<192x128xbf16>
    %c0_103 = arith.constant 0 : index
    %c1_104 = arith.constant 1 : index
    %c0_105 = arith.constant 0 : index
    %99 = vector.load %arg9[%c0_103, %c1_104, %c0_105] : memref<1x18x576xbf16, #tpu.memory_space<vmem>>, vector<1x16x192xbf16>
    %100 = vector.shape_cast %99 : vector<1x16x192xbf16> to vector<16x192xbf16>
    %cst_106 = arith.constant dense<0.000000e+00> : vector<16x128xf32>
    %101 = tpu.matmul %100, %98, %cst_106 {dimension_numbers = #tpu.dot_dimension_numbers<[1], [0], [0], [1], [0, 0, 1, 1], [], []>} : vector<16x192xbf16>, vector<192x128xbf16>, vector<16x128xf32> -> vector<16x128xf32>
    %102 = arith.addf %84, %101 : vector<16x128xf32>
    %c0_107 = arith.constant 0 : index
    %c1_108 = arith.constant 1 : index
    %c128_109 = arith.constant 128 : index
    %103 = vector.load %arg9[%c0_107, %c1_108, %c128_109] : memref<1x18x576xbf16, #tpu.memory_space<vmem>>, vector<1x16x192xbf16>
    %104 = vector.shape_cast %103 : vector<1x16x192xbf16> to vector<16x192xbf16>
    %cst_110 = arith.constant dense<0.000000e+00> : vector<16x128xf32>
    %105 = tpu.matmul %104, %98, %cst_110 {dimension_numbers = #tpu.dot_dimension_numbers<[1], [0], [0], [1], [0, 0, 1, 1], [], []>} : vector<16x192xbf16>, vector<192x128xbf16>, vector<16x128xf32> -> vector<16x128xf32>
    %106 = arith.addf %88, %105 : vector<16x128xf32>
    %c0_111 = arith.constant 0 : index
    %c1_112 = arith.constant 1 : index
    %c256_113 = arith.constant 256 : index
    %107 = vector.load %arg9[%c0_111, %c1_112, %c256_113] : memref<1x18x576xbf16, #tpu.memory_space<vmem>>, vector<1x16x192xbf16>
    %108 = vector.shape_cast %107 : vector<1x16x192xbf16> to vector<16x192xbf16>
    %cst_114 = arith.constant dense<0.000000e+00> : vector<16x128xf32>
    %109 = tpu.matmul %108, %98, %cst_114 {dimension_numbers = #tpu.dot_dimension_numbers<[1], [0], [0], [1], [0, 0, 1, 1], [], []>} : vector<16x192xbf16>, vector<192x128xbf16>, vector<16x128xf32> -> vector<16x128xf32>
    %110 = arith.addf %92, %109 : vector<16x128xf32>
    %c0_115 = arith.constant 0 : index
    %c1_116 = arith.constant 1 : index
    %c384_117 = arith.constant 384 : index
    %111 = vector.load %arg9[%c0_115, %c1_116, %c384_117] : memref<1x18x576xbf16, #tpu.memory_space<vmem>>, vector<1x16x192xbf16>
    %112 = vector.shape_cast %111 : vector<1x16x192xbf16> to vector<16x192xbf16>
    %cst_118 = arith.constant dense<0.000000e+00> : vector<16x128xf32>
    %113 = tpu.matmul %112, %98, %cst_118 {dimension_numbers = #tpu.dot_dimension_numbers<[1], [0], [0], [1], [0, 0, 1, 1], [], []>} : vector<16x192xbf16>, vector<192x128xbf16>, vector<16x128xf32> -> vector<16x128xf32>
    %114 = arith.addf %96, %113 : vector<16x128xf32>
    %c2_119 = arith.constant 2 : index
    %c0_120 = arith.constant 0 : index
    %c0_121 = arith.constant 0 : index
    %115 = vector.load %arg3[%c2_119, %c0_120, %c0_121] : memref<3x192x128xbf16, #tpu.memory_space<vmem>>, vector<1x192x128xbf16>
    %116 = vector.shape_cast %115 : vector<1x192x128xbf16> to vector<192x128xbf16>
    %c0_122 = arith.constant 0 : index
    %c2_123 = arith.constant 2 : index
    %c0_124 = arith.constant 0 : index
    %117 = vector.load %arg9[%c0_122, %c2_123, %c0_124] : memref<1x18x576xbf16, #tpu.memory_space<vmem>>, vector<1x16x192xbf16>
    %118 = vector.shape_cast %117 : vector<1x16x192xbf16> to vector<16x192xbf16>
    %cst_125 = arith.constant dense<0.000000e+00> : vector<16x128xf32>
    %119 = tpu.matmul %118, %116, %cst_125 {dimension_numbers = #tpu.dot_dimension_numbers<[1], [0], [0], [1], [0, 0, 1, 1], [], []>} : vector<16x192xbf16>, vector<192x128xbf16>, vector<16x128xf32> -> vector<16x128xf32>
    %120 = arith.addf %102, %119 : vector<16x128xf32>
    %c0_126 = arith.constant 0 : index
    %c2_127 = arith.constant 2 : index
    %c128_128 = arith.constant 128 : index
    %121 = vector.load %arg9[%c0_126, %c2_127, %c128_128] : memref<1x18x576xbf16, #tpu.memory_space<vmem>>, vector<1x16x192xbf16>
    %122 = vector.shape_cast %121 : vector<1x16x192xbf16> to vector<16x192xbf16>
    %cst_129 = arith.constant dense<0.000000e+00> : vector<16x128xf32>
    %123 = tpu.matmul %122, %116, %cst_129 {dimension_numbers = #tpu.dot_dimension_numbers<[1], [0], [0], [1], [0, 0, 1, 1], [], []>} : vector<16x192xbf16>, vector<192x128xbf16>, vector<16x128xf32> -> vector<16x128xf32>
    %124 = arith.addf %106, %123 : vector<16x128xf32>
    %c0_130 = arith.constant 0 : index
    %c2_131 = arith.constant 2 : index
    %c256_132 = arith.constant 256 : index
    %125 = vector.load %arg9[%c0_130, %c2_131, %c256_132] : memref<1x18x576xbf16, #tpu.memory_space<vmem>>, vector<1x16x192xbf16>
    %126 = vector.shape_cast %125 : vector<1x16x192xbf16> to vector<16x192xbf16>
    %cst_133 = arith.constant dense<0.000000e+00> : vector<16x128xf32>
    %127 = tpu.matmul %126, %116, %cst_133 {dimension_numbers = #tpu.dot_dimension_numbers<[1], [0], [0], [1], [0, 0, 1, 1], [], []>} : vector<16x192xbf16>, vector<192x128xbf16>, vector<16x128xf32> -> vector<16x128xf32>
    %128 = arith.addf %110, %127 : vector<16x128xf32>
    %c0_134 = arith.constant 0 : index
    %c2_135 = arith.constant 2 : index
    %c384_136 = arith.constant 384 : index
    %129 = vector.load %arg9[%c0_134, %c2_135, %c384_136] : memref<1x18x576xbf16, #tpu.memory_space<vmem>>, vector<1x16x192xbf16>
    %130 = vector.shape_cast %129 : vector<1x16x192xbf16> to vector<16x192xbf16>
    %cst_137 = arith.constant dense<0.000000e+00> : vector<16x128xf32>
    %131 = tpu.matmul %130, %116, %cst_137 {dimension_numbers = #tpu.dot_dimension_numbers<[1], [0], [0], [1], [0, 0, 1, 1], [], []>} : vector<16x192xbf16>, vector<192x128xbf16>, vector<16x128xf32> -> vector<16x128xf32>
    %132 = arith.addf %114, %131 : vector<16x128xf32>
    %133 = tpu.concatenate %120, %124, %128, %132 in 1 : vector<16x128xf32>, vector<16x128xf32>, vector<16x128xf32>, vector<16x128xf32> -> vector<16x512xf32>
    %134 = vector.shape_cast %133 : vector<16x512xf32> to vector<1x16x512xf32>
    %cst_138 = arith.constant dense<0.000000e+00> : vector<1x512xf32>
    %135 = vector.multi_reduction <add>, %134, %cst_138 [1] : vector<1x16x512xf32> to vector<1x512xf32>
    %c0_139 = arith.constant 0 : index
    %c0_140 = arith.constant 0 : index
    %136 = vector.load %arg6[%c0_139, %c0_140] : memref<512x32xf32, #tpu.memory_space<vmem>>, vector<512x32xf32>
    %cst_141 = arith.constant dense<0.000000e+00> : vector<1x32xf32>
    %137 = tpu.matmul %135, %136, %cst_141 {dimension_numbers = #tpu.dot_dimension_numbers<[1], [0], [0], [1], [0, 0, 1, 1], [], []>} : vector<1x512xf32>, vector<512x32xf32>, vector<1x32xf32> -> vector<1x32xf32>
    %c0_142 = arith.constant 0 : index
    %c0_143 = arith.constant 0 : index
    %c0_144 = arith.constant 0 : index
    %138 = vector.load %arg8[%c0_142, %c0_143, %c0_144] : memref<1x16x512xf32, #tpu.memory_space<vmem>>, vector<1x16x512xf32>
    tpu.vector_store %arg8[%c0_142, %c0_143, %c0_144], %134 {strides = array<i32>} : memref<1x16x512xf32, #tpu.memory_space<vmem>>, vector<1x16x512xf32>,
    %c0_145 = arith.constant 0 : index
    %c0_146 = arith.constant 0 : index
    %139 = vector.load %arg4[%c0_145, %c0_146] : memref<32x4xf32, #tpu.memory_space<vmem>>, vector<32x4xf32>
    %cst_147 = arith.constant dense<0.000000e+00> : vector<1x4xf32>
    %140 = tpu.matmul %137, %139, %cst_147 {dimension_numbers = #tpu.dot_dimension_numbers<[1], [0], [0], [1], [0, 0, 1, 1], [], []>} : vector<1x32xf32>, vector<32x4xf32>, vector<1x4xf32> -> vector<1x4xf32>
    %cst_148 = arith.constant 0.000000e+00 : f32
    %141 = vector.broadcast %cst_148 : f32 to vector<1x4xf32>
    %142 = arith.maximumf %140, %141 : vector<1x4xf32>
    %c0_149 = arith.constant 0 : index
    %c0_150 = arith.constant 0 : index
    %143 = vector.load %arg5[%c0_149, %c0_150] : memref<4x32xf32, #tpu.memory_space<vmem>>, vector<4x32xf32>
    %cst_151 = arith.constant dense<0.000000e+00> : vector<1x32xf32>
    %144 = tpu.matmul %142, %143, %cst_151 {dimension_numbers = #tpu.dot_dimension_numbers<[1], [0], [0], [1], [0, 0, 1, 1], [], []>} : vector<1x4xf32>, vector<4x32xf32>, vector<1x32xf32> -> vector<1x32xf32>
    %145 = arith.negf %144 : vector<1x32xf32>
    %146 = math.exp %145 : vector<1x32xf32>
    %cst_152 = arith.constant 1.000000e+00 : f32
    %147 = vector.broadcast %cst_152 : f32 to vector<1x32xf32>
    %148 = arith.addf %147, %146 : vector<1x32xf32>
    %149 = arith.divf %147, %148 : vector<1x32xf32>
    %c0_153 = arith.constant 0 : index
    %c0_154 = arith.constant 0 : index
    %150 = vector.load %arg7[%c0_153, %c0_154] : memref<32x512xf32, #tpu.memory_space<vmem>>, vector<32x512xf32>
    %cst_155 = arith.constant dense<0.000000e+00> : vector<1x512xf32>
    %151 = tpu.matmul %149, %150, %cst_155 {dimension_numbers = #tpu.dot_dimension_numbers<[1], [0], [0], [1], [0, 0, 1, 1], [], []>} : vector<1x32xf32>, vector<32x512xf32>, vector<1x512xf32> -> vector<1x512xf32>
    %c0_156 = arith.constant 0 : index
    %c0_157 = arith.constant 0 : index
    %c0_158 = arith.constant 0 : index
    %152 = vector.load %arg8[%c0_156, %c0_157, %c0_158] : memref<1x16x512xf32, #tpu.memory_space<vmem>>, vector<1x16x512xf32>
    %153 = vector.shape_cast %151 : vector<1x512xf32> to vector<1x1x512xf32>
    %154 = vector.broadcast %153 : vector<1x1x512xf32> to vector<1x16x512xf32>
    %155 = arith.mulf %152, %154 : vector<1x16x512xf32>
    %c0_159 = arith.constant 0 : index
    %c0_160 = arith.constant 0 : index
    %c0_161 = arith.constant 0 : index
    %156 = vector.load %arg1[%c0_159, %c0_160, %c0_161] : memref<1x16x512xf32, #tpu.memory_space<vmem>>, vector<1x16x512xf32>
    %157 = arith.addf %155, %156 : vector<1x16x512xf32>
    %c0_162 = arith.constant 0 : index
    %c0_163 = arith.constant 0 : index
    %c0_164 = arith.constant 0 : index
    %158 = vector.load %arg8[%c0_162, %c0_163, %c0_164] : memref<1x16x512xf32, #tpu.memory_space<vmem>>, vector<1x16x512xf32>
    tpu.vector_store %arg8[%c0_162, %c0_163, %c0_164], %157 {strides = array<i32>} : memref<1x16x512xf32, #tpu.memory_space<vmem>>, vector<1x16x512xf32>,
    return
  }
  func.func @transform_0(%arg0: i32) -> (i32, i32, i32) {
    %c0_i32 = arith.constant 0 : i32
    %c0_i32_0 = arith.constant 0 : i32
    %c0_i32_1 = arith.constant 0 : i32
    return %arg0, %c0_i32, %c0_i32_0 : i32, i32, i32
  }
  func.func @transform_1(%arg0: i32) -> (i32, i32, i32) {
    %c0_i32 = arith.constant 0 : i32
    %c0_i32_0 = arith.constant 0 : i32
    %c0_i32_1 = arith.constant 0 : i32
    %c0_i32_2 = arith.constant 0 : i32
    return %c0_i32, %c0_i32_0, %c0_i32_1 : i32, i32, i32
  }
  func.func @transform_2(%arg0: i32) -> (i32, i32, i32) {
    %c0_i32 = arith.constant 0 : i32
    %c0_i32_0 = arith.constant 0 : i32
    %c0_i32_1 = arith.constant 0 : i32
    %c0_i32_2 = arith.constant 0 : i32
    return %c0_i32, %c0_i32_0, %c0_i32_1 : i32, i32, i32
  }
  func.func @transform_3(%arg0: i32) -> (i32, i32) {
    %c0_i32 = arith.constant 0 : i32
    %c0_i32_0 = arith.constant 0 : i32
    %c0_i32_1 = arith.constant 0 : i32
    return %c0_i32, %c0_i32_0 : i32, i32
  }
  func.func @transform_4(%arg0: i32) -> (i32, i32) {
    %c0_i32 = arith.constant 0 : i32
    %c0_i32_0 = arith.constant 0 : i32
    %c0_i32_1 = arith.constant 0 : i32
    return %c0_i32, %c0_i32_0 : i32, i32
  }
  func.func @transform_5(%arg0: i32) -> (i32, i32) {
    %c0_i32 = arith.constant 0 : i32
    %c0_i32_0 = arith.constant 0 : i32
    %c0_i32_1 = arith.constant 0 : i32
    return %c0_i32, %c0_i32_0 : i32, i32
  }
  func.func @transform_6(%arg0: i32) -> (i32, i32) {
    %c0_i32 = arith.constant 0 : i32
    %c0_i32_0 = arith.constant 0 : i32
    %c0_i32_1 = arith.constant 0 : i32
    return %c0_i32, %c0_i32_0 : i32, i32
  }
  func.func @transform_7(%arg0: i32) -> (i32, i32, i32) {
    %c0_i32 = arith.constant 0 : i32
    %c0_i32_0 = arith.constant 0 : i32
    %c0_i32_1 = arith.constant 0 : i32
    return %arg0, %c0_i32, %c0_i32_0 : i32, i32, i32
  }
}

</mosaic_0001>

<llo_original>
// kernel: tpu_custom_call.1
$region0: #{tpu_custom_call.1}
  #allocation0 [shape = 'u32[]', space=smem, size = 0x4, offset = 0x4, fixed_abs, tag = 'smem constant byte address 0x4 - core index']
  #allocation1 [shape = 'u32[72,128]{1,0:T(1,128)}', space=vmem, size = 0x9000, scoped, tag = 'internal scratch']
  #allocation2 [shape = 'bf16[1,18,576]{2,1,0:T(8,128)(2,1)}', space=vmem, size = 0x7800, scoped, tag = 'scratch operand']
  %s0 = inlined_call_operand.hbm [shape: f32[2,16,512], index: 0, kind: input, shape index: {}]
  %s1 = inlined_call_operand.vmem [shape: bf16[3,192,128], index: 1, kind: input, shape index: {}]
  %s2 = inlined_call_operand.vmem [shape: bf16[3,192,128], index: 2, kind: input, shape index: {}]
  %s3 = inlined_call_operand.vmem [shape: f32[32,4], index: 3, kind: input, shape index: {}]
  %s4 = inlined_call_operand.vmem [shape: f32[4,32], index: 4, kind: input, shape index: {}]
  %s5 = inlined_call_operand.vmem [shape: f32[512,32], index: 5, kind: input, shape index: {}]
  %s6 = inlined_call_operand.hbm [shape: f32[32,512], index: 6, kind: input, shape index: {}]
  %s7 = inlined_call_operand.hbm [shape: f32[2,16,512], index: 7, kind: output, shape index: {}]
  %s8 = sld [smem:[#allocation0]]
  $region69: #{tpu_custom_call.1} parent=0
    _
  %s10 = ssub.s32 1, %s8
  %s11 = scalar_select 0, %s10, %s8
  $region1: #{tpu_custom_call.1} parent=0
    #allocation3 [shape = 'u8[65536]{0}', space=vmem, size = 0x10000, scoped, tag = 'input window, operand 0']
    #allocation4 [shape = 's32[2]{0}', space=sflag, size = 0x8, scoped, tag = 'scoped memory for tpu_custom_call.1']
    #allocation5 [shape = 's32[2]{0}', space=sflag, size = 0x8, scoped, tag = 'scoped memory for tpu_custom_call.1']
    #allocation6 [shape = 'u8[65536]{0}', space=vmem, size = 0x10000, scoped, tag = 'input window, operand 6, single buffered']
    #allocation7 [shape = 's32[1]{0}', space=sflag, size = 0x4, scoped, tag = 'scoped memory for tpu_custom_call.1']
    #allocation8 [shape = 'u8[65536]{0}', space=vmem, size = 0x10000, scoped, tag = 'output window, operand 0']
    %12 = vsyncpa [#allocation4], 0
    %s13 = scalar_lea.sflag [#allocation4], 1
    %14 = vsyncpa %s13, 0
    %15 = vsyncpa [#allocation7], 0
    %16 = vsyncpa [#allocation5], 0
    %s17 = scalar_lea.sflag [#allocation5], 1
    %18 = vsyncpa %s17, 0
    loop: start=0, step=1, limit=4
    $region2: #{tpu_custom_call.1} parent=1 // loop_pre_header
      _
    $region3: #{tpu_custom_call.1} parent=1 // loop_header
      %s20 = sphi 0, %s24
      %p21 = scmp.ge.s32.totalorder %s20, 4
      %s30 = sphi 0, %s32
      %s33 = sphi 0, %s30
      %s34 = sphi 0, %s33
      %s50 = sphi 0, %s34
      %s54 = sphi 0, %s54
      %s56 = sphi 0, %s54
      %s57 = sphi 0, %s56
      %s71 = sphi 0, %s57
      %s75 = sphi 0, %s75
      %s77 = sphi 0, %s75
      %s78 = sphi 0, %s77
      %s92 = sphi 0, %s78
      %s96 = sphi 0, %s96
      %s98 = sphi 0, %s96
      %s99 = sphi 0, %s98
      %s113 = sphi 0, %s99
      %s117 = sphi 0, %s117
      %s119 = sphi 0, %s117
      %s120 = sphi 0, %s119
      %s134 = sphi 0, %s120
      %s138 = sphi 0, %s138
      %s140 = sphi 0, %s138
      %s141 = sphi 0, %s140
      %s155 = sphi 0, %s141
      %s159 = sphi 0, %s159
      %s161 = sphi 0, %s159
      %s162 = sphi 0, %s161
      %s176 = sphi 0, %s162
      %s182 = sphi 0, %s184
      %s185 = sphi 0, %s182
      %s186 = sphi 0, %s185
      %s202 = sphi 0, %s186
    $region4: #{tpu_custom_call.1} parent=1 // loop_header_branch
      %23 = sbr.rel (%p21) target = $region8
    $region5: #{tpu_custom_call.1} parent=1 // loop_body
      %s25 = ssub.s32 %s20, 1
      %s26 = ssub.s32 %s20, 2
      %s27 = sadd.s32 %s20, 1
      %s28 = ssub.s32 %s20, %s27
      %p29 = scmp.eq.s32.totalorder %s28, 0
      %s31 = sadd.s32 %s30, 1
      %s32 = scalar_select %p29, %s30, %s31
      %p35 = pneg %p29
      %p36 = scmp.eq.s32.totalorder %s20, 1
      %p37 = por %p35, %p36
      %p38 = scmp.ne.s32.totalorder %s30, %s33
      %p39 = scmp.eq.s32.totalorder %s20, 0
      %p40 = por %p38, %p39
      %p41 = scmp.ne.s32.totalorder %s30, %s33
      %p42 = scmp.eq.s32.totalorder %s25, 1
      %p43 = por %p41, %p42
      %p44 = scmp.ne.s32.totalorder %s33, %s34
      %p45 = scmp.eq.s32.totalorder %s25, 0
      %p46 = por %p44, %p45
      %p47 = scmp.ne.s32.totalorder %s33, %s34
      %p48 = scmp.eq.s32.totalorder %s26, 1
      %p49 = por %p47, %p48
      %p51 = scmp.ne.s32.totalorder %s34, %s50
      %p52 = scmp.eq.s32.totalorder %s26, 0
      %p53 = por %p51, %p52
      %s55 = sadd.s32 %s54, 1
      %p58 = scmp.eq.s32.totalorder %s20, 1
      %p59 = scmp.ne.s32.totalorder %s54, %s56
      %p60 = scmp.eq.s32.totalorder %s20, 0
      %p61 = por %p59, %p60
      %p62 = scmp.ne.s32.totalorder %s54, %s56
      %p63 = scmp.eq.s32.totalorder %s25, 1
      %p64 = por %p62, %p63
      %p65 = scmp.ne.s32.totalorder %s56, %s57
      %p66 = scmp.eq.s32.totalorder %s25, 0
      %p67 = por %p65, %p66
      %p68 = scmp.ne.s32.totalorder %s56, %s57
      %p69 = scmp.eq.s32.totalorder %s26, 1
      %p70 = por %p68, %p69
      %p72 = scmp.ne.s32.totalorder %s57, %s71
      %p73 = scmp.eq.s32.totalorder %s26, 0
      %p74 = por %p72, %p73
      %s76 = sadd.s32 %s75, 1
      %p79 = scmp.eq.s32.totalorder %s20, 1
      %p80 = scmp.ne.s32.totalorder %s75, %s77
      %p81 = scmp.eq.s32.totalorder %s20, 0
      %p82 = por %p80, %p81
      %p83 = scmp.ne.s32.totalorder %s75, %s77
      %p84 = scmp.eq.s32.totalorder %s25, 1
      %p85 = por %p83, %p84
      %p86 = scmp.ne.s32.totalorder %s77, %s78
      %p87 = scmp.eq.s32.totalorder %s25, 0
      %p88 = por %p86, %p87
      %p89 = scmp.ne.s32.totalorder %s77, %s78
      %p90 = scmp.eq.s32.totalorder %s26, 1
      %p91 = por %p89, %p90
      %p93 = scmp.ne.s32.totalorder %s78, %s92
      %p94 = scmp.eq.s32.totalorder %s26, 0
      %p95 = por %p93, %p94
      %s97 = sadd.s32 %s96, 1
      %p100 = scmp.eq.s32.totalorder %s20, 1
      %p101 = scmp.ne.s32.totalorder %s96, %s98
      %p102 = scmp.eq.s32.totalorder %s20, 0
      %p103 = por %p101, %p102
      %p104 = scmp.ne.s32.totalorder %s96, %s98
      %p105 = scmp.eq.s32.totalorder %s25, 1
      %p106 = por %p104, %p105
      %p107 = scmp.ne.s32.totalorder %s98, %s99
      %p108 = scmp.eq.s32.totalorder %s25, 0
      %p109 = por %p107, %p108
      %p110 = scmp.ne.s32.totalorder %s98, %s99
      %p111 = scmp.eq.s32.totalorder %s26, 1
      %p112 = por %p110, %p111
      %p114 = scmp.ne.s32.totalorder %s99, %s113
      %p115 = scmp.eq.s32.totalorder %s26, 0
      %p116 = por %p114, %p115
      %s118 = sadd.s32 %s117, 1
      %p121 = scmp.eq.s32.totalorder %s20, 1
      %p122 = scmp.ne.s32.totalorder %s117, %s119
      %p123 = scmp.eq.s32.totalorder %s20, 0
      %p124 = por %p122, %p123
      %p125 = scmp.ne.s32.totalorder %s117, %s119
      %p126 = scmp.eq.s32.totalorder %s25, 1
      %p127 = por %p125, %p126
      %p128 = scmp.ne.s32.totalorder %s119, %s120
      %p129 = scmp.eq.s32.totalorder %s25, 0
      %p130 = por %p128, %p129
      %p131 = scmp.ne.s32.totalorder %s119, %s120
      %p132 = scmp.eq.s32.totalorder %s26, 1
      %p133 = por %p131, %p132
      %p135 = scmp.ne.s32.totalorder %s120, %s134
      %p136 = scmp.eq.s32.totalorder %s26, 0
      %p137 = por %p135, %p136
      %s139 = sadd.s32 %s138, 1
      %p142 = scmp.eq.s32.totalorder %s20, 1
      %p143 = scmp.ne.s32.totalorder %s138, %s140
      %p144 = scmp.eq.s32.totalorder %s20, 0
      %p145 = por %p143, %p144
      %p146 = scmp.ne.s32.totalorder %s138, %s140
      %p147 = scmp.eq.s32.totalorder %s25, 1
      %p148 = por %p146, %p147
      %p149 = scmp.ne.s32.totalorder %s140, %s141
      %p150 = scmp.eq.s32.totalorder %s25, 0
      %p151 = por %p149, %p150
      %p152 = scmp.ne.s32.totalorder %s140, %s141
      %p153 = scmp.eq.s32.totalorder %s26, 1
      %p154 = por %p152, %p153
      %p156 = scmp.ne.s32.totalorder %s141, %s155
      %p157 = scmp.eq.s32.totalorder %s26, 0
      %p158 = por %p156, %p157
      %s160 = sadd.s32 %s159, 1
      %p163 = scmp.eq.s32.totalorder %s20, 1
      %p164 = scmp.ne.s32.totalorder %s159, %s161
      %p165 = scmp.eq.s32.totalorder %s20, 0
      %p166 = por %p164, %p165
      %p167 = scmp.ne.s32.totalorder %s159, %s161
      %p168 = scmp.eq.s32.totalorder %s25, 1
      %p169 = por %p167, %p168
      %p170 = scmp.ne.s32.totalorder %s161, %s162
      %p171 = scmp.eq.s32.totalorder %s25, 0
      %p172 = por %p170, %p171
      %p173 = scmp.ne.s32.totalorder %s161, %s162
      %p174 = scmp.eq.s32.totalorder %s26, 1
      %p175 = por %p173, %p174
      %p177 = scmp.ne.s32.totalorder %s162, %s176
      %p178 = scmp.eq.s32.totalorder %s26, 0
      %p179 = por %p177, %p178
      %s180 = ssub.s32 %s20, %s27
      %p181 = scmp.eq.s32.totalorder %s180, 0
      %s183 = sadd.s32 %s182, 1
      %s184 = scalar_select %p181, %s182, %s183
      %p187 = pneg %p181
      %p188 = scmp.eq.s32.totalorder %s20, 1
      %p189 = por %p187, %p188
      %p190 = scmp.ne.s32.totalorder %s182, %s185
      %p191 = scmp.eq.s32.totalorder %s20, 0
      %p192 = por %p190, %p191
      %p193 = scmp.ne.s32.totalorder %s182, %s185
      %p194 = scmp.eq.s32.totalorder %s25, 1
      %p195 = por %p193, %p194
      %p196 = scmp.ne.s32.totalorder %s185, %s186
      %p197 = scmp.eq.s32.totalorder %s25, 0
      %p198 = por %p196, %p197
      %p199 = scmp.ne.s32.totalorder %s185, %s186
      %p200 = scmp.eq.s32.totalorder %s26, 1
      %p201 = por %p199, %p200
      %p203 = scmp.ne.s32.totalorder %s186, %s202
      %p204 = scmp.eq.s32.totalorder %s26, 0
      %p205 = por %p203, %p204
      %p206 = scmp.le.s32.totalorder 1, %s20
      %p207 = scmp.lt.s32.totalorder %s20, 3
      %p208 = pnand %p206, %p207
      %p209 = pneg %p208
      // Predicated region
      $region9: #{tpu_custom_call.1} parent=5 // pred_check
        _
      $region10: #{tpu_custom_call.1} parent=5 // pred_check_branch
        %211 = sbr.rel (%p208) target = $region12
      $region11: #{tpu_custom_call.1} parent=5 // pred_region
        %s212 = ssub.s32 %s20, 1
        // Predicated region
        $region13: #{tpu_custom_call.1} parent=11 // pred_check
          %p213 = pneg %p67
        $region14: #{tpu_custom_call.1} parent=11 // pred_check_branch
          %215 = sbr.rel (%p213) target = $region16
        $region15: #{tpu_custom_call.1} parent=11 // pred_region
          _
        $region16: #{tpu_custom_call.1} parent=11 // pred_fallthru
          _
        // Predicated region
        $region17: #{tpu_custom_call.1} parent=11 // pred_check
          %p216 = pneg %p88
        $region18: #{tpu_custom_call.1} parent=11 // pred_check_branch
          %218 = sbr.rel (%p216) target = $region20
        $region19: #{tpu_custom_call.1} parent=11 // pred_region
          _
        $region20: #{tpu_custom_call.1} parent=11 // pred_fallthru
          _
        // Predicated region
        $region21: #{tpu_custom_call.1} parent=11 // pred_check
          %p219 = pneg %p109
        $region22: #{tpu_custom_call.1} parent=11 // pred_check_branch
          %221 = sbr.rel (%p219) target = $region24
        $region23: #{tpu_custom_call.1} parent=11 // pred_region
          _
        $region24: #{tpu_custom_call.1} parent=11 // pred_fallthru
          _
        // Predicated region
        $region25: #{tpu_custom_call.1} parent=11 // pred_check
          %p222 = pneg %p130
        $region26: #{tpu_custom_call.1} parent=11 // pred_check_branch
          %224 = sbr.rel (%p222) target = $region28
        $region27: #{tpu_custom_call.1} parent=11 // pred_region
          _
        $region28: #{tpu_custom_call.1} parent=11 // pred_fallthru
          _
        // Predicated region
        $region29: #{tpu_custom_call.1} parent=11 // pred_check
          %p225 = pneg %p151
        $region30: #{tpu_custom_call.1} parent=11 // pred_check_branch
          %227 = sbr.rel (%p225) target = $region32
        $region31: #{tpu_custom_call.1} parent=11 // pred_region
          _
        $region32: #{tpu_custom_call.1} parent=11 // pred_fallthru
          _
        // Predicated region
        $region33: #{tpu_custom_call.1} parent=11 // pred_check
          %p228 = pneg %p172
        $region34: #{tpu_custom_call.1} parent=11 // pred_check_branch
          %230 = sbr.rel (%p228) target = $region36
        $region35: #{tpu_custom_call.1} parent=11 // pred_region
          %232 = vsyncadd [#allocation7], 0
          %s233 = sshll.u32 %s6, 4
          %s234 = int_to_ptr.hbm [resolvable:$true] %s233
          %s235 = sshll.u32 [#allocation6], 4
          %s236 = int_to_ptr.vmem [resolvable:$true] %s235
          %241 = dma.hbm_to_vmem [thread:$0]  %s234, 2048, %s236, [#allocation7], 512, 512, 32
        $region36: #{tpu_custom_call.1} parent=11 // pred_fallthru
          _
      $region12: #{tpu_custom_call.1} parent=5 // pred_fallthru
        _
      %p242 = scmp.lt.s32.totalorder %s20, 2
      // Predicated region
      $region37: #{tpu_custom_call.1} parent=5 // pred_check
        %p243 = pneg %p242
      $region38: #{tpu_custom_call.1} parent=5 // pred_check_branch
        %245 = sbr.rel (%p243) target = $region40
      $region39: #{tpu_custom_call.1} parent=5 // pred_region
        // Predicated region
        $region41: #{tpu_custom_call.1} parent=39 // pred_check
          %p246 = pneg %p40
        $region42: #{tpu_custom_call.1} parent=39 // pred_check_branch
          %248 = sbr.rel (%p246) target = $region44
        $region43: #{tpu_custom_call.1} parent=39 // pred_region
          %s249 = sand.u32 %s30, 1
          %s250 = scalar_lea.sflag [#allocation4], %s249
          %s251 = sand.u32 %s30, 1
          %s252 = smul.addr %s251, 64
          %s253 = scalar_lea.vmem [#allocation3], %s252
          %255 = vsyncadd %s250, 0
          %s256 = smul.addr %s20, 8
          %s257 = smul.addr %s256, 8
          %s258 = scalar_lea.hbm %s0, %s257
          %s259 = sshll.u32 %s258, 4
          %s260 = int_to_ptr.hbm [resolvable:$true] %s259
          %s261 = sshll.u32 %s253, 4
          %s262 = int_to_ptr.vmem [resolvable:$true] %s261
          %267 = dma.hbm_to_vmem [thread:$0]  %s260, 1024, %s262, %s250, 512, 512, 32
        $region44: #{tpu_custom_call.1} parent=39 // pred_fallthru
          _
      $region40: #{tpu_custom_call.1} parent=5 // pred_fallthru
        _
      %p268 = scmp.le.s32.totalorder 1, %s20
      %p269 = scmp.lt.s32.totalorder %s20, 3
      %p270 = pnand %p268, %p269
      %p271 = pneg %p270
      // Predicated region
      $region45: #{tpu_custom_call.1} parent=5 // pred_check
        _
      $region46: #{tpu_custom_call.1} parent=5 // pred_check_branch
        %273 = sbr.rel (%p270) target = $region48
      $region47: #{tpu_custom_call.1} parent=5 // pred_region
        %s274 = ssub.s32 %s20, 1
        %s275 = sand.u32 %s33, 1
        %s276 = scalar_lea.sflag [#allocation4], %s275
        %s277 = sand.u32 %s33, 1
        %s278 = smul.addr %s277, 64
        %s279 = scalar_lea.vmem [#allocation3], %s278
        // Predicated region
        $region49: #{tpu_custom_call.1} parent=47 // pred_check
          %p280 = pneg %p46
        $region50: #{tpu_custom_call.1} parent=47 // pred_check_branch
          %282 = sbr.rel (%p280) target = $region52
        $region51: #{tpu_custom_call.1} parent=47 // pred_region
          %284 = dma.done %s276, 1024
        $region52: #{tpu_custom_call.1} parent=47 // pred_fallthru
          _
        // Predicated region
        $region53: #{tpu_custom_call.1} parent=47 // pred_check
          %p285 = pneg %p172
        $region54: #{tpu_custom_call.1} parent=47 // pred_check_branch
          %287 = sbr.rel (%p285) target = $region56
        $region55: #{tpu_custom_call.1} parent=47 // pred_region
          %289 = dma.done [#allocation7], 2048
        $region56: #{tpu_custom_call.1} parent=47 // pred_fallthru
          _
        %s290 = sand.u32 %s33, 1
        %s291 = scalar_lea.sflag [#allocation4], %s290
        %s292 = sand.u32 %s33, 1
        %s293 = smul.addr %s292, 64
        %s294 = scalar_lea.vmem [#allocation3], %s293
        %p295 = pneg %p46
        %p296 = pneg %p43
        %p297 = pneg %p67
        %p298 = pneg %p64
        %p299 = pneg %p88
        %p300 = pneg %p85
        %p301 = pneg %p109
        %p302 = pneg %p106
        %p303 = pneg %p130
        %p304 = pneg %p127
        %p305 = pneg %p151
        %p306 = pneg %p148
        %p307 = pneg %p172
        %p308 = pneg %p169
        %p309 = pneg %p198
        %p310 = pneg %p195
        %s311 = sand.u32 %s185, 1
        %s312 = scalar_lea.sflag [#allocation5], %s311
        %s313 = sand.u32 %s185, 1
        %s314 = smul.addr %s313, 64
        %s315 = scalar_lea.vmem [#allocation8], %s314
        %vm317 = vcmask 1040384
        %vm318 = vsmask.f32 256
        %vm319 = vmand %vm317, %vm318
        %vm320 = vcmask 1044484
        %vm321 = vsmask.f32 4352
        %vm322 = vmand %vm320, %vm321
        %vm323 = vmor %vm322, %vm319
        %v324 = vld [vmem:[#allocation2] sm:$0x11]
        %v325 = vsel %vm323, 0, %v324
        %326 = vst [vmem:[#allocation2] sm:$0x11] %v325
        %v327 = vld [vmem:[#allocation2 + $0x8] sm:$0x11]
        %v328 = vsel %vm323, 0, %v327
        %329 = vst [vmem:[#allocation2 + $0x8] sm:$0x11] %v328
        %vm330 = vcmask 516096
        %vm331 = vmand %vm330, %vm318
        %v332 = vld [vmem:[#allocation2 + $0x10] sm:$0x1]
        %v333 = vsel %vm331, 0, %v332
        %334 = vst [vmem:[#allocation2 + $0x10] sm:$0x1] %v333
        %vm335 = vsmask.f32 7938
        %vm336 = vmand %vm317, %vm335
        %vm337 = vsmask.f32 7954
        %vm338 = vmand %vm320, %vm337
        %vm339 = vmor %vm338, %vm336
        %v340 = vld [vmem:[#allocation2 + $0x28] sm:$0x11]
        %v341 = vsel %vm339, 0, %v340
        %342 = vst [vmem:[#allocation2 + $0x28] sm:$0x11] %v341
        %v343 = vld [vmem:[#allocation2 + $0x30] sm:$0x11]
        %v344 = vsel %vm339, 0, %v343
        %345 = vst [vmem:[#allocation2 + $0x30] sm:$0x11] %v344
        %vm346 = vmand %vm330, %vm335
        %v347 = vld [vmem:[#allocation2 + $0x38] sm:$0x1]
        %v348 = vsel %vm346, 0, %v347
        %349 = vst [vmem:[#allocation2 + $0x38] sm:$0x1] %v348
        %vm350 = vcmask 257024
        %vm351 = vmand %vm350, %vm335
        %v352 = vld [vmem:[#allocation2] sm:$0xf]
        %v353 = vsel %vm351, 0, %v352
        %354 = vst [vmem:[#allocation2] sm:$0xf] %v353
        %vm355 = vcmask 257024
        %356 = vst.msk [vmem:[#allocation2 + $0x14] sm:$0xf] %vm355, 0
        %vm357 = vcmask 253952
        %vm358 = vmand %vm357, %vm318
        %v359 = vld [vmem:[#allocation2 + $0x28] sm:$0x1]
        %v360 = vsel %vm358, 0, %v359
        %361 = vst [vmem:[#allocation2 + $0x28] sm:$0x1] %v360
        %vm362 = vcmask 519424
        %vm363 = vmand %vm362, %vm335
        %v364 = vld [vmem:[#allocation2 + $0x10] sm:$0xf]
        %v365 = vsel %vm363, 0, %v364
        %366 = vst [vmem:[#allocation2 + $0x10] sm:$0xf] %v365
        %vm367 = vcmask 519424
        %368 = vst.msk [vmem:[#allocation2 + $0x24] sm:$0xf] %vm367, 0
        %vm369 = vcmask 516352
        %vm370 = vmand %vm369, %vm318
        %v371 = vld [vmem:[#allocation2 + $0x38] sm:$0x1]
        %v372 = vsel %vm370, 0, %v371
        %373 = vst [vmem:[#allocation2 + $0x38] sm:$0x1] %v372
        %v374 = vld [vmem:[%s279] sm:$0xff]
        %v375 = vld [vmem:[%s279 + $0x8] sm:$0xff]
        %v376 = vld [vmem:[%s279 + $0x10] sm:$0xff]
        %v377 = vld [vmem:[%s279 + $0x18] sm:$0xff]
        %v378 = vld [vmem:[%s279 + $0x20] sm:$0xff]
        %v379 = vld [vmem:[%s279 + $0x28] sm:$0xff]
        %v380 = vld [vmem:[%s279 + $0x30] sm:$0xff]
        %v381 = vld [vmem:[%s279 + $0x38] sm:$0xff]
        %v382 = vpack.c.bf16 %v375, %v374
        %v383 = vpack.c.bf16 %v377, %v376
        %v384 = vpack.c.bf16 %v379, %v378
        %v385 = vpack.c.bf16 %v381, %v380
        %vm386 = vsmask.f32 4368
        %vm387 = vmor %vm318, %vm386
        %v389 = vshrl.u32 %v382, 16
        %v391 = vrot.slane %v389, 7
        %v392 = vshll.u32 %v382, 16
        %v394 = vor.u32 %v391, %v392
        %v396 = vshrl.u32 %v383, 16
        %v398 = vrot.slane %v396, 7
        %v399 = vshll.u32 %v383, 16
        %v401 = vor.u32 %v398, %v399
        %v402 = vrot.slane %v391, 4
        %v404 = vshrl.u32 %v384, 16
        %v406 = vrot.slane %v404, 7
        %v407 = vshll.u32 %v384, 16
        %v409 = vor.u32 %v406, %v407
        %v410 = vsel %vm387, %v402, %v409
        %v411 = vrot.slane %v398, 4
        %v413 = vshrl.u32 %v385, 16
        %v415 = vrot.slane %v413, 7
        %v416 = vshll.u32 %v385, 16
        %v418 = vor.u32 %v415, %v416
        %v419 = vsel %vm387, %v411, %v418
        %v420 = vrot.slane %v406, 4
        %v421 = vrot.slane %v415, 4
        %422 = vrot.lane.b32.xlu0 %v394, 32
        %v423 = vpop.permute.xlu0 %422
        %424 = vrot.lane.b32.xlu0 %v401, 32
        %v425 = vpop.permute.xlu0 %424
        %426 = vrot.lane.b32.xlu0 %v410, 32
        %v427 = vpop.permute.xlu0 %426
        %428 = vrot.lane.b32.xlu0 %v419, 32
        %v429 = vpop.permute.xlu0 %428
        %430 = vrot.lane.b32.xlu0 %v420, 32
        %v431 = vpop.permute.xlu0 %430
        %432 = vrot.lane.b32.xlu0 %v421, 32
        %v433 = vpop.permute.xlu0 %432
        %v434 = vrot.slane %v423, 4
        %v435 = vrot.slane %v425, 4
        %v436 = vrot.slane %v427, 4
        %v437 = vrot.slane %v429, 4
        %v438 = vrot.slane %v431, 4
        %v439 = vrot.slane %v433, 4
        %vm440 = vcmask 261120
        %v441 = vsel %vm440, %v434, %v423
        %vm442 = vcmask 1043456
        %v443 = vsel %vm442, %v434, %v435
        %v444 = vsel %vm440, %v443, %v425
        %v445 = vsel %vm440, %v436, %v427
        %v446 = vsel %vm442, %v436, %v437
        %v447 = vsel %vm440, %v446, %v429
        %v448 = vsel %vm440, %v438, %v431
        %v449 = vsel %vm442, %v438, %v439
        %v450 = vsel %vm440, %v449, %v433
        %vm460 = vcmask 1043712
        %vm461 = vmand %vm460, %vm335
        %vm462 = vcmask 1047556
        %vm463 = vmand %vm462, %vm337
        %vm464 = vmor %vm463, %vm461
        %v465 = vld [vmem:[#allocation2] sm:$0xff]
        %v466 = vsel %vm464, %v441, %v465
        %467 = vst [vmem:[#allocation2] sm:$0xff] %v466
        %vm468 = vmand %vm442, %vm335
        %vm469 = vmor %vm463, %vm468
        %v470 = vld [vmem:[#allocation2 + $0x8] sm:$0xff]
        %v471 = vsel %vm469, %v444, %v470
        %472 = vst [vmem:[#allocation2 + $0x8] sm:$0xff] %v471
        %v473 = vld [vmem:[#allocation2 + $0x10] sm:$0xf]
        %v474 = vsel %vm351, %v435, %v473
        %475 = vst [vmem:[#allocation2 + $0x10] sm:$0xf] %v474
        %vm476 = vcmask 1043712
        %vm477 = vcmask 1047556
        %vm478 = vmor %vm477, %vm476
        %479 = vst.msk [vmem:[#allocation2 + $0x14] sm:$0xff] %vm478, %v445
        %480 = vst [vmem:[#allocation2 + $0x1c] sm:$0xff] %v447
        %481 = vst.msk [vmem:[#allocation2 + $0x24] sm:$0xf] %vm355, %v437
        %vm482 = vcmask 1040640
        %vm483 = vmand %vm482, %vm318
        %vm484 = vmor %vm322, %vm483
        %v485 = vld [vmem:[#allocation2 + $0x28] sm:$0x11]
        %v486 = vsel %vm484, %v448, %v485
        %487 = vst [vmem:[#allocation2 + $0x28] sm:$0x11] %v486
        %v488 = vld [vmem:[#allocation2 + $0x30] sm:$0x11]
        %v489 = vsel %vm323, %v450, %v488
        %490 = vst [vmem:[#allocation2 + $0x30] sm:$0x11] %v489
        %v491 = vld [vmem:[#allocation2 + $0x38] sm:$0x1]
        %v492 = vsel %vm358, %v439, %v491
        %493 = vst [vmem:[#allocation2 + $0x38] sm:$0x1] %v492
        %v494 = vld [vmem:[%s1] sm:$0xf]
        %v495 = vld [vmem:[%s1 + $0x4] sm:$0xf]
        %v496 = vld [vmem:[%s1 + $0x8] sm:$0xf]
        %v497 = vld [vmem:[%s1 + $0xc] sm:$0xf]
        %v498 = vld [vmem:[%s1 + $0x10] sm:$0xf]
        %v499 = vld [vmem:[%s1 + $0x14] sm:$0xf]
        %v500 = vld [vmem:[%s1 + $0x18] sm:$0xf]
        %v501 = vld [vmem:[%s1 + $0x1c] sm:$0xf]
        %v502 = vld [vmem:[%s1 + $0x20] sm:$0xf]
        %v503 = vld [vmem:[%s1 + $0x24] sm:$0xf]
        %v504 = vld [vmem:[%s1 + $0x28] sm:$0xf]
        %v505 = vld [vmem:[%s1 + $0x2c] sm:$0xf]
        %v506 = vld [vmem:[%s1 + $0x30] sm:$0xf]
        %v507 = vld [vmem:[%s1 + $0x34] sm:$0xf]
        %v508 = vld [vmem:[%s1 + $0x38] sm:$0xf]
        %v509 = vld [vmem:[%s1 + $0x3c] sm:$0xf]
        %v510 = vld [vmem:[%s1 + $0x40] sm:$0xf]
        %v511 = vld [vmem:[%s1 + $0x44] sm:$0xf]
        %v512 = vld [vmem:[%s1 + $0x48] sm:$0xf]
        %v513 = vld [vmem:[%s1 + $0x4c] sm:$0xf]
        %v514 = vld [vmem:[%s1 + $0x50] sm:$0xf]
        %v515 = vld [vmem:[%s1 + $0x54] sm:$0xf]
        %v516 = vld [vmem:[%s1 + $0x58] sm:$0xf]
        %v517 = vld [vmem:[%s1 + $0x5c] sm:$0xf]
        %v518 = vld [vmem:[#allocation2] sm:$0xff]
        %v519 = vld [vmem:[#allocation2 + $0x14] sm:$0xff]
        %v520 = vld [vmem:[#allocation2 + $0x4] sm:$0xff]
        %v521 = vld [vmem:[#allocation2 + $0x18] sm:$0xff]
        %v522 = vld [vmem:[#allocation2 + $0x8] sm:$0xff]
        %v523 = vld [vmem:[#allocation2 + $0x1c] sm:$0xff]
        %v524 = vld [vmem:[#allocation2 + $0xc] sm:$0xff]
        %v525 = vld [vmem:[#allocation2 + $0x20] sm:$0xff]
        %s526 = scalar_lea.vmem %s1, 96
        %v527 = vld [vmem:[%s526] sm:$0xf]
        %v528 = vld [vmem:[%s526 + $0x4] sm:$0xf]
        %v529 = vld [vmem:[%s526 + $0x8] sm:$0xf]
        %v530 = vld [vmem:[%s526 + $0xc] sm:$0xf]
        %v531 = vld [vmem:[%s526 + $0x10] sm:$0xf]
        %v532 = vld [vmem:[%s526 + $0x14] sm:$0xf]
        %v533 = vld [vmem:[%s526 + $0x18] sm:$0xf]
        %v534 = vld [vmem:[%s526 + $0x1c] sm:$0xf]
        %v535 = vld [vmem:[%s526 + $0x20] sm:$0xf]
        %v536 = vld [vmem:[%s526 + $0x24] sm:$0xf]
        %v537 = vld [vmem:[%s526 + $0x28] sm:$0xf]
        %v538 = vld [vmem:[%s526 + $0x2c] sm:$0xf]
        %v539 = vld [vmem:[%s526 + $0x30] sm:$0xf]
        %v540 = vld [vmem:[%s526 + $0x34] sm:$0xf]
        %v541 = vld [vmem:[%s526 + $0x38] sm:$0xf]
        %v542 = vld [vmem:[%s526 + $0x3c] sm:$0xf]
        %v543 = vld [vmem:[%s526 + $0x40] sm:$0xf]
        %v544 = vld [vmem:[%s526 + $0x44] sm:$0xf]
        %v545 = vld [vmem:[%s526 + $0x48] sm:$0xf]
        %v546 = vld [vmem:[%s526 + $0x4c] sm:$0xf]
        %v547 = vld [vmem:[%s526 + $0x50] sm:$0xf]
        %v548 = vld [vmem:[%s526 + $0x54] sm:$0xf]
        %v549 = vld [vmem:[%s526 + $0x58] sm:$0xf]
        %v550 = vld [vmem:[%s526 + $0x5c] sm:$0xf]
        %v551 = vld [vmem:[#allocation2 + $0x28] sm:$0x11]
        %v555 = vunpack.c.l.b16 %v518
        %v556 = vunpack.c.h.b16 %v518
        %v557 = vunpack.c.l.b16 %v519
        %v558 = vunpack.c.h.b16 %v519
        %v559 = vunpack.c.l.b16 %v551
        %v560 = vunpack.c.h.b16 %v551
        %v561 = vpack.c.b16 %v557, %v555
        %v562 = vpack.c.b16 %v558, %v556
        %v563 = vpack.c.b16 %v559, %v559
        %v564 = vpack.c.b16 %v560, %v560
        %vm565 = vsmask.f32 7424
        %v567 = vshrl.u32 %v561, 16
        %v569 = vshll.u32 %v561, 16
        %v571 = vrot.slane %v569, 1
        %v572 = vor.u32 %v567, %v571
        %v574 = vshll.u32 %v563, 16
        %v576 = vrot.slane %v574, 1
        %v577 = vsel %vm565, %v572, %v576
        %v579 = vshrl.u32 %v562, 16
        %v581 = vshll.u32 %v562, 16
        %v583 = vrot.slane %v581, 1
        %v584 = vor.u32 %v579, %v583
        %v586 = vshll.u32 %v564, 16
        %v588 = vrot.slane %v586, 1
        %v589 = vsel %vm565, %v584, %v588
        %v615 = vunpack.c.l.b16 %v527
        %v616 = vunpack.c.l.b16 %v528
        %v617 = vunpack.c.l.b16 %v529
        %v618 = vunpack.c.l.b16 %v530
        %v619 = vunpack.c.l.b16 %v531
        %v620 = vunpack.c.l.b16 %v532
        %v621 = vunpack.c.l.b16 %v533
        %v622 = vunpack.c.l.b16 %v534
        %v623 = vunpack.c.l.b16 %v535
        %v624 = vunpack.c.l.b16 %v536
        %v625 = vunpack.c.l.b16 %v537
        %v626 = vunpack.c.l.b16 %v538
        %v627 = vunpack.c.l.b16 %v539
        %v628 = vunpack.c.l.b16 %v540
        %v629 = vunpack.c.l.b16 %v541
        %v630 = vunpack.c.l.b16 %v542
        %v631 = vunpack.c.l.b16 %v543
        %v632 = vunpack.c.l.b16 %v544
        %v633 = vunpack.c.l.b16 %v545
        %v634 = vunpack.c.l.b16 %v546
        %v635 = vunpack.c.l.b16 %v547
        %v636 = vunpack.c.l.b16 %v548
        %v637 = vunpack.c.l.b16 %v549
        %v638 = vunpack.c.l.b16 %v550
        %v639 = vpack.c.b16 %v616, %v615
        %v640 = vpack.c.b16 %v618, %v617
        %v641 = vpack.c.b16 %v620, %v619
        %v642 = vpack.c.b16 %v622, %v621
        %v643 = vpack.c.b16 %v624, %v623
        %v644 = vpack.c.b16 %v626, %v625
        %v645 = vpack.c.b16 %v628, %v627
        %v646 = vpack.c.b16 %v630, %v629
        %v647 = vpack.c.b16 %v632, %v631
        %v648 = vpack.c.b16 %v634, %v633
        %v649 = vpack.c.b16 %v636, %v635
        %v650 = vpack.c.b16 %v638, %v637
        %vm663 = vcmask 523264
        %v665 = vsel %vm663, %v589, 0
        %667 = vmatpush.bf16.msra.mxu0 %v646
        %668 = vmatpush.bf16.msra.mxu0 %v645
        %669 = vmatpush.bf16.msra.mxu0 %v644
        %670 = vmatpush.bf16.msra.mxu0 %v643
        %671 = vmatpush.bf16.msra.mxu0 %v642
        %672 = vmatpush.bf16.msra.mxu0 %v641
        %673 = vmatpush.bf16.msra.mxu0 %v640
        %674 = vmatpush.bf16.msra.mxu0 %v639
        %675 = vmatmul.bf16.gmra.mxu0 %v577
        %v676 = vpop.f32.mrf.mxu0
        %v677 = vadd.f32 0.0, %v676
        %v678 = vpop.f32.mrf.mxu0
        %v679 = vadd.f32 0.0, %v678
        %680 = vdwg.mxu0
        %681 = vmatpush.bf16.msra.mxu0 0
        %682 = vmatpush.bf16.msra.mxu0 0
        %683 = vmatpush.bf16.msra.mxu0 0
        %684 = vmatpush.bf16.msra.mxu0 0
        %685 = vmatpush.bf16.msra.mxu0 %v650
        %686 = vmatpush.bf16.msra.mxu0 %v649
        %687 = vmatpush.bf16.msra.mxu0 %v648
        %688 = vmatpush.bf16.msra.mxu0 %v647
        %689 = vmatmul.bf16.gmra.mxu0 %v665
        %v690 = vpop.f32.mrf.mxu0
        %v691 = vadd.f32 %v677, %v690
        %v692 = vpop.f32.mrf.mxu0
        %v693 = vadd.f32 %v679, %v692
        %694 = vdwg.mxu0
        %v720 = vunpack.c.l.b16 %v494
        %v721 = vunpack.c.l.b16 %v495
        %v722 = vunpack.c.l.b16 %v496
        %v723 = vunpack.c.l.b16 %v497
        %v724 = vunpack.c.l.b16 %v498
        %v725 = vunpack.c.l.b16 %v499
        %v726 = vunpack.c.l.b16 %v500
        %v727 = vunpack.c.l.b16 %v501
        %v728 = vunpack.c.l.b16 %v502
        %v729 = vunpack.c.l.b16 %v503
        %v730 = vunpack.c.l.b16 %v504
        %v731 = vunpack.c.l.b16 %v505
        %v732 = vunpack.c.l.b16 %v506
        %v733 = vunpack.c.l.b16 %v507
        %v734 = vunpack.c.l.b16 %v508
        %v735 = vunpack.c.l.b16 %v509
        %v736 = vunpack.c.l.b16 %v510
        %v737 = vunpack.c.l.b16 %v511
        %v738 = vunpack.c.l.b16 %v512
        %v739 = vunpack.c.l.b16 %v513
        %v740 = vunpack.c.l.b16 %v514
        %v741 = vunpack.c.l.b16 %v515
        %v742 = vunpack.c.l.b16 %v516
        %v743 = vunpack.c.l.b16 %v517
        %v744 = vpack.c.b16 %v721, %v720
        %v745 = vpack.c.b16 %v723, %v722
        %v746 = vpack.c.b16 %v725, %v724
        %v747 = vpack.c.b16 %v727, %v726
        %v748 = vpack.c.b16 %v729, %v728
        %v749 = vpack.c.b16 %v731, %v730
        %v750 = vpack.c.b16 %v733, %v732
        %v751 = vpack.c.b16 %v735, %v734
        %v752 = vpack.c.b16 %v737, %v736
        %v753 = vpack.c.b16 %v739, %v738
        %v754 = vpack.c.b16 %v741, %v740
        %v755 = vpack.c.b16 %v743, %v742
        %v768 = vsel %vm663, %v562, 0
        %770 = vmatpush.bf16.msra.mxu0 %v751
        %771 = vmatpush.bf16.msra.mxu0 %v750
        %772 = vmatpush.bf16.msra.mxu0 %v749
        %773 = vmatpush.bf16.msra.mxu0 %v748
        %774 = vmatpush.bf16.msra.mxu0 %v747
        %775 = vmatpush.bf16.msra.mxu0 %v746
        %776 = vmatpush.bf16.msra.mxu0 %v745
        %777 = vmatpush.bf16.msra.mxu0 %v744
        %778 = vmatmul.bf16.gmra.mxu0 %v561
        %v779 = vpop.f32.mrf.mxu0
        %v780 = vadd.f32 %v691, %v779
        %v781 = vpop.f32.mrf.mxu0
        %v782 = vadd.f32 %v693, %v781
        %783 = vdwg.mxu0
        %784 = vmatpush.bf16.msra.mxu0 0
        %785 = vmatpush.bf16.msra.mxu0 0
        %786 = vmatpush.bf16.msra.mxu0 0
        %787 = vmatpush.bf16.msra.mxu0 0
        %788 = vmatpush.bf16.msra.mxu0 %v755
        %789 = vmatpush.bf16.msra.mxu0 %v754
        %790 = vmatpush.bf16.msra.mxu0 %v753
        %791 = vmatpush.bf16.msra.mxu0 %v752
        %792 = vmatmul.bf16.gmra.mxu0 %v768
        %v793 = vpop.f32.mrf.mxu0
        %v794 = vadd.f32 %v780, %v793
        %v795 = vpop.f32.mrf.mxu0
        %v796 = vadd.f32 %v782, %v795
        %797 = vdwg.mxu0
        %v798 = vld [vmem:[#allocation2 + $0x4] sm:$0xff]
        %v799 = vld [vmem:[#allocation2 + $0x18] sm:$0xff]
        %v800 = vld [vmem:[#allocation2 + $0x2c] sm:$0x11]
        %v804 = vunpack.c.l.b16 %v798
        %v805 = vunpack.c.h.b16 %v798
        %v806 = vunpack.c.l.b16 %v799
        %v807 = vunpack.c.h.b16 %v799
        %v808 = vunpack.c.l.b16 %v800
        %v809 = vunpack.c.h.b16 %v800
        %v810 = vpack.c.b16 %v806, %v804
        %v811 = vpack.c.b16 %v807, %v805
        %v812 = vpack.c.b16 %v808, %v808
        %v813 = vpack.c.b16 %v809, %v809
        %v815 = vshrl.u32 %v810, 16
        %v817 = vshll.u32 %v810, 16
        %v819 = vrot.slane %v817, 1
        %v820 = vor.u32 %v815, %v819
        %v822 = vshll.u32 %v812, 16
        %v824 = vrot.slane %v822, 1
        %v825 = vsel %vm565, %v820, %v824
        %v827 = vshrl.u32 %v811, 16
        %v829 = vshll.u32 %v811, 16
        %v831 = vrot.slane %v829, 1
        %v832 = vor.u32 %v827, %v831
        %v834 = vshll.u32 %v813, 16
        %v836 = vrot.slane %v834, 1
        %v837 = vsel %vm565, %v832, %v836
        %v840 = vsel %vm663, %v837, 0
        %842 = vmatpush.bf16.msra.mxu0 %v646
        %843 = vmatpush.bf16.msra.mxu0 %v645
        %844 = vmatpush.bf16.msra.mxu0 %v644
        %845 = vmatpush.bf16.msra.mxu0 %v643
        %846 = vmatpush.bf16.msra.mxu0 %v642
        %847 = vmatpush.bf16.msra.mxu0 %v641
        %848 = vmatpush.bf16.msra.mxu0 %v640
        %849 = vmatpush.bf16.msra.mxu0 %v639
        %850 = vmatmul.bf16.gmra.mxu0 %v825
        %v851 = vpop.f32.mrf.mxu0
        %v852 = vadd.f32 0.0, %v851
        %v853 = vpop.f32.mrf.mxu0
        %v854 = vadd.f32 0.0, %v853
        %855 = vdwg.mxu0
        %856 = vmatpush.bf16.msra.mxu0 0
        %857 = vmatpush.bf16.msra.mxu0 0
        %858 = vmatpush.bf16.msra.mxu0 0
        %859 = vmatpush.bf16.msra.mxu0 0
        %860 = vmatpush.bf16.msra.mxu0 %v650
        %861 = vmatpush.bf16.msra.mxu0 %v649
        %862 = vmatpush.bf16.msra.mxu0 %v648
        %863 = vmatpush.bf16.msra.mxu0 %v647
        %864 = vmatmul.bf16.gmra.mxu0 %v840
        %v865 = vpop.f32.mrf.mxu0
        %v866 = vadd.f32 %v852, %v865
        %v867 = vpop.f32.mrf.mxu0
        %v868 = vadd.f32 %v854, %v867
        %869 = vdwg.mxu0
        %v872 = vunpack.c.l.b16 %v520
        %v873 = vunpack.c.h.b16 %v520
        %v874 = vunpack.c.l.b16 %v521
        %v875 = vunpack.c.h.b16 %v521
        %v876 = vpack.c.b16 %v874, %v872
        %v877 = vpack.c.b16 %v875, %v873
        %v880 = vsel %vm663, %v877, 0
        %882 = vmatpush.bf16.msra.mxu0 %v751
        %883 = vmatpush.bf16.msra.mxu0 %v750
        %884 = vmatpush.bf16.msra.mxu0 %v749
        %885 = vmatpush.bf16.msra.mxu0 %v748
        %886 = vmatpush.bf16.msra.mxu0 %v747
        %887 = vmatpush.bf16.msra.mxu0 %v746
        %888 = vmatpush.bf16.msra.mxu0 %v745
        %889 = vmatpush.bf16.msra.mxu0 %v744
        %890 = vmatmul.bf16.gmra.mxu0 %v876
        %v891 = vpop.f32.mrf.mxu0
        %v892 = vadd.f32 %v866, %v891
        %v893 = vpop.f32.mrf.mxu0
        %v894 = vadd.f32 %v868, %v893
        %895 = vdwg.mxu0
        %896 = vmatpush.bf16.msra.mxu0 0
        %897 = vmatpush.bf16.msra.mxu0 0
        %898 = vmatpush.bf16.msra.mxu0 0
        %899 = vmatpush.bf16.msra.mxu0 0
        %900 = vmatpush.bf16.msra.mxu0 %v755
        %901 = vmatpush.bf16.msra.mxu0 %v754
        %902 = vmatpush.bf16.msra.mxu0 %v753
        %903 = vmatpush.bf16.msra.mxu0 %v752
        %904 = vmatmul.bf16.gmra.mxu0 %v880
        %v905 = vpop.f32.mrf.mxu0
        %v906 = vadd.f32 %v892, %v905
        %v907 = vpop.f32.mrf.mxu0
        %v908 = vadd.f32 %v894, %v907
        %909 = vdwg.mxu0
        %v910 = vld [vmem:[#allocation2 + $0x8] sm:$0xff]
        %v911 = vld [vmem:[#allocation2 + $0x1c] sm:$0xff]
        %v912 = vld [vmem:[#allocation2 + $0x30] sm:$0x11]
        %v916 = vunpack.c.l.b16 %v910
        %v917 = vunpack.c.h.b16 %v910
        %v918 = vunpack.c.l.b16 %v911
        %v919 = vunpack.c.h.b16 %v911
        %v920 = vunpack.c.l.b16 %v912
        %v921 = vunpack.c.h.b16 %v912
        %v922 = vpack.c.b16 %v918, %v916
        %v923 = vpack.c.b16 %v919, %v917
        %v924 = vpack.c.b16 %v920, %v920
        %v925 = vpack.c.b16 %v921, %v921
        %v927 = vshrl.u32 %v922, 16
        %v929 = vshll.u32 %v922, 16
        %v931 = vrot.slane %v929, 1
        %v932 = vor.u32 %v927, %v931
        %v934 = vshll.u32 %v924, 16
        %v936 = vrot.slane %v934, 1
        %v937 = vsel %vm565, %v932, %v936
        %v939 = vshrl.u32 %v923, 16
        %v941 = vshll.u32 %v923, 16
        %v943 = vrot.slane %v941, 1
        %v944 = vor.u32 %v939, %v943
        %v946 = vshll.u32 %v925, 16
        %v948 = vrot.slane %v946, 1
        %v949 = vsel %vm565, %v944, %v948
        %v952 = vsel %vm663, %v949, 0
        %954 = vmatpush.bf16.msra.mxu0 %v646
        %955 = vmatpush.bf16.msra.mxu0 %v645
        %956 = vmatpush.bf16.msra.mxu0 %v644
        %957 = vmatpush.bf16.msra.mxu0 %v643
        %958 = vmatpush.bf16.msra.mxu0 %v642
        %959 = vmatpush.bf16.msra.mxu0 %v641
        %960 = vmatpush.bf16.msra.mxu0 %v640
        %961 = vmatpush.bf16.msra.mxu0 %v639
        %962 = vmatmul.bf16.gmra.mxu0 %v937
        %v963 = vpop.f32.mrf.mxu0
        %v964 = vadd.f32 0.0, %v963
        %v965 = vpop.f32.mrf.mxu0
        %v966 = vadd.f32 0.0, %v965
        %967 = vdwg.mxu0
        %968 = vmatpush.bf16.msra.mxu0 0
        %969 = vmatpush.bf16.msra.mxu0 0
        %970 = vmatpush.bf16.msra.mxu0 0
        %971 = vmatpush.bf16.msra.mxu0 0
        %972 = vmatpush.bf16.msra.mxu0 %v650
        %973 = vmatpush.bf16.msra.mxu0 %v649
        %974 = vmatpush.bf16.msra.mxu0 %v648
        %975 = vmatpush.bf16.msra.mxu0 %v647
        %976 = vmatmul.bf16.gmra.mxu0 %v952
        %v977 = vpop.f32.mrf.mxu0
        %v978 = vadd.f32 %v964, %v977
        %v979 = vpop.f32.mrf.mxu0
        %v980 = vadd.f32 %v966, %v979
        %981 = vdwg.mxu0
        %v984 = vunpack.c.l.b16 %v522
        %v985 = vunpack.c.h.b16 %v522
        %v986 = vunpack.c.l.b16 %v523
        %v987 = vunpack.c.h.b16 %v523
        %v988 = vpack.c.b16 %v986, %v984
        %v989 = vpack.c.b16 %v987, %v985
        %v992 = vsel %vm663, %v989, 0
        %994 = vmatpush.bf16.msra.mxu0 %v751
        %995 = vmatpush.bf16.msra.mxu0 %v750
        %996 = vmatpush.bf16.msra.mxu0 %v749
        %997 = vmatpush.bf16.msra.mxu0 %v748
        %998 = vmatpush.bf16.msra.mxu0 %v747
        %999 = vmatpush.bf16.msra.mxu0 %v746
        %1000 = vmatpush.bf16.msra.mxu0 %v745
        %1001 = vmatpush.bf16.msra.mxu0 %v744
        %1002 = vmatmul.bf16.gmra.mxu0 %v988
        %v1003 = vpop.f32.mrf.mxu0
        %v1004 = vadd.f32 %v978, %v1003
        %v1005 = vpop.f32.mrf.mxu0
        %v1006 = vadd.f32 %v980, %v1005
        %1007 = vdwg.mxu0
        %1008 = vmatpush.bf16.msra.mxu0 0
        %1009 = vmatpush.bf16.msra.mxu0 0
        %1010 = vmatpush.bf16.msra.mxu0 0
        %1011 = vmatpush.bf16.msra.mxu0 0
        %1012 = vmatpush.bf16.msra.mxu0 %v755
        %1013 = vmatpush.bf16.msra.mxu0 %v754
        %1014 = vmatpush.bf16.msra.mxu0 %v753
        %1015 = vmatpush.bf16.msra.mxu0 %v752
        %1016 = vmatmul.bf16.gmra.mxu0 %v992
        %v1017 = vpop.f32.mrf.mxu0
        %v1018 = vadd.f32 %v1004, %v1017
        %v1019 = vpop.f32.mrf.mxu0
        %v1020 = vadd.f32 %v1006, %v1019
        %1021 = vdwg.mxu0
        %v1022 = vld [vmem:[#allocation2 + $0xc] sm:$0xff]
        %v1023 = vld [vmem:[#allocation2 + $0x20] sm:$0xff]
        %v1024 = vld [vmem:[#allocation2 + $0x34] sm:$0x11]
        %v1028 = vunpack.c.l.b16 %v1022
        %v1029 = vunpack.c.h.b16 %v1022
        %v1030 = vunpack.c.l.b16 %v1023
        %v1031 = vunpack.c.h.b16 %v1023
        %v1032 = vunpack.c.l.b16 %v1024
        %v1033 = vunpack.c.h.b16 %v1024
        %v1034 = vpack.c.b16 %v1030, %v1028
        %v1035 = vpack.c.b16 %v1031, %v1029
        %v1036 = vpack.c.b16 %v1032, %v1032
        %v1037 = vpack.c.b16 %v1033, %v1033
        %v1039 = vshrl.u32 %v1034, 16
        %v1041 = vshll.u32 %v1034, 16
        %v1043 = vrot.slane %v1041, 1
        %v1044 = vor.u32 %v1039, %v1043
        %v1046 = vshll.u32 %v1036, 16
        %v1048 = vrot.slane %v1046, 1
        %v1049 = vsel %vm565, %v1044, %v1048
        %v1051 = vshrl.u32 %v1035, 16
        %v1053 = vshll.u32 %v1035, 16
        %v1055 = vrot.slane %v1053, 1
        %v1056 = vor.u32 %v1051, %v1055
        %v1058 = vshll.u32 %v1037, 16
        %v1060 = vrot.slane %v1058, 1
        %v1061 = vsel %vm565, %v1056, %v1060
        %v1064 = vsel %vm663, %v1061, 0
        %1066 = vmatpush.bf16.msra.mxu0 %v646
        %1067 = vmatpush.bf16.msra.mxu0 %v645
        %1068 = vmatpush.bf16.msra.mxu0 %v644
        %1069 = vmatpush.bf16.msra.mxu0 %v643
        %1070 = vmatpush.bf16.msra.mxu0 %v642
        %1071 = vmatpush.bf16.msra.mxu0 %v641
        %1072 = vmatpush.bf16.msra.mxu0 %v640
        %1073 = vmatpush.bf16.msra.mxu0 %v639
        %1074 = vmatmul.bf16.gmra.mxu0 %v1049
        %v1075 = vpop.f32.mrf.mxu0
        %v1076 = vadd.f32 0.0, %v1075
        %v1077 = vpop.f32.mrf.mxu0
        %v1078 = vadd.f32 0.0, %v1077
        %1079 = vdwg.mxu0
        %1080 = vmatpush.bf16.msra.mxu0 0
        %1081 = vmatpush.bf16.msra.mxu0 0
        %1082 = vmatpush.bf16.msra.mxu0 0
        %1083 = vmatpush.bf16.msra.mxu0 0
        %1084 = vmatpush.bf16.msra.mxu0 %v650
        %1085 = vmatpush.bf16.msra.mxu0 %v649
        %1086 = vmatpush.bf16.msra.mxu0 %v648
        %1087 = vmatpush.bf16.msra.mxu0 %v647
        %1088 = vmatmul.bf16.gmra.mxu0 %v1064
        %v1089 = vpop.f32.mrf.mxu0
        %v1090 = vadd.f32 %v1076, %v1089
        %v1091 = vpop.f32.mrf.mxu0
        %v1092 = vadd.f32 %v1078, %v1091
        %1093 = vdwg.mxu0
        %v1096 = vunpack.c.l.b16 %v524
        %v1097 = vunpack.c.h.b16 %v524
        %v1098 = vunpack.c.l.b16 %v525
        %v1099 = vunpack.c.h.b16 %v525
        %v1100 = vpack.c.b16 %v1098, %v1096
        %v1101 = vpack.c.b16 %v1099, %v1097
        %v1104 = vsel %vm663, %v1101, 0
        %1106 = vmatpush.bf16.msra.mxu0 %v751
        %1107 = vmatpush.bf16.msra.mxu0 %v750
        %1108 = vmatpush.bf16.msra.mxu0 %v749
        %1109 = vmatpush.bf16.msra.mxu0 %v748
        %1110 = vmatpush.bf16.msra.mxu0 %v747
        %1111 = vmatpush.bf16.msra.mxu0 %v746
        %1112 = vmatpush.bf16.msra.mxu0 %v745
        %1113 = vmatpush.bf16.msra.mxu0 %v744
        %1114 = vmatmul.bf16.gmra.mxu0 %v1100
        %v1115 = vpop.f32.mrf.mxu0
        %v1116 = vadd.f32 %v1090, %v1115
        %v1117 = vpop.f32.mrf.mxu0
        %v1118 = vadd.f32 %v1092, %v1117
        %1119 = vdwg.mxu0
        %1120 = vmatpush.bf16.msra.mxu0 0
        %1121 = vmatpush.bf16.msra.mxu0 0
        %1122 = vmatpush.bf16.msra.mxu0 0
        %1123 = vmatpush.bf16.msra.mxu0 0
        %1124 = vmatpush.bf16.msra.mxu0 %v755
        %1125 = vmatpush.bf16.msra.mxu0 %v754
        %1126 = vmatpush.bf16.msra.mxu0 %v753
        %1127 = vmatpush.bf16.msra.mxu0 %v752
        %1128 = vmatmul.bf16.gmra.mxu0 %v1104
        %v1129 = vpop.f32.mrf.mxu0
        %v1130 = vadd.f32 %v1116, %v1129
        %v1131 = vpop.f32.mrf.mxu0
        %v1132 = vadd.f32 %v1118, %v1131
        %1133 = vdwg.mxu0
        %s1134 = scalar_lea.vmem %s1, 192
        %v1135 = vld [vmem:[%s1134] sm:$0xf]
        %v1136 = vld [vmem:[%s1134 + $0x4] sm:$0xf]
        %v1137 = vld [vmem:[%s1134 + $0x8] sm:$0xf]
        %v1138 = vld [vmem:[%s1134 + $0xc] sm:$0xf]
        %v1139 = vld [vmem:[%s1134 + $0x10] sm:$0xf]
        %v1140 = vld [vmem:[%s1134 + $0x14] sm:$0xf]
        %v1141 = vld [vmem:[%s1134 + $0x18] sm:$0xf]
        %v1142 = vld [vmem:[%s1134 + $0x1c] sm:$0xf]
        %v1143 = vld [vmem:[%s1134 + $0x20] sm:$0xf]
        %v1144 = vld [vmem:[%s1134 + $0x24] sm:$0xf]
        %v1145 = vld [vmem:[%s1134 + $0x28] sm:$0xf]
        %v1146 = vld [vmem:[%s1134 + $0x2c] sm:$0xf]
        %v1147 = vld [vmem:[%s1134 + $0x30] sm:$0xf]
        %v1148 = vld [vmem:[%s1134 + $0x34] sm:$0xf]
        %v1149 = vld [vmem:[%s1134 + $0x38] sm:$0xf]
        %v1150 = vld [vmem:[%s1134 + $0x3c] sm:$0xf]
        %v1151 = vld [vmem:[%s1134 + $0x40] sm:$0xf]
        %v1152 = vld [vmem:[%s1134 + $0x44] sm:$0xf]
        %v1153 = vld [vmem:[%s1134 + $0x48] sm:$0xf]
        %v1154 = vld [vmem:[%s1134 + $0x4c] sm:$0xf]
        %v1155 = vld [vmem:[%s1134 + $0x50] sm:$0xf]
        %v1156 = vld [vmem:[%s1134 + $0x54] sm:$0xf]
        %v1157 = vld [vmem:[%s1134 + $0x58] sm:$0xf]
        %v1158 = vld [vmem:[%s1134 + $0x5c] sm:$0xf]
        %v1159 = vld [vmem:[#allocation2] sm:$0xee]
        %v1161 = vunpack.c.l.b16 %v1159
        %v1162 = vunpack.c.h.b16 %v1159
        %v1163 = vpack.c.b16 %v557, %v1161
        %v1164 = vpack.c.b16 %v558, %v1162
        %vm1165 = vcmask 1046528
        %v1166 = vrot.slane %v1163, 1
        %v1167 = vrot.slane %v563, 1
        %v1168 = vsel %vm1165, %v1166, %v1167
        %v1169 = vrot.slane %v1164, 1
        %v1170 = vrot.slane %v564, 1
        %v1171 = vsel %vm1165, %v1169, %v1170
        %v1197 = vunpack.c.l.b16 %v1135
        %v1198 = vunpack.c.l.b16 %v1136
        %v1199 = vunpack.c.l.b16 %v1137
        %v1200 = vunpack.c.l.b16 %v1138
        %v1201 = vunpack.c.l.b16 %v1139
        %v1202 = vunpack.c.l.b16 %v1140
        %v1203 = vunpack.c.l.b16 %v1141
        %v1204 = vunpack.c.l.b16 %v1142
        %v1205 = vunpack.c.l.b16 %v1143
        %v1206 = vunpack.c.l.b16 %v1144
        %v1207 = vunpack.c.l.b16 %v1145
        %v1208 = vunpack.c.l.b16 %v1146
        %v1209 = vunpack.c.l.b16 %v1147
        %v1210 = vunpack.c.l.b16 %v1148
        %v1211 = vunpack.c.l.b16 %v1149
        %v1212 = vunpack.c.l.b16 %v1150
        %v1213 = vunpack.c.l.b16 %v1151
        %v1214 = vunpack.c.l.b16 %v1152
        %v1215 = vunpack.c.l.b16 %v1153
        %v1216 = vunpack.c.l.b16 %v1154
        %v1217 = vunpack.c.l.b16 %v1155
        %v1218 = vunpack.c.l.b16 %v1156
        %v1219 = vunpack.c.l.b16 %v1157
        %v1220 = vunpack.c.l.b16 %v1158
        %v1221 = vpack.c.b16 %v1198, %v1197
        %v1222 = vpack.c.b16 %v1200, %v1199
        %v1223 = vpack.c.b16 %v1202, %v1201
        %v1224 = vpack.c.b16 %v1204, %v1203
        %v1225 = vpack.c.b16 %v1206, %v1205
        %v1226 = vpack.c.b16 %v1208, %v1207
        %v1227 = vpack.c.b16 %v1210, %v1209
        %v1228 = vpack.c.b16 %v1212, %v1211
        %v1229 = vpack.c.b16 %v1214, %v1213
        %v1230 = vpack.c.b16 %v1216, %v1215
        %v1231 = vpack.c.b16 %v1218, %v1217
        %v1232 = vpack.c.b16 %v1220, %v1219
        %v1246 = vsel %vm663, %v1171, 0
        %1248 = vmatpush.bf16.msra.mxu0 %v1228
        %1249 = vmatpush.bf16.msra.mxu0 %v1227
        %1250 = vmatpush.bf16.msra.mxu0 %v1226
        %1251 = vmatpush.bf16.msra.mxu0 %v1225
        %1252 = vmatpush.bf16.msra.mxu0 %v1224
        %1253 = vmatpush.bf16.msra.mxu0 %v1223
        %1254 = vmatpush.bf16.msra.mxu0 %v1222
        %1255 = vmatpush.bf16.msra.mxu0 %v1221
        %1256 = vmatmul.bf16.gmra.mxu0 %v1168
        %v1257 = vpop.f32.mrf.mxu0
        %v1258 = vadd.f32 0.0, %v1257
        %v1259 = vpop.f32.mrf.mxu0
        %v1260 = vadd.f32 0.0, %v1259
        %1261 = vdwg.mxu0
        %1262 = vmatpush.bf16.msra.mxu0 0
        %1263 = vmatpush.bf16.msra.mxu0 0
        %1264 = vmatpush.bf16.msra.mxu0 0
        %1265 = vmatpush.bf16.msra.mxu0 0
        %1266 = vmatpush.bf16.msra.mxu0 %v1232
        %1267 = vmatpush.bf16.msra.mxu0 %v1231
        %1268 = vmatpush.bf16.msra.mxu0 %v1230
        %1269 = vmatpush.bf16.msra.mxu0 %v1229
        %1270 = vmatmul.bf16.gmra.mxu0 %v1246
        %v1271 = vpop.f32.mrf.mxu0
        %v1272 = vadd.f32 %v1258, %v1271
        %v1273 = vpop.f32.mrf.mxu0
        %v1274 = vadd.f32 %v1260, %v1273
        %1275 = vdwg.mxu0
        %v1276 = vadd.f32 %v794, %v1272
        %v1277 = vadd.f32 %v796, %v1274
        %v1278 = vld [vmem:[#allocation2 + $0x4] sm:$0xee]
        %v1280 = vunpack.c.l.b16 %v1278
        %v1281 = vunpack.c.h.b16 %v1278
        %v1282 = vpack.c.b16 %v806, %v1280
        %v1283 = vpack.c.b16 %v807, %v1281
        %v1284 = vrot.slane %v1282, 1
        %v1285 = vrot.slane %v812, 1
        %v1286 = vsel %vm1165, %v1284, %v1285
        %v1287 = vrot.slane %v1283, 1
        %v1288 = vrot.slane %v813, 1
        %v1289 = vsel %vm1165, %v1287, %v1288
        %v1292 = vsel %vm663, %v1289, 0
        %1294 = vmatpush.bf16.msra.mxu0 %v1228
        %1295 = vmatpush.bf16.msra.mxu0 %v1227
        %1296 = vmatpush.bf16.msra.mxu0 %v1226
        %1297 = vmatpush.bf16.msra.mxu0 %v1225
        %1298 = vmatpush.bf16.msra.mxu0 %v1224
        %1299 = vmatpush.bf16.msra.mxu0 %v1223
        %1300 = vmatpush.bf16.msra.mxu0 %v1222
        %1301 = vmatpush.bf16.msra.mxu0 %v1221
        %1302 = vmatmul.bf16.gmra.mxu0 %v1286
        %v1303 = vpop.f32.mrf.mxu0
        %v1304 = vadd.f32 0.0, %v1303
        %v1305 = vpop.f32.mrf.mxu0
        %v1306 = vadd.f32 0.0, %v1305
        %1307 = vdwg.mxu0
        %1308 = vmatpush.bf16.msra.mxu0 0
        %1309 = vmatpush.bf16.msra.mxu0 0
        %1310 = vmatpush.bf16.msra.mxu0 0
        %1311 = vmatpush.bf16.msra.mxu0 0
        %1312 = vmatpush.bf16.msra.mxu0 %v1232
        %1313 = vmatpush.bf16.msra.mxu0 %v1231
        %1314 = vmatpush.bf16.msra.mxu0 %v1230
        %1315 = vmatpush.bf16.msra.mxu0 %v1229
        %1316 = vmatmul.bf16.gmra.mxu0 %v1292
        %v1317 = vpop.f32.mrf.mxu0
        %v1318 = vadd.f32 %v1304, %v1317
        %v1319 = vpop.f32.mrf.mxu0
        %v1320 = vadd.f32 %v1306, %v1319
        %1321 = vdwg.mxu0
        %v1322 = vadd.f32 %v906, %v1318
        %v1323 = vadd.f32 %v908, %v1320
        %v1324 = vld [vmem:[#allocation2 + $0x8] sm:$0xee]
        %v1326 = vunpack.c.l.b16 %v1324
        %v1327 = vunpack.c.h.b16 %v1324
        %v1328 = vpack.c.b16 %v918, %v1326
        %v1329 = vpack.c.b16 %v919, %v1327
        %v1330 = vrot.slane %v1328, 1
        %v1331 = vrot.slane %v924, 1
        %v1332 = vsel %vm1165, %v1330, %v1331
        %v1333 = vrot.slane %v1329, 1
        %v1334 = vrot.slane %v925, 1
        %v1335 = vsel %vm1165, %v1333, %v1334
        %v1338 = vsel %vm663, %v1335, 0
        %1340 = vmatpush.bf16.msra.mxu0 %v1228
        %1341 = vmatpush.bf16.msra.mxu0 %v1227
        %1342 = vmatpush.bf16.msra.mxu0 %v1226
        %1343 = vmatpush.bf16.msra.mxu0 %v1225
        %1344 = vmatpush.bf16.msra.mxu0 %v1224
        %1345 = vmatpush.bf16.msra.mxu0 %v1223
        %1346 = vmatpush.bf16.msra.mxu0 %v1222
        %1347 = vmatpush.bf16.msra.mxu0 %v1221
        %1348 = vmatmul.bf16.gmra.mxu0 %v1332
        %v1349 = vpop.f32.mrf.mxu0
        %v1350 = vadd.f32 0.0, %v1349
        %v1351 = vpop.f32.mrf.mxu0
        %v1352 = vadd.f32 0.0, %v1351
        %1353 = vdwg.mxu0
        %1354 = vmatpush.bf16.msra.mxu0 0
        %1355 = vmatpush.bf16.msra.mxu0 0
        %1356 = vmatpush.bf16.msra.mxu0 0
        %1357 = vmatpush.bf16.msra.mxu0 0
        %1358 = vmatpush.bf16.msra.mxu0 %v1232
        %1359 = vmatpush.bf16.msra.mxu0 %v1231
        %1360 = vmatpush.bf16.msra.mxu0 %v1230
        %1361 = vmatpush.bf16.msra.mxu0 %v1229
        %1362 = vmatmul.bf16.gmra.mxu0 %v1338
        %v1363 = vpop.f32.mrf.mxu0
        %v1364 = vadd.f32 %v1350, %v1363
        %v1365 = vpop.f32.mrf.mxu0
        %v1366 = vadd.f32 %v1352, %v1365
        %1367 = vdwg.mxu0
        %v1368 = vadd.f32 %v1018, %v1364
        %v1369 = vadd.f32 %v1020, %v1366
        %v1370 = vld [vmem:[#allocation2 + $0xc] sm:$0xee]
        %v1372 = vunpack.c.l.b16 %v1370
        %v1373 = vunpack.c.h.b16 %v1370
        %v1374 = vpack.c.b16 %v1030, %v1372
        %v1375 = vpack.c.b16 %v1031, %v1373
        %v1376 = vrot.slane %v1374, 1
        %v1377 = vrot.slane %v1036, 1
        %v1378 = vsel %vm1165, %v1376, %v1377
        %v1379 = vrot.slane %v1375, 1
        %v1380 = vrot.slane %v1037, 1
        %v1381 = vsel %vm1165, %v1379, %v1380
        %v1384 = vsel %vm663, %v1381, 0
        %1386 = vmatpush.bf16.msra.mxu0 %v1228
        %1387 = vmatpush.bf16.msra.mxu0 %v1227
        %1388 = vmatpush.bf16.msra.mxu0 %v1226
        %1389 = vmatpush.bf16.msra.mxu0 %v1225
        %1390 = vmatpush.bf16.msra.mxu0 %v1224
        %1391 = vmatpush.bf16.msra.mxu0 %v1223
        %1392 = vmatpush.bf16.msra.mxu0 %v1222
        %1393 = vmatpush.bf16.msra.mxu0 %v1221
        %1394 = vmatmul.bf16.gmra.mxu0 %v1378
        %v1395 = vpop.f32.mrf.mxu0
        %v1396 = vadd.f32 0.0, %v1395
        %v1397 = vpop.f32.mrf.mxu0
        %v1398 = vadd.f32 0.0, %v1397
        %1399 = vdwg.mxu0
        %1400 = vmatpush.bf16.msra.mxu0 0
        %1401 = vmatpush.bf16.msra.mxu0 0
        %1402 = vmatpush.bf16.msra.mxu0 0
        %1403 = vmatpush.bf16.msra.mxu0 0
        %1404 = vmatpush.bf16.msra.mxu0 %v1232
        %1405 = vmatpush.bf16.msra.mxu0 %v1231
        %1406 = vmatpush.bf16.msra.mxu0 %v1230
        %1407 = vmatpush.bf16.msra.mxu0 %v1229
        %1408 = vmatmul.bf16.gmra.mxu0 %v1384
        %v1409 = vpop.f32.mrf.mxu0
        %v1410 = vadd.f32 %v1396, %v1409
        %v1411 = vpop.f32.mrf.mxu0
        %v1412 = vadd.f32 %v1398, %v1411
        %1413 = vdwg.mxu0
        %v1414 = vadd.f32 %v1130, %v1410
        %v1415 = vadd.f32 %v1132, %v1412
        %v1416 = vmax.f32 %v1276, 0.0
        %v1417 = vmax.f32 %v1322, 0.0
        %v1418 = vmax.f32 %v1368, 0.0
        %v1419 = vmax.f32 %v1414, 0.0
        %v1420 = vmax.f32 %v1277, 0.0
        %v1421 = vmax.f32 %v1323, 0.0
        %v1422 = vmax.f32 %v1369, 0.0
        %v1423 = vmax.f32 %v1415, 0.0
        %v1424 = vpack.c.bf16 %v1417, %v1416
        %v1425 = vpack.c.bf16 %v1419, %v1418
        %v1426 = vpack.c.bf16 %v1421, %v1420
        %v1427 = vpack.c.bf16 %v1423, %v1422
        %v1429 = vshrl.u32 %v1424, 16
        %v1431 = vrot.slane %v1429, 7
        %v1432 = vshll.u32 %v1424, 16
        %v1434 = vor.u32 %v1431, %v1432
        %v1436 = vshrl.u32 %v1425, 16
        %v1438 = vrot.slane %v1436, 7
        %v1439 = vshll.u32 %v1425, 16
        %v1441 = vor.u32 %v1438, %v1439
        %v1442 = vrot.slane %v1431, 4
        %v1444 = vshrl.u32 %v1426, 16
        %v1446 = vrot.slane %v1444, 7
        %v1447 = vshll.u32 %v1426, 16
        %v1449 = vor.u32 %v1446, %v1447
        %v1450 = vsel %vm387, %v1442, %v1449
        %v1451 = vrot.slane %v1438, 4
        %v1453 = vshrl.u32 %v1427, 16
        %v1455 = vrot.slane %v1453, 7
        %v1456 = vshll.u32 %v1427, 16
        %v1458 = vor.u32 %v1455, %v1456
        %v1459 = vsel %vm387, %v1451, %v1458
        %v1460 = vrot.slane %v1446, 4
        %v1461 = vrot.slane %v1455, 4
        %1462 = vrot.lane.b32.xlu0 %v1434, 32
        %v1463 = vpop.permute.xlu0 %1462
        %1464 = vrot.lane.b32.xlu0 %v1441, 32
        %v1465 = vpop.permute.xlu0 %1464
        %1466 = vrot.lane.b32.xlu0 %v1450, 32
        %v1467 = vpop.permute.xlu0 %1466
        %1468 = vrot.lane.b32.xlu0 %v1459, 32
        %v1469 = vpop.permute.xlu0 %1468
        %1470 = vrot.lane.b32.xlu0 %v1460, 32
        %v1471 = vpop.permute.xlu0 %1470
        %1472 = vrot.lane.b32.xlu0 %v1461, 32
        %v1473 = vpop.permute.xlu0 %1472
        %v1474 = vrot.slane %v1463, 4
        %v1475 = vrot.slane %v1465, 4
        %v1476 = vrot.slane %v1467, 4
        %v1477 = vrot.slane %v1469, 4
        %v1478 = vrot.slane %v1471, 4
        %v1479 = vrot.slane %v1473, 4
        %v1480 = vsel %vm440, %v1474, %v1463
        %v1481 = vsel %vm442, %v1474, %v1475
        %v1482 = vsel %vm440, %v1481, %v1465
        %v1483 = vsel %vm440, %v1476, %v1467
        %v1484 = vsel %vm442, %v1476, %v1477
        %v1485 = vsel %vm440, %v1484, %v1469
        %v1486 = vsel %vm440, %v1478, %v1471
        %v1487 = vsel %vm442, %v1478, %v1479
        %v1488 = vsel %vm440, %v1487, %v1473
        %v1498 = vld [vmem:[#allocation2] sm:$0xff]
        %v1499 = vsel %vm464, %v1480, %v1498
        %1500 = vst [vmem:[#allocation2] sm:$0xff] %v1499
        %v1501 = vld [vmem:[#allocation2 + $0x8] sm:$0xff]
        %v1502 = vsel %vm469, %v1482, %v1501
        %1503 = vst [vmem:[#allocation2 + $0x8] sm:$0xff] %v1502
        %v1504 = vld [vmem:[#allocation2 + $0x10] sm:$0xf]
        %v1505 = vsel %vm351, %v1475, %v1504
        %1506 = vst [vmem:[#allocation2 + $0x10] sm:$0xf] %v1505
        %1507 = vst.msk [vmem:[#allocation2 + $0x14] sm:$0xff] %vm478, %v1483
        %1508 = vst [vmem:[#allocation2 + $0x1c] sm:$0xff] %v1485
        %1509 = vst.msk [vmem:[#allocation2 + $0x24] sm:$0xf] %vm355, %v1477
        %v1510 = vld [vmem:[#allocation2 + $0x28] sm:$0x11]
        %v1511 = vsel %vm484, %v1486, %v1510
        %1512 = vst [vmem:[#allocation2 + $0x28] sm:$0x11] %v1511
        %v1513 = vld [vmem:[#allocation2 + $0x30] sm:$0x11]
        %v1514 = vsel %vm323, %v1488, %v1513
        %1515 = vst [vmem:[#allocation2 + $0x30] sm:$0x11] %v1514
        %v1516 = vld [vmem:[#allocation2 + $0x38] sm:$0x1]
        %v1517 = vsel %vm358, %v1479, %v1516
        %1518 = vst [vmem:[#allocation2 + $0x38] sm:$0x1] %v1517
        %v1519 = vld [vmem:[%s2] sm:$0xf]
        %v1520 = vld [vmem:[%s2 + $0x4] sm:$0xf]
        %v1521 = vld [vmem:[%s2 + $0x8] sm:$0xf]
        %v1522 = vld [vmem:[%s2 + $0xc] sm:$0xf]
        %v1523 = vld [vmem:[%s2 + $0x10] sm:$0xf]
        %v1524 = vld [vmem:[%s2 + $0x14] sm:$0xf]
        %v1525 = vld [vmem:[%s2 + $0x18] sm:$0xf]
        %v1526 = vld [vmem:[%s2 + $0x1c] sm:$0xf]
        %v1527 = vld [vmem:[%s2 + $0x20] sm:$0xf]
        %v1528 = vld [vmem:[%s2 + $0x24] sm:$0xf]
        %v1529 = vld [vmem:[%s2 + $0x28] sm:$0xf]
        %v1530 = vld [vmem:[%s2 + $0x2c] sm:$0xf]
        %v1531 = vld [vmem:[%s2 + $0x30] sm:$0xf]
        %v1532 = vld [vmem:[%s2 + $0x34] sm:$0xf]
        %v1533 = vld [vmem:[%s2 + $0x38] sm:$0xf]
        %v1534 = vld [vmem:[%s2 + $0x3c] sm:$0xf]
        %v1535 = vld [vmem:[%s2 + $0x40] sm:$0xf]
        %v1536 = vld [vmem:[%s2 + $0x44] sm:$0xf]
        %v1537 = vld [vmem:[%s2 + $0x48] sm:$0xf]
        %v1538 = vld [vmem:[%s2 + $0x4c] sm:$0xf]
        %v1539 = vld [vmem:[%s2 + $0x50] sm:$0xf]
        %v1540 = vld [vmem:[%s2 + $0x54] sm:$0xf]
        %v1541 = vld [vmem:[%s2 + $0x58] sm:$0xf]
        %v1542 = vld [vmem:[%s2 + $0x5c] sm:$0xf]
        %v1543 = vld [vmem:[#allocation2] sm:$0xff]
        %v1544 = vld [vmem:[#allocation2 + $0x14] sm:$0xff]
        %v1545 = vld [vmem:[#allocation2 + $0x4] sm:$0xff]
        %v1546 = vld [vmem:[#allocation2 + $0x18] sm:$0xff]
        %v1547 = vld [vmem:[#allocation2 + $0x8] sm:$0xff]
        %v1548 = vld [vmem:[#allocation2 + $0x1c] sm:$0xff]
        %v1549 = vld [vmem:[#allocation2 + $0xc] sm:$0xff]
        %v1550 = vld [vmem:[#allocation2 + $0x20] sm:$0xff]
        %s1551 = scalar_lea.vmem %s2, 96
        %v1552 = vld [vmem:[%s1551] sm:$0xf]
        %v1553 = vld [vmem:[%s1551 + $0x4] sm:$0xf]
        %v1554 = vld [vmem:[%s1551 + $0x8] sm:$0xf]
        %v1555 = vld [vmem:[%s1551 + $0xc] sm:$0xf]
        %v1556 = vld [vmem:[%s1551 + $0x10] sm:$0xf]
        %v1557 = vld [vmem:[%s1551 + $0x14] sm:$0xf]
        %v1558 = vld [vmem:[%s1551 + $0x18] sm:$0xf]
        %v1559 = vld [vmem:[%s1551 + $0x1c] sm:$0xf]
        %v1560 = vld [vmem:[%s1551 + $0x20] sm:$0xf]
        %v1561 = vld [vmem:[%s1551 + $0x24] sm:$0xf]
        %v1562 = vld [vmem:[%s1551 + $0x28] sm:$0xf]
        %v1563 = vld [vmem:[%s1551 + $0x2c] sm:$0xf]
        %v1564 = vld [vmem:[%s1551 + $0x30] sm:$0xf]
        %v1565 = vld [vmem:[%s1551 + $0x34] sm:$0xf]
        %v1566 = vld [vmem:[%s1551 + $0x38] sm:$0xf]
        %v1567 = vld [vmem:[%s1551 + $0x3c] sm:$0xf]
        %v1568 = vld [vmem:[%s1551 + $0x40] sm:$0xf]
        %v1569 = vld [vmem:[%s1551 + $0x44] sm:$0xf]
        %v1570 = vld [vmem:[%s1551 + $0x48] sm:$0xf]
        %v1571 = vld [vmem:[%s1551 + $0x4c] sm:$0xf]
        %v1572 = vld [vmem:[%s1551 + $0x50] sm:$0xf]
        %v1573 = vld [vmem:[%s1551 + $0x54] sm:$0xf]
        %v1574 = vld [vmem:[%s1551 + $0x58] sm:$0xf]
        %v1575 = vld [vmem:[%s1551 + $0x5c] sm:$0xf]
        %v1576 = vld [vmem:[#allocation2 + $0x28] sm:$0x11]
        %v1580 = vunpack.c.l.b16 %v1543
        %v1581 = vunpack.c.h.b16 %v1543
        %v1582 = vunpack.c.l.b16 %v1544
        %v1583 = vunpack.c.h.b16 %v1544
        %v1584 = vunpack.c.l.b16 %v1576
        %v1585 = vunpack.c.h.b16 %v1576
        %v1586 = vpack.c.b16 %v1582, %v1580
        %v1587 = vpack.c.b16 %v1583, %v1581
        %v1588 = vpack.c.b16 %v1584, %v1584
        %v1589 = vpack.c.b16 %v1585, %v1585
        %v1591 = vshrl.u32 %v1586, 16
        %v1593 = vshll.u32 %v1586, 16
        %v1595 = vrot.slane %v1593, 1
        %v1596 = vor.u32 %v1591, %v1595
        %v1598 = vshll.u32 %v1588, 16
        %v1600 = vrot.slane %v1598, 1
        %v1601 = vsel %vm565, %v1596, %v1600
        %v1603 = vshrl.u32 %v1587, 16
        %v1605 = vshll.u32 %v1587, 16
        %v1607 = vrot.slane %v1605, 1
        %v1608 = vor.u32 %v1603, %v1607
        %v1610 = vshll.u32 %v1589, 16
        %v1612 = vrot.slane %v1610, 1
        %v1613 = vsel %vm565, %v1608, %v1612
        %v1639 = vunpack.c.l.b16 %v1552
        %v1640 = vunpack.c.l.b16 %v1553
        %v1641 = vunpack.c.l.b16 %v1554
        %v1642 = vunpack.c.l.b16 %v1555
        %v1643 = vunpack.c.l.b16 %v1556
        %v1644 = vunpack.c.l.b16 %v1557
        %v1645 = vunpack.c.l.b16 %v1558
        %v1646 = vunpack.c.l.b16 %v1559
        %v1647 = vunpack.c.l.b16 %v1560
        %v1648 = vunpack.c.l.b16 %v1561
        %v1649 = vunpack.c.l.b16 %v1562
        %v1650 = vunpack.c.l.b16 %v1563
        %v1651 = vunpack.c.l.b16 %v1564
        %v1652 = vunpack.c.l.b16 %v1565
        %v1653 = vunpack.c.l.b16 %v1566
        %v1654 = vunpack.c.l.b16 %v1567
        %v1655 = vunpack.c.l.b16 %v1568
        %v1656 = vunpack.c.l.b16 %v1569
        %v1657 = vunpack.c.l.b16 %v1570
        %v1658 = vunpack.c.l.b16 %v1571
        %v1659 = vunpack.c.l.b16 %v1572
        %v1660 = vunpack.c.l.b16 %v1573
        %v1661 = vunpack.c.l.b16 %v1574
        %v1662 = vunpack.c.l.b16 %v1575
        %v1663 = vpack.c.b16 %v1640, %v1639
        %v1664 = vpack.c.b16 %v1642, %v1641
        %v1665 = vpack.c.b16 %v1644, %v1643
        %v1666 = vpack.c.b16 %v1646, %v1645
        %v1667 = vpack.c.b16 %v1648, %v1647
        %v1668 = vpack.c.b16 %v1650, %v1649
        %v1669 = vpack.c.b16 %v1652, %v1651
        %v1670 = vpack.c.b16 %v1654, %v1653
        %v1671 = vpack.c.b16 %v1656, %v1655
        %v1672 = vpack.c.b16 %v1658, %v1657
        %v1673 = vpack.c.b16 %v1660, %v1659
        %v1674 = vpack.c.b16 %v1662, %v1661
        %v1688 = vsel %vm663, %v1613, 0
        %1690 = vmatpush.bf16.msra.mxu0 %v1670
        %1691 = vmatpush.bf16.msra.mxu0 %v1669
        %1692 = vmatpush.bf16.msra.mxu0 %v1668
        %1693 = vmatpush.bf16.msra.mxu0 %v1667
        %1694 = vmatpush.bf16.msra.mxu0 %v1666
        %1695 = vmatpush.bf16.msra.mxu0 %v1665
        %1696 = vmatpush.bf16.msra.mxu0 %v1664
        %1697 = vmatpush.bf16.msra.mxu0 %v1663
        %1698 = vmatmul.bf16.gmra.mxu0 %v1601
        %v1699 = vpop.f32.mrf.mxu0
        %v1700 = vadd.f32 0.0, %v1699
        %v1701 = vpop.f32.mrf.mxu0
        %v1702 = vadd.f32 0.0, %v1701
        %1703 = vdwg.mxu0
        %1704 = vmatpush.bf16.msra.mxu0 0
        %1705 = vmatpush.bf16.msra.mxu0 0
        %1706 = vmatpush.bf16.msra.mxu0 0
        %1707 = vmatpush.bf16.msra.mxu0 0
        %1708 = vmatpush.bf16.msra.mxu0 %v1674
        %1709 = vmatpush.bf16.msra.mxu0 %v1673
        %1710 = vmatpush.bf16.msra.mxu0 %v1672
        %1711 = vmatpush.bf16.msra.mxu0 %v1671
        %1712 = vmatmul.bf16.gmra.mxu0 %v1688
        %v1713 = vpop.f32.mrf.mxu0
        %v1714 = vadd.f32 %v1700, %v1713
        %v1715 = vpop.f32.mrf.mxu0
        %v1716 = vadd.f32 %v1702, %v1715
        %1717 = vdwg.mxu0
        %v1743 = vunpack.c.l.b16 %v1519
        %v1744 = vunpack.c.l.b16 %v1520
        %v1745 = vunpack.c.l.b16 %v1521
        %v1746 = vunpack.c.l.b16 %v1522
        %v1747 = vunpack.c.l.b16 %v1523
        %v1748 = vunpack.c.l.b16 %v1524
        %v1749 = vunpack.c.l.b16 %v1525
        %v1750 = vunpack.c.l.b16 %v1526
        %v1751 = vunpack.c.l.b16 %v1527
        %v1752 = vunpack.c.l.b16 %v1528
        %v1753 = vunpack.c.l.b16 %v1529
        %v1754 = vunpack.c.l.b16 %v1530
        %v1755 = vunpack.c.l.b16 %v1531
        %v1756 = vunpack.c.l.b16 %v1532
        %v1757 = vunpack.c.l.b16 %v1533
        %v1758 = vunpack.c.l.b16 %v1534
        %v1759 = vunpack.c.l.b16 %v1535
        %v1760 = vunpack.c.l.b16 %v1536
        %v1761 = vunpack.c.l.b16 %v1537
        %v1762 = vunpack.c.l.b16 %v1538
        %v1763 = vunpack.c.l.b16 %v1539
        %v1764 = vunpack.c.l.b16 %v1540
        %v1765 = vunpack.c.l.b16 %v1541
        %v1766 = vunpack.c.l.b16 %v1542
        %v1767 = vpack.c.b16 %v1744, %v1743
        %v1768 = vpack.c.b16 %v1746, %v1745
        %v1769 = vpack.c.b16 %v1748, %v1747
        %v1770 = vpack.c.b16 %v1750, %v1749
        %v1771 = vpack.c.b16 %v1752, %v1751
        %v1772 = vpack.c.b16 %v1754, %v1753
        %v1773 = vpack.c.b16 %v1756, %v1755
        %v1774 = vpack.c.b16 %v1758, %v1757
        %v1775 = vpack.c.b16 %v1760, %v1759
        %v1776 = vpack.c.b16 %v1762, %v1761
        %v1777 = vpack.c.b16 %v1764, %v1763
        %v1778 = vpack.c.b16 %v1766, %v1765
        %v1791 = vsel %vm663, %v1587, 0
        %1793 = vmatpush.bf16.msra.mxu0 %v1774
        %1794 = vmatpush.bf16.msra.mxu0 %v1773
        %1795 = vmatpush.bf16.msra.mxu0 %v1772
        %1796 = vmatpush.bf16.msra.mxu0 %v1771
        %1797 = vmatpush.bf16.msra.mxu0 %v1770
        %1798 = vmatpush.bf16.msra.mxu0 %v1769
        %1799 = vmatpush.bf16.msra.mxu0 %v1768
        %1800 = vmatpush.bf16.msra.mxu0 %v1767
        %1801 = vmatmul.bf16.gmra.mxu0 %v1586
        %v1802 = vpop.f32.mrf.mxu0
        %v1803 = vadd.f32 %v1714, %v1802
        %v1804 = vpop.f32.mrf.mxu0
        %v1805 = vadd.f32 %v1716, %v1804
        %1806 = vdwg.mxu0
        %1807 = vmatpush.bf16.msra.mxu0 0
        %1808 = vmatpush.bf16.msra.mxu0 0
        %1809 = vmatpush.bf16.msra.mxu0 0
        %1810 = vmatpush.bf16.msra.mxu0 0
        %1811 = vmatpush.bf16.msra.mxu0 %v1778
        %1812 = vmatpush.bf16.msra.mxu0 %v1777
        %1813 = vmatpush.bf16.msra.mxu0 %v1776
        %1814 = vmatpush.bf16.msra.mxu0 %v1775
        %1815 = vmatmul.bf16.gmra.mxu0 %v1791
        %v1816 = vpop.f32.mrf.mxu0
        %v1817 = vadd.f32 %v1803, %v1816
        %v1818 = vpop.f32.mrf.mxu0
        %v1819 = vadd.f32 %v1805, %v1818
        %1820 = vdwg.mxu0
        %v1821 = vld [vmem:[#allocation2 + $0x4] sm:$0xff]
        %v1822 = vld [vmem:[#allocation2 + $0x18] sm:$0xff]
        %v1823 = vld [vmem:[#allocation2 + $0x2c] sm:$0x11]
        %v1827 = vunpack.c.l.b16 %v1821
        %v1828 = vunpack.c.h.b16 %v1821
        %v1829 = vunpack.c.l.b16 %v1822
        %v1830 = vunpack.c.h.b16 %v1822
        %v1831 = vunpack.c.l.b16 %v1823
        %v1832 = vunpack.c.h.b16 %v1823
        %v1833 = vpack.c.b16 %v1829, %v1827
        %v1834 = vpack.c.b16 %v1830, %v1828
        %v1835 = vpack.c.b16 %v1831, %v1831
        %v1836 = vpack.c.b16 %v1832, %v1832
        %v1838 = vshrl.u32 %v1833, 16
        %v1840 = vshll.u32 %v1833, 16
        %v1842 = vrot.slane %v1840, 1
        %v1843 = vor.u32 %v1838, %v1842
        %v1845 = vshll.u32 %v1835, 16
        %v1847 = vrot.slane %v1845, 1
        %v1848 = vsel %vm565, %v1843, %v1847
        %v1850 = vshrl.u32 %v1834, 16
        %v1852 = vshll.u32 %v1834, 16
        %v1854 = vrot.slane %v1852, 1
        %v1855 = vor.u32 %v1850, %v1854
        %v1857 = vshll.u32 %v1836, 16
        %v1859 = vrot.slane %v1857, 1
        %v1860 = vsel %vm565, %v1855, %v1859
        %v1863 = vsel %vm663, %v1860, 0
        %1865 = vmatpush.bf16.msra.mxu0 %v1670
        %1866 = vmatpush.bf16.msra.mxu0 %v1669
        %1867 = vmatpush.bf16.msra.mxu0 %v1668
        %1868 = vmatpush.bf16.msra.mxu0 %v1667
        %1869 = vmatpush.bf16.msra.mxu0 %v1666
        %1870 = vmatpush.bf16.msra.mxu0 %v1665
        %1871 = vmatpush.bf16.msra.mxu0 %v1664
        %1872 = vmatpush.bf16.msra.mxu0 %v1663
        %1873 = vmatmul.bf16.gmra.mxu0 %v1848
        %v1874 = vpop.f32.mrf.mxu0
        %v1875 = vadd.f32 0.0, %v1874
        %v1876 = vpop.f32.mrf.mxu0
        %v1877 = vadd.f32 0.0, %v1876
        %1878 = vdwg.mxu0
        %1879 = vmatpush.bf16.msra.mxu0 0
        %1880 = vmatpush.bf16.msra.mxu0 0
        %1881 = vmatpush.bf16.msra.mxu0 0
        %1882 = vmatpush.bf16.msra.mxu0 0
        %1883 = vmatpush.bf16.msra.mxu0 %v1674
        %1884 = vmatpush.bf16.msra.mxu0 %v1673
        %1885 = vmatpush.bf16.msra.mxu0 %v1672
        %1886 = vmatpush.bf16.msra.mxu0 %v1671
        %1887 = vmatmul.bf16.gmra.mxu0 %v1863
        %v1888 = vpop.f32.mrf.mxu0
        %v1889 = vadd.f32 %v1875, %v1888
        %v1890 = vpop.f32.mrf.mxu0
        %v1891 = vadd.f32 %v1877, %v1890
        %1892 = vdwg.mxu0
        %v1895 = vunpack.c.l.b16 %v1545
        %v1896 = vunpack.c.h.b16 %v1545
        %v1897 = vunpack.c.l.b16 %v1546
        %v1898 = vunpack.c.h.b16 %v1546
        %v1899 = vpack.c.b16 %v1897, %v1895
        %v1900 = vpack.c.b16 %v1898, %v1896
        %v1903 = vsel %vm663, %v1900, 0
        %1905 = vmatpush.bf16.msra.mxu0 %v1774
        %1906 = vmatpush.bf16.msra.mxu0 %v1773
        %1907 = vmatpush.bf16.msra.mxu0 %v1772
        %1908 = vmatpush.bf16.msra.mxu0 %v1771
        %1909 = vmatpush.bf16.msra.mxu0 %v1770
        %1910 = vmatpush.bf16.msra.mxu0 %v1769
        %1911 = vmatpush.bf16.msra.mxu0 %v1768
        %1912 = vmatpush.bf16.msra.mxu0 %v1767
        %1913 = vmatmul.bf16.gmra.mxu0 %v1899
        %v1914 = vpop.f32.mrf.mxu0
        %v1915 = vadd.f32 %v1889, %v1914
        %v1916 = vpop.f32.mrf.mxu0
        %v1917 = vadd.f32 %v1891, %v1916
        %1918 = vdwg.mxu0
        %1919 = vmatpush.bf16.msra.mxu0 0
        %1920 = vmatpush.bf16.msra.mxu0 0
        %1921 = vmatpush.bf16.msra.mxu0 0
        %1922 = vmatpush.bf16.msra.mxu0 0
        %1923 = vmatpush.bf16.msra.mxu0 %v1778
        %1924 = vmatpush.bf16.msra.mxu0 %v1777
        %1925 = vmatpush.bf16.msra.mxu0 %v1776
        %1926 = vmatpush.bf16.msra.mxu0 %v1775
        %1927 = vmatmul.bf16.gmra.mxu0 %v1903
        %v1928 = vpop.f32.mrf.mxu0
        %v1929 = vadd.f32 %v1915, %v1928
        %v1930 = vpop.f32.mrf.mxu0
        %v1931 = vadd.f32 %v1917, %v1930
        %1932 = vdwg.mxu0
        %v1933 = vld [vmem:[#allocation2 + $0x8] sm:$0xff]
        %v1934 = vld [vmem:[#allocation2 + $0x1c] sm:$0xff]
        %v1935 = vld [vmem:[#allocation2 + $0x30] sm:$0x11]
        %v1939 = vunpack.c.l.b16 %v1933
        %v1940 = vunpack.c.h.b16 %v1933
        %v1941 = vunpack.c.l.b16 %v1934
        %v1942 = vunpack.c.h.b16 %v1934
        %v1943 = vunpack.c.l.b16 %v1935
        %v1944 = vunpack.c.h.b16 %v1935
        %v1945 = vpack.c.b16 %v1941, %v1939
        %v1946 = vpack.c.b16 %v1942, %v1940
        %v1947 = vpack.c.b16 %v1943, %v1943
        %v1948 = vpack.c.b16 %v1944, %v1944
        %v1950 = vshrl.u32 %v1945, 16
        %v1952 = vshll.u32 %v1945, 16
        %v1954 = vrot.slane %v1952, 1
        %v1955 = vor.u32 %v1950, %v1954
        %v1957 = vshll.u32 %v1947, 16
        %v1959 = vrot.slane %v1957, 1
        %v1960 = vsel %vm565, %v1955, %v1959
        %v1962 = vshrl.u32 %v1946, 16
        %v1964 = vshll.u32 %v1946, 16
        %v1966 = vrot.slane %v1964, 1
        %v1967 = vor.u32 %v1962, %v1966
        %v1969 = vshll.u32 %v1948, 16
        %v1971 = vrot.slane %v1969, 1
        %v1972 = vsel %vm565, %v1967, %v1971
        %v1975 = vsel %vm663, %v1972, 0
        %1977 = vmatpush.bf16.msra.mxu0 %v1670
        %1978 = vmatpush.bf16.msra.mxu0 %v1669
        %1979 = vmatpush.bf16.msra.mxu0 %v1668
        %1980 = vmatpush.bf16.msra.mxu0 %v1667
        %1981 = vmatpush.bf16.msra.mxu0 %v1666
        %1982 = vmatpush.bf16.msra.mxu0 %v1665
        %1983 = vmatpush.bf16.msra.mxu0 %v1664
        %1984 = vmatpush.bf16.msra.mxu0 %v1663
        %1985 = vmatmul.bf16.gmra.mxu0 %v1960
        %v1986 = vpop.f32.mrf.mxu0
        %v1987 = vadd.f32 0.0, %v1986
        %v1988 = vpop.f32.mrf.mxu0
        %v1989 = vadd.f32 0.0, %v1988
        %1990 = vdwg.mxu0
        %1991 = vmatpush.bf16.msra.mxu0 0
        %1992 = vmatpush.bf16.msra.mxu0 0
        %1993 = vmatpush.bf16.msra.mxu0 0
        %1994 = vmatpush.bf16.msra.mxu0 0
        %1995 = vmatpush.bf16.msra.mxu0 %v1674
        %1996 = vmatpush.bf16.msra.mxu0 %v1673
        %1997 = vmatpush.bf16.msra.mxu0 %v1672
        %1998 = vmatpush.bf16.msra.mxu0 %v1671
        %1999 = vmatmul.bf16.gmra.mxu0 %v1975
        %v2000 = vpop.f32.mrf.mxu0
        %v2001 = vadd.f32 %v1987, %v2000
        %v2002 = vpop.f32.mrf.mxu0
        %v2003 = vadd.f32 %v1989, %v2002
        %2004 = vdwg.mxu0
        %v2007 = vunpack.c.l.b16 %v1547
        %v2008 = vunpack.c.h.b16 %v1547
        %v2009 = vunpack.c.l.b16 %v1548
        %v2010 = vunpack.c.h.b16 %v1548
        %v2011 = vpack.c.b16 %v2009, %v2007
        %v2012 = vpack.c.b16 %v2010, %v2008
        %v2015 = vsel %vm663, %v2012, 0
        %2017 = vmatpush.bf16.msra.mxu0 %v1774
        %2018 = vmatpush.bf16.msra.mxu0 %v1773
        %2019 = vmatpush.bf16.msra.mxu0 %v1772
        %2020 = vmatpush.bf16.msra.mxu0 %v1771
        %2021 = vmatpush.bf16.msra.mxu0 %v1770
        %2022 = vmatpush.bf16.msra.mxu0 %v1769
        %2023 = vmatpush.bf16.msra.mxu0 %v1768
        %2024 = vmatpush.bf16.msra.mxu0 %v1767
        %2025 = vmatmul.bf16.gmra.mxu0 %v2011
        %v2026 = vpop.f32.mrf.mxu0
        %v2027 = vadd.f32 %v2001, %v2026
        %v2028 = vpop.f32.mrf.mxu0
        %v2029 = vadd.f32 %v2003, %v2028
        %2030 = vdwg.mxu0
        %2031 = vmatpush.bf16.msra.mxu0 0
        %2032 = vmatpush.bf16.msra.mxu0 0
        %2033 = vmatpush.bf16.msra.mxu0 0
        %2034 = vmatpush.bf16.msra.mxu0 0
        %2035 = vmatpush.bf16.msra.mxu0 %v1778
        %2036 = vmatpush.bf16.msra.mxu0 %v1777
        %2037 = vmatpush.bf16.msra.mxu0 %v1776
        %2038 = vmatpush.bf16.msra.mxu0 %v1775
        %2039 = vmatmul.bf16.gmra.mxu0 %v2015
        %v2040 = vpop.f32.mrf.mxu0
        %v2041 = vadd.f32 %v2027, %v2040
        %v2042 = vpop.f32.mrf.mxu0
        %v2043 = vadd.f32 %v2029, %v2042
        %2044 = vdwg.mxu0
        %v2045 = vld [vmem:[#allocation2 + $0xc] sm:$0xff]
        %v2046 = vld [vmem:[#allocation2 + $0x20] sm:$0xff]
        %v2047 = vld [vmem:[#allocation2 + $0x34] sm:$0x11]
        %v2051 = vunpack.c.l.b16 %v2045
        %v2052 = vunpack.c.h.b16 %v2045
        %v2053 = vunpack.c.l.b16 %v2046
        %v2054 = vunpack.c.h.b16 %v2046
        %v2055 = vunpack.c.l.b16 %v2047
        %v2056 = vunpack.c.h.b16 %v2047
        %v2057 = vpack.c.b16 %v2053, %v2051
        %v2058 = vpack.c.b16 %v2054, %v2052
        %v2059 = vpack.c.b16 %v2055, %v2055
        %v2060 = vpack.c.b16 %v2056, %v2056
        %v2062 = vshrl.u32 %v2057, 16
        %v2064 = vshll.u32 %v2057, 16
        %v2066 = vrot.slane %v2064, 1
        %v2067 = vor.u32 %v2062, %v2066
        %v2069 = vshll.u32 %v2059, 16
        %v2071 = vrot.slane %v2069, 1
        %v2072 = vsel %vm565, %v2067, %v2071
        %v2074 = vshrl.u32 %v2058, 16
        %v2076 = vshll.u32 %v2058, 16
        %v2078 = vrot.slane %v2076, 1
        %v2079 = vor.u32 %v2074, %v2078
        %v2081 = vshll.u32 %v2060, 16
        %v2083 = vrot.slane %v2081, 1
        %v2084 = vsel %vm565, %v2079, %v2083
        %v2087 = vsel %vm663, %v2084, 0
        %2089 = vmatpush.bf16.msra.mxu0 %v1670
        %2090 = vmatpush.bf16.msra.mxu0 %v1669
        %2091 = vmatpush.bf16.msra.mxu0 %v1668
        %2092 = vmatpush.bf16.msra.mxu0 %v1667
        %2093 = vmatpush.bf16.msra.mxu0 %v1666
        %2094 = vmatpush.bf16.msra.mxu0 %v1665
        %2095 = vmatpush.bf16.msra.mxu0 %v1664
        %2096 = vmatpush.bf16.msra.mxu0 %v1663
        %2097 = vmatmul.bf16.gmra.mxu0 %v2072
        %v2098 = vpop.f32.mrf.mxu0
        %v2099 = vadd.f32 0.0, %v2098
        %v2100 = vpop.f32.mrf.mxu0
        %v2101 = vadd.f32 0.0, %v2100
        %2102 = vdwg.mxu0
        %2103 = vmatpush.bf16.msra.mxu0 0
        %2104 = vmatpush.bf16.msra.mxu0 0
        %2105 = vmatpush.bf16.msra.mxu0 0
        %2106 = vmatpush.bf16.msra.mxu0 0
        %2107 = vmatpush.bf16.msra.mxu0 %v1674
        %2108 = vmatpush.bf16.msra.mxu0 %v1673
        %2109 = vmatpush.bf16.msra.mxu0 %v1672
        %2110 = vmatpush.bf16.msra.mxu0 %v1671
        %2111 = vmatmul.bf16.gmra.mxu0 %v2087
        %v2112 = vpop.f32.mrf.mxu0
        %v2113 = vadd.f32 %v2099, %v2112
        %v2114 = vpop.f32.mrf.mxu0
        %v2115 = vadd.f32 %v2101, %v2114
        %2116 = vdwg.mxu0
        %v2119 = vunpack.c.l.b16 %v1549
        %v2120 = vunpack.c.h.b16 %v1549
        %v2121 = vunpack.c.l.b16 %v1550
        %v2122 = vunpack.c.h.b16 %v1550
        %v2123 = vpack.c.b16 %v2121, %v2119
        %v2124 = vpack.c.b16 %v2122, %v2120
        %v2127 = vsel %vm663, %v2124, 0
        %2129 = vmatpush.bf16.msra.mxu0 %v1774
        %2130 = vmatpush.bf16.msra.mxu0 %v1773
        %2131 = vmatpush.bf16.msra.mxu0 %v1772
        %2132 = vmatpush.bf16.msra.mxu0 %v1771
        %2133 = vmatpush.bf16.msra.mxu0 %v1770
        %2134 = vmatpush.bf16.msra.mxu0 %v1769
        %2135 = vmatpush.bf16.msra.mxu0 %v1768
        %2136 = vmatpush.bf16.msra.mxu0 %v1767
        %2137 = vmatmul.bf16.gmra.mxu0 %v2123
        %v2138 = vpop.f32.mrf.mxu0
        %v2139 = vadd.f32 %v2113, %v2138
        %v2140 = vpop.f32.mrf.mxu0
        %v2141 = vadd.f32 %v2115, %v2140
        %2142 = vdwg.mxu0
        %2143 = vmatpush.bf16.msra.mxu0 0
        %2144 = vmatpush.bf16.msra.mxu0 0
        %2145 = vmatpush.bf16.msra.mxu0 0
        %2146 = vmatpush.bf16.msra.mxu0 0
        %2147 = vmatpush.bf16.msra.mxu0 %v1778
        %2148 = vmatpush.bf16.msra.mxu0 %v1777
        %2149 = vmatpush.bf16.msra.mxu0 %v1776
        %2150 = vmatpush.bf16.msra.mxu0 %v1775
        %2151 = vmatmul.bf16.gmra.mxu0 %v2127
        %v2152 = vpop.f32.mrf.mxu0
        %v2153 = vadd.f32 %v2139, %v2152
        %v2154 = vpop.f32.mrf.mxu0
        %v2155 = vadd.f32 %v2141, %v2154
        %2156 = vdwg.mxu0
        %s2157 = scalar_lea.vmem %s2, 192
        %v2158 = vld [vmem:[%s2157] sm:$0xf]
        %v2159 = vld [vmem:[%s2157 + $0x4] sm:$0xf]
        %v2160 = vld [vmem:[%s2157 + $0x8] sm:$0xf]
        %v2161 = vld [vmem:[%s2157 + $0xc] sm:$0xf]
        %v2162 = vld [vmem:[%s2157 + $0x10] sm:$0xf]
        %v2163 = vld [vmem:[%s2157 + $0x14] sm:$0xf]
        %v2164 = vld [vmem:[%s2157 + $0x18] sm:$0xf]
        %v2165 = vld [vmem:[%s2157 + $0x1c] sm:$0xf]
        %v2166 = vld [vmem:[%s2157 + $0x20] sm:$0xf]
        %v2167 = vld [vmem:[%s2157 + $0x24] sm:$0xf]
        %v2168 = vld [vmem:[%s2157 + $0x28] sm:$0xf]
        %v2169 = vld [vmem:[%s2157 + $0x2c] sm:$0xf]
        %v2170 = vld [vmem:[%s2157 + $0x30] sm:$0xf]
        %v2171 = vld [vmem:[%s2157 + $0x34] sm:$0xf]
        %v2172 = vld [vmem:[%s2157 + $0x38] sm:$0xf]
        %v2173 = vld [vmem:[%s2157 + $0x3c] sm:$0xf]
        %v2174 = vld [vmem:[%s2157 + $0x40] sm:$0xf]
        %v2175 = vld [vmem:[%s2157 + $0x44] sm:$0xf]
        %v2176 = vld [vmem:[%s2157 + $0x48] sm:$0xf]
        %v2177 = vld [vmem:[%s2157 + $0x4c] sm:$0xf]
        %v2178 = vld [vmem:[%s2157 + $0x50] sm:$0xf]
        %v2179 = vld [vmem:[%s2157 + $0x54] sm:$0xf]
        %v2180 = vld [vmem:[%s2157 + $0x58] sm:$0xf]
        %v2181 = vld [vmem:[%s2157 + $0x5c] sm:$0xf]
        %v2182 = vld [vmem:[#allocation2] sm:$0xee]
        %v2184 = vunpack.c.l.b16 %v2182
        %v2185 = vunpack.c.h.b16 %v2182
        %v2186 = vpack.c.b16 %v1582, %v2184
        %v2187 = vpack.c.b16 %v1583, %v2185
        %v2188 = vrot.slane %v2186, 1
        %v2189 = vrot.slane %v1588, 1
        %v2190 = vsel %vm1165, %v2188, %v2189
        %v2191 = vrot.slane %v2187, 1
        %v2192 = vrot.slane %v1589, 1
        %v2193 = vsel %vm1165, %v2191, %v2192
        %v2219 = vunpack.c.l.b16 %v2158
        %v2220 = vunpack.c.l.b16 %v2159
        %v2221 = vunpack.c.l.b16 %v2160
        %v2222 = vunpack.c.l.b16 %v2161
        %v2223 = vunpack.c.l.b16 %v2162
        %v2224 = vunpack.c.l.b16 %v2163
        %v2225 = vunpack.c.l.b16 %v2164
        %v2226 = vunpack.c.l.b16 %v2165
        %v2227 = vunpack.c.l.b16 %v2166
        %v2228 = vunpack.c.l.b16 %v2167
        %v2229 = vunpack.c.l.b16 %v2168
        %v2230 = vunpack.c.l.b16 %v2169
        %v2231 = vunpack.c.l.b16 %v2170
        %v2232 = vunpack.c.l.b16 %v2171
        %v2233 = vunpack.c.l.b16 %v2172
        %v2234 = vunpack.c.l.b16 %v2173
        %v2235 = vunpack.c.l.b16 %v2174
        %v2236 = vunpack.c.l.b16 %v2175
        %v2237 = vunpack.c.l.b16 %v2176
        %v2238 = vunpack.c.l.b16 %v2177
        %v2239 = vunpack.c.l.b16 %v2178
        %v2240 = vunpack.c.l.b16 %v2179
        %v2241 = vunpack.c.l.b16 %v2180
        %v2242 = vunpack.c.l.b16 %v2181
        %v2243 = vpack.c.b16 %v2220, %v2219
        %v2244 = vpack.c.b16 %v2222, %v2221
        %v2245 = vpack.c.b16 %v2224, %v2223
        %v2246 = vpack.c.b16 %v2226, %v2225
        %v2247 = vpack.c.b16 %v2228, %v2227
        %v2248 = vpack.c.b16 %v2230, %v2229
        %v2249 = vpack.c.b16 %v2232, %v2231
        %v2250 = vpack.c.b16 %v2234, %v2233
        %v2251 = vpack.c.b16 %v2236, %v2235
        %v2252 = vpack.c.b16 %v2238, %v2237
        %v2253 = vpack.c.b16 %v2240, %v2239
        %v2254 = vpack.c.b16 %v2242, %v2241
        %v2268 = vsel %vm663, %v2193, 0
        %2270 = vmatpush.bf16.msra.mxu0 %v2250
        %2271 = vmatpush.bf16.msra.mxu0 %v2249
        %2272 = vmatpush.bf16.msra.mxu0 %v2248
        %2273 = vmatpush.bf16.msra.mxu0 %v2247
        %2274 = vmatpush.bf16.msra.mxu0 %v2246
        %2275 = vmatpush.bf16.msra.mxu0 %v2245
        %2276 = vmatpush.bf16.msra.mxu0 %v2244
        %2277 = vmatpush.bf16.msra.mxu0 %v2243
        %2278 = vmatmul.bf16.gmra.mxu0 %v2190
        %v2279 = vpop.f32.mrf.mxu0
        %v2280 = vadd.f32 0.0, %v2279
        %v2281 = vpop.f32.mrf.mxu0
        %v2282 = vadd.f32 0.0, %v2281
        %2283 = vdwg.mxu0
        %2284 = vmatpush.bf16.msra.mxu0 0
        %2285 = vmatpush.bf16.msra.mxu0 0
        %2286 = vmatpush.bf16.msra.mxu0 0
        %2287 = vmatpush.bf16.msra.mxu0 0
        %2288 = vmatpush.bf16.msra.mxu0 %v2254
        %2289 = vmatpush.bf16.msra.mxu0 %v2253
        %2290 = vmatpush.bf16.msra.mxu0 %v2252
        %2291 = vmatpush.bf16.msra.mxu0 %v2251
        %2292 = vmatmul.bf16.gmra.mxu0 %v2268
        %v2293 = vpop.f32.mrf.mxu0
        %v2294 = vadd.f32 %v2280, %v2293
        %v2295 = vpop.f32.mrf.mxu0
        %v2296 = vadd.f32 %v2282, %v2295
        %2297 = vdwg.mxu0
        %v2298 = vadd.f32 %v1817, %v2294
        %v2299 = vadd.f32 %v1819, %v2296
        %v2300 = vld [vmem:[#allocation2 + $0x4] sm:$0xee]
        %v2302 = vunpack.c.l.b16 %v2300
        %v2303 = vunpack.c.h.b16 %v2300
        %v2304 = vpack.c.b16 %v1829, %v2302
        %v2305 = vpack.c.b16 %v1830, %v2303
        %v2306 = vrot.slane %v2304, 1
        %v2307 = vrot.slane %v1835, 1
        %v2308 = vsel %vm1165, %v2306, %v2307
        %v2309 = vrot.slane %v2305, 1
        %v2310 = vrot.slane %v1836, 1
        %v2311 = vsel %vm1165, %v2309, %v2310
        %v2314 = vsel %vm663, %v2311, 0
        %2316 = vmatpush.bf16.msra.mxu0 %v2250
        %2317 = vmatpush.bf16.msra.mxu0 %v2249
        %2318 = vmatpush.bf16.msra.mxu0 %v2248
        %2319 = vmatpush.bf16.msra.mxu0 %v2247
        %2320 = vmatpush.bf16.msra.mxu0 %v2246
        %2321 = vmatpush.bf16.msra.mxu0 %v2245
        %2322 = vmatpush.bf16.msra.mxu0 %v2244
        %2323 = vmatpush.bf16.msra.mxu0 %v2243
        %2324 = vmatmul.bf16.gmra.mxu0 %v2308
        %v2325 = vpop.f32.mrf.mxu0
        %v2326 = vadd.f32 0.0, %v2325
        %v2327 = vpop.f32.mrf.mxu0
        %v2328 = vadd.f32 0.0, %v2327
        %2329 = vdwg.mxu0
        %2330 = vmatpush.bf16.msra.mxu0 0
        %2331 = vmatpush.bf16.msra.mxu0 0
        %2332 = vmatpush.bf16.msra.mxu0 0
        %2333 = vmatpush.bf16.msra.mxu0 0
        %2334 = vmatpush.bf16.msra.mxu0 %v2254
        %2335 = vmatpush.bf16.msra.mxu0 %v2253
        %2336 = vmatpush.bf16.msra.mxu0 %v2252
        %2337 = vmatpush.bf16.msra.mxu0 %v2251
        %2338 = vmatmul.bf16.gmra.mxu0 %v2314
        %v2339 = vpop.f32.mrf.mxu0
        %v2340 = vadd.f32 %v2326, %v2339
        %v2341 = vpop.f32.mrf.mxu0
        %v2342 = vadd.f32 %v2328, %v2341
        %2343 = vdwg.mxu0
        %v2344 = vadd.f32 %v1929, %v2340
        %v2345 = vadd.f32 %v1931, %v2342
        %v2346 = vld [vmem:[#allocation2 + $0x8] sm:$0xee]
        %v2348 = vunpack.c.l.b16 %v2346
        %v2349 = vunpack.c.h.b16 %v2346
        %v2350 = vpack.c.b16 %v1941, %v2348
        %v2351 = vpack.c.b16 %v1942, %v2349
        %v2352 = vrot.slane %v2350, 1
        %v2353 = vrot.slane %v1947, 1
        %v2354 = vsel %vm1165, %v2352, %v2353
        %v2355 = vrot.slane %v2351, 1
        %v2356 = vrot.slane %v1948, 1
        %v2357 = vsel %vm1165, %v2355, %v2356
        %v2360 = vsel %vm663, %v2357, 0
        %2362 = vmatpush.bf16.msra.mxu0 %v2250
        %2363 = vmatpush.bf16.msra.mxu0 %v2249
        %2364 = vmatpush.bf16.msra.mxu0 %v2248
        %2365 = vmatpush.bf16.msra.mxu0 %v2247
        %2366 = vmatpush.bf16.msra.mxu0 %v2246
        %2367 = vmatpush.bf16.msra.mxu0 %v2245
        %2368 = vmatpush.bf16.msra.mxu0 %v2244
        %2369 = vmatpush.bf16.msra.mxu0 %v2243
        %2370 = vmatmul.bf16.gmra.mxu0 %v2354
        %v2371 = vpop.f32.mrf.mxu0
        %v2372 = vadd.f32 0.0, %v2371
        %v2373 = vpop.f32.mrf.mxu0
        %v2374 = vadd.f32 0.0, %v2373
        %2375 = vdwg.mxu0
        %2376 = vmatpush.bf16.msra.mxu0 0
        %2377 = vmatpush.bf16.msra.mxu0 0
        %2378 = vmatpush.bf16.msra.mxu0 0
        %2379 = vmatpush.bf16.msra.mxu0 0
        %2380 = vmatpush.bf16.msra.mxu0 %v2254
        %2381 = vmatpush.bf16.msra.mxu0 %v2253
        %2382 = vmatpush.bf16.msra.mxu0 %v2252
        %2383 = vmatpush.bf16.msra.mxu0 %v2251
        %2384 = vmatmul.bf16.gmra.mxu0 %v2360
        %v2385 = vpop.f32.mrf.mxu0
        %v2386 = vadd.f32 %v2372, %v2385
        %v2387 = vpop.f32.mrf.mxu0
        %v2388 = vadd.f32 %v2374, %v2387
        %2389 = vdwg.mxu0
        %v2390 = vadd.f32 %v2041, %v2386
        %v2391 = vadd.f32 %v2043, %v2388
        %v2392 = vld [vmem:[#allocation2 + $0xc] sm:$0xee]
        %v2394 = vunpack.c.l.b16 %v2392
        %v2395 = vunpack.c.h.b16 %v2392
        %v2396 = vpack.c.b16 %v2053, %v2394
        %v2397 = vpack.c.b16 %v2054, %v2395
        %v2398 = vrot.slane %v2396, 1
        %v2399 = vrot.slane %v2059, 1
        %v2400 = vsel %vm1165, %v2398, %v2399
        %v2401 = vrot.slane %v2397, 1
        %v2402 = vrot.slane %v2060, 1
        %v2403 = vsel %vm1165, %v2401, %v2402
        %v2406 = vsel %vm663, %v2403, 0
        %2408 = vmatpush.bf16.msra.mxu0 %v2250
        %2409 = vmatpush.bf16.msra.mxu0 %v2249
        %2410 = vmatpush.bf16.msra.mxu0 %v2248
        %2411 = vmatpush.bf16.msra.mxu0 %v2247
        %2412 = vmatpush.bf16.msra.mxu0 %v2246
        %2413 = vmatpush.bf16.msra.mxu0 %v2245
        %2414 = vmatpush.bf16.msra.mxu0 %v2244
        %2415 = vmatpush.bf16.msra.mxu0 %v2243
        %2416 = vmatmul.bf16.gmra.mxu0 %v2400
        %v2417 = vpop.f32.mrf.mxu0
        %v2418 = vadd.f32 0.0, %v2417
        %v2419 = vpop.f32.mrf.mxu0
        %v2420 = vadd.f32 0.0, %v2419
        %2421 = vdwg.mxu0
        %2422 = vmatpush.bf16.msra.mxu0 0
        %2423 = vmatpush.bf16.msra.mxu0 0
        %2424 = vmatpush.bf16.msra.mxu0 0
        %2425 = vmatpush.bf16.msra.mxu0 0
        %2426 = vmatpush.bf16.msra.mxu0 %v2254
        %2427 = vmatpush.bf16.msra.mxu0 %v2253
        %2428 = vmatpush.bf16.msra.mxu0 %v2252
        %2429 = vmatpush.bf16.msra.mxu0 %v2251
        %2430 = vmatmul.bf16.gmra.mxu0 %v2406
        %v2431 = vpop.f32.mrf.mxu0
        %v2432 = vadd.f32 %v2418, %v2431
        %v2433 = vpop.f32.mrf.mxu0
        %v2434 = vadd.f32 %v2420, %v2433
        %2435 = vdwg.mxu0
        %v2436 = vadd.f32 %v2153, %v2432
        %v2437 = vadd.f32 %v2155, %v2434
        %v2438 = vadd.f32 %v2298, %v2299
        %v2439 = vrot.slane %v2438, 4
        %v2440 = vadd.f32 %v2438, %v2439
        %v2441 = vrot.slane %v2440, 2
        %v2442 = vadd.f32 %v2440, %v2441
        %v2443 = vrot.slane %v2442, 1
        %v2444 = vadd.f32 %v2442, %v2443
        %v2445 = vadd.f32 %v2344, %v2345
        %v2446 = vrot.slane %v2445, 4
        %v2447 = vadd.f32 %v2445, %v2446
        %v2448 = vrot.slane %v2447, 2
        %v2449 = vadd.f32 %v2447, %v2448
        %v2450 = vrot.slane %v2449, 1
        %v2451 = vadd.f32 %v2449, %v2450
        %v2452 = vadd.f32 %v2390, %v2391
        %v2453 = vrot.slane %v2452, 4
        %v2454 = vadd.f32 %v2452, %v2453
        %v2455 = vrot.slane %v2454, 2
        %v2456 = vadd.f32 %v2454, %v2455
        %v2457 = vrot.slane %v2456, 1
        %v2458 = vadd.f32 %v2456, %v2457
        %v2459 = vadd.f32 %v2436, %v2437
        %v2460 = vrot.slane %v2459, 4
        %v2461 = vadd.f32 %v2459, %v2460
        %v2462 = vrot.slane %v2461, 2
        %v2463 = vadd.f32 %v2461, %v2462
        %v2464 = vrot.slane %v2463, 1
        %v2465 = vadd.f32 %v2463, %v2464
        %v2466 = vld [vmem:[%s5] sm:$0xff]
        %v2467 = vld [vmem:[%s5 + $0x8] sm:$0xff]
        %v2468 = vld [vmem:[%s5 + $0x10] sm:$0xff]
        %v2469 = vld [vmem:[%s5 + $0x18] sm:$0xff]
        %v2470 = vld [vmem:[%s5 + $0x20] sm:$0xff]
        %v2471 = vld [vmem:[%s5 + $0x28] sm:$0xff]
        %v2472 = vld [vmem:[%s5 + $0x30] sm:$0xff]
        %v2473 = vld [vmem:[%s5 + $0x38] sm:$0xff]
        %v2474 = vld [vmem:[%s5 + $0x40] sm:$0xff]
        %v2475 = vld [vmem:[%s5 + $0x48] sm:$0xff]
        %v2476 = vld [vmem:[%s5 + $0x50] sm:$0xff]
        %v2477 = vld [vmem:[%s5 + $0x58] sm:$0xff]
        %v2478 = vld [vmem:[%s5 + $0x60] sm:$0xff]
        %v2479 = vld [vmem:[%s5 + $0x68] sm:$0xff]
        %v2480 = vld [vmem:[%s5 + $0x70] sm:$0xff]
        %v2481 = vld [vmem:[%s5 + $0x78] sm:$0xff]
        %v2482 = vld [vmem:[%s5 + $0x80] sm:$0xff]
        %v2483 = vld [vmem:[%s5 + $0x88] sm:$0xff]
        %v2484 = vld [vmem:[%s5 + $0x90] sm:$0xff]
        %v2485 = vld [vmem:[%s5 + $0x98] sm:$0xff]
        %v2486 = vld [vmem:[%s5 + $0xa0] sm:$0xff]
        %v2487 = vld [vmem:[%s5 + $0xa8] sm:$0xff]
        %v2488 = vld [vmem:[%s5 + $0xb0] sm:$0xff]
        %v2489 = vld [vmem:[%s5 + $0xb8] sm:$0xff]
        %v2490 = vld [vmem:[%s5 + $0xc0] sm:$0xff]
        %v2491 = vld [vmem:[%s5 + $0xc8] sm:$0xff]
        %v2492 = vld [vmem:[%s5 + $0xd0] sm:$0xff]
        %v2493 = vld [vmem:[%s5 + $0xd8] sm:$0xff]
        %v2494 = vld [vmem:[%s5 + $0xe0] sm:$0xff]
        %v2495 = vld [vmem:[%s5 + $0xe8] sm:$0xff]
        %v2496 = vld [vmem:[%s5 + $0xf0] sm:$0xff]
        %v2497 = vld [vmem:[%s5 + $0xf8] sm:$0xff]
        %v2498 = vld [vmem:[%s5 + $0x100] sm:$0xff]
        %v2499 = vld [vmem:[%s5 + $0x108] sm:$0xff]
        %v2500 = vld [vmem:[%s5 + $0x110] sm:$0xff]
        %v2501 = vld [vmem:[%s5 + $0x118] sm:$0xff]
        %v2502 = vld [vmem:[%s5 + $0x120] sm:$0xff]
        %v2503 = vld [vmem:[%s5 + $0x128] sm:$0xff]
        %v2504 = vld [vmem:[%s5 + $0x130] sm:$0xff]
        %v2505 = vld [vmem:[%s5 + $0x138] sm:$0xff]
        %v2506 = vld [vmem:[%s5 + $0x140] sm:$0xff]
        %v2507 = vld [vmem:[%s5 + $0x148] sm:$0xff]
        %v2508 = vld [vmem:[%s5 + $0x150] sm:$0xff]
        %v2509 = vld [vmem:[%s5 + $0x158] sm:$0xff]
        %v2510 = vld [vmem:[%s5 + $0x160] sm:$0xff]
        %v2511 = vld [vmem:[%s5 + $0x168] sm:$0xff]
        %v2512 = vld [vmem:[%s5 + $0x170] sm:$0xff]
        %v2513 = vld [vmem:[%s5 + $0x178] sm:$0xff]
        %v2514 = vld [vmem:[%s5 + $0x180] sm:$0xff]
        %v2515 = vld [vmem:[%s5 + $0x188] sm:$0xff]
        %v2516 = vld [vmem:[%s5 + $0x190] sm:$0xff]
        %v2517 = vld [vmem:[%s5 + $0x198] sm:$0xff]
        %v2518 = vld [vmem:[%s5 + $0x1a0] sm:$0xff]
        %v2519 = vld [vmem:[%s5 + $0x1a8] sm:$0xff]
        %v2520 = vld [vmem:[%s5 + $0x1b0] sm:$0xff]
        %v2521 = vld [vmem:[%s5 + $0x1b8] sm:$0xff]
        %v2522 = vld [vmem:[%s5 + $0x1c0] sm:$0xff]
        %v2523 = vld [vmem:[%s5 + $0x1c8] sm:$0xff]
        %v2524 = vld [vmem:[%s5 + $0x1d0] sm:$0xff]
        %v2525 = vld [vmem:[%s5 + $0x1d8] sm:$0xff]
        %v2526 = vld [vmem:[%s5 + $0x1e0] sm:$0xff]
        %v2527 = vld [vmem:[%s5 + $0x1e8] sm:$0xff]
        %v2528 = vld [vmem:[%s5 + $0x1f0] sm:$0xff]
        %v2529 = vld [vmem:[%s5 + $0x1f8] sm:$0xff]
        %2530 = vmatpush.msra.mxu0 %v2481
        %2531 = vmatpush.msra.mxu0 %v2480
        %2532 = vmatpush.msra.mxu0 %v2479
        %2533 = vmatpush.msra.mxu0 %v2478
        %2534 = vmatpush.msra.mxu0 %v2477
        %2535 = vmatpush.msra.mxu0 %v2476
        %2536 = vmatpush.msra.mxu0 %v2475
        %2537 = vmatpush.msra.mxu0 %v2474
        %2538 = vmatpush.msra.mxu0 %v2473
        %2539 = vmatpush.msra.mxu0 %v2472
        %2540 = vmatpush.msra.mxu0 %v2471
        %2541 = vmatpush.msra.mxu0 %v2470
        %2542 = vmatpush.msra.mxu0 %v2469
        %2543 = vmatpush.msra.mxu0 %v2468
        %2544 = vmatpush.msra.mxu0 %v2467
        %2545 = vmatpush.msra.mxu0 %v2466
        %2546 = vmatmul.f32.gmra.mxu0 %v2444
        %v2547 = vpop.f32.mrf.mxu0
        %v2548 = vadd.f32 0.0, %v2547
        %2549 = vdwg.mxu0
        %2550 = vmatpush.msra.mxu0 %v2497
        %2551 = vmatpush.msra.mxu0 %v2496
        %2552 = vmatpush.msra.mxu0 %v2495
        %2553 = vmatpush.msra.mxu0 %v2494
        %2554 = vmatpush.msra.mxu0 %v2493
        %2555 = vmatpush.msra.mxu0 %v2492
        %2556 = vmatpush.msra.mxu0 %v2491
        %2557 = vmatpush.msra.mxu0 %v2490
        %2558 = vmatpush.msra.mxu0 %v2489
        %2559 = vmatpush.msra.mxu0 %v2488
        %2560 = vmatpush.msra.mxu0 %v2487
        %2561 = vmatpush.msra.mxu0 %v2486
        %2562 = vmatpush.msra.mxu0 %v2485
        %2563 = vmatpush.msra.mxu0 %v2484
        %2564 = vmatpush.msra.mxu0 %v2483
        %2565 = vmatpush.msra.mxu0 %v2482
        %2566 = vmatmul.f32.gmra.mxu0 %v2451
        %v2567 = vpop.f32.mrf.mxu0
        %v2568 = vadd.f32 %v2548, %v2567
        %2569 = vdwg.mxu0
        %2570 = vmatpush.msra.mxu0 %v2513
        %2571 = vmatpush.msra.mxu0 %v2512
        %2572 = vmatpush.msra.mxu0 %v2511
        %2573 = vmatpush.msra.mxu0 %v2510
        %2574 = vmatpush.msra.mxu0 %v2509
        %2575 = vmatpush.msra.mxu0 %v2508
        %2576 = vmatpush.msra.mxu0 %v2507
        %2577 = vmatpush.msra.mxu0 %v2506
        %2578 = vmatpush.msra.mxu0 %v2505
        %2579 = vmatpush.msra.mxu0 %v2504
        %2580 = vmatpush.msra.mxu0 %v2503
        %2581 = vmatpush.msra.mxu0 %v2502
        %2582 = vmatpush.msra.mxu0 %v2501
        %2583 = vmatpush.msra.mxu0 %v2500
        %2584 = vmatpush.msra.mxu0 %v2499
        %2585 = vmatpush.msra.mxu0 %v2498
        %2586 = vmatmul.f32.gmra.mxu0 %v2458
        %v2587 = vpop.f32.mrf.mxu0
        %v2588 = vadd.f32 %v2568, %v2587
        %2589 = vdwg.mxu0
        %2590 = vmatpush.msra.mxu0 %v2529
        %2591 = vmatpush.msra.mxu0 %v2528
        %2592 = vmatpush.msra.mxu0 %v2527
        %2593 = vmatpush.msra.mxu0 %v2526
        %2594 = vmatpush.msra.mxu0 %v2525
        %2595 = vmatpush.msra.mxu0 %v2524
        %2596 = vmatpush.msra.mxu0 %v2523
        %2597 = vmatpush.msra.mxu0 %v2522
        %2598 = vmatpush.msra.mxu0 %v2521
        %2599 = vmatpush.msra.mxu0 %v2520
        %2600 = vmatpush.msra.mxu0 %v2519
        %2601 = vmatpush.msra.mxu0 %v2518
        %2602 = vmatpush.msra.mxu0 %v2517
        %2603 = vmatpush.msra.mxu0 %v2516
        %2604 = vmatpush.msra.mxu0 %v2515
        %2605 = vmatpush.msra.mxu0 %v2514
        %2606 = vmatmul.f32.gmra.mxu0 %v2465
        %v2607 = vpop.f32.mrf.mxu0
        %v2608 = vadd.f32 %v2588, %v2607
        %2609 = vdwg.mxu0
        %2610 = vst [vmem:[%s315] sm:$0xff] %v2298
        %2611 = vst [vmem:[%s315 + $0x8] sm:$0xff] %v2344
        %2612 = vst [vmem:[%s315 + $0x10] sm:$0xff] %v2390
        %2613 = vst [vmem:[%s315 + $0x18] sm:$0xff] %v2436
        %2614 = vst [vmem:[%s315 + $0x20] sm:$0xff] %v2299
        %2615 = vst [vmem:[%s315 + $0x28] sm:$0xff] %v2345
        %2616 = vst [vmem:[%s315 + $0x30] sm:$0xff] %v2391
        %2617 = vst [vmem:[%s315 + $0x38] sm:$0xff] %v2437
        %v2618 = vld [vmem:[%s3] sm:$0xff]
        %v2619 = vld [vmem:[%s3 + $0x8] sm:$0xff]
        %v2620 = vld [vmem:[%s3 + $0x10] sm:$0xff]
        %v2621 = vld [vmem:[%s3 + $0x18] sm:$0xff]
        %vm2622 = vcmask 261120
        %v2624 = vsel %vm2622, %v2608, 0
        %2626 = vmatpush.msra.mxu0 0.0
        %2627 = vmatpush.msra.mxu0 0.0
        %2628 = vmatpush.msra.mxu0 0.0
        %2629 = vmatpush.msra.mxu0 0.0
        %2630 = vmatpush.msra.mxu0 0.0
        %2631 = vmatpush.msra.mxu0 0.0
        %2632 = vmatpush.msra.mxu0 0.0
        %2633 = vmatpush.msra.mxu0 0.0
        %2634 = vmatpush.msra.mxu0 0.0
        %2635 = vmatpush.msra.mxu0 0.0
        %2636 = vmatpush.msra.mxu0 0.0
        %2637 = vmatpush.msra.mxu0 0.0
        %2638 = vmatpush.msra.mxu0 %v2621
        %2639 = vmatpush.msra.mxu0 %v2620
        %2640 = vmatpush.msra.mxu0 %v2619
        %2641 = vmatpush.msra.mxu0 %v2618
        %2642 = vmatmul.f32.gmra.mxu0 %v2624
        %v2643 = vpop.f32.mrf.mxu0
        %v2644 = vadd.f32 0.0, %v2643
        %2645 = vdwg.mxu0
        %v2646 = vmax.f32 %v2644, 0.0
        %v2647 = vld [vmem:[%s4] sm:$0xf]
        %vm2648 = vcmask 31744
        %v2650 = vsel %vm2648, %v2646, 0
        %vm2652 = vcmask 1043456
        %v2654 = vsel %vm2652, %v2647, 0
        %2656 = vmatpush.msra.mxu0 0.0
        %2657 = vmatpush.msra.mxu0 0.0
        %2658 = vmatpush.msra.mxu0 0.0
        %2659 = vmatpush.msra.mxu0 0.0
        %2660 = vmatpush.msra.mxu0 0.0
        %2661 = vmatpush.msra.mxu0 0.0
        %2662 = vmatpush.msra.mxu0 0.0
        %2663 = vmatpush.msra.mxu0 0.0
        %2664 = vmatpush.msra.mxu0 0.0
        %2665 = vmatpush.msra.mxu0 0.0
        %2666 = vmatpush.msra.mxu0 0.0
        %2667 = vmatpush.msra.mxu0 0.0
        %2668 = vmatpush.msra.mxu0 0.0
        %2669 = vmatpush.msra.mxu0 0.0
        %2670 = vmatpush.msra.mxu0 0.0
        %2671 = vmatpush.msra.mxu0 %v2654
        %2672 = vmatmul.f32.gmra.mxu0 %v2650
        %v2673 = vpop.f32.mrf.mxu0
        %v2674 = vadd.f32 0.0, %v2673
        %2675 = vdwg.mxu0
        %v2676 = vxor.u32 %v2674, 2147483648
        %v2677 = vmul.f32 %v2676, 1.442695
        %v2678 = vpow.pop %v2677
        %v2679 = vadd.f32 %v2678, 1.0
        %v2680 = vrcp.pop %v2679
        %v2681 = vmul.f32 %v2679, %v2680
        %v2682 = vsub.f32 1.0, %v2681
        %v2683 = vmul.f32 %v2680, %v2682
        %v2684 = vadd.f32 %v2680, %v2683
        %vm2685 = vweird.f32 %v2679
        %vm2686 = vweird.f32 %v2680
        %vm2687 = vmor %vm2685, %vm2686
        %v2688 = vsel %vm2687, %v2680, %v2684
        %v2689 = vand.u32 2147483647, %v2679
        %vm2690 = vcmp.eq.f32.partialorder %v2689, 8.507059e+37
        %v2691 = vand.u32 %v2679, 2147483648
        %v2692 = vor.u32 1.1754944e-38, %v2691
        %v2693 = vsel %vm2690, %v2692, %v2688
        %v2694 = vmul.f32 1.0, %v2693
        %v2695 = vld [vmem:[#allocation6] sm:$0xff]
        %v2696 = vld [vmem:[#allocation6 + $0x8] sm:$0xff]
        %v2697 = vld [vmem:[#allocation6 + $0x10] sm:$0xff]
        %v2698 = vld [vmem:[#allocation6 + $0x18] sm:$0xff]
        %v2699 = vld [vmem:[#allocation6 + $0x20] sm:$0xff]
        %v2700 = vld [vmem:[#allocation6 + $0x28] sm:$0xff]
        %v2701 = vld [vmem:[#allocation6 + $0x30] sm:$0xff]
        %v2702 = vld [vmem:[#allocation6 + $0x38] sm:$0xff]
        %v2703 = vld [vmem:[#allocation6 + $0x40] sm:$0xff]
        %v2704 = vld [vmem:[#allocation6 + $0x48] sm:$0xff]
        %v2705 = vld [vmem:[#allocation6 + $0x50] sm:$0xff]
        %v2706 = vld [vmem:[#allocation6 + $0x58] sm:$0xff]
        %v2707 = vld [vmem:[#allocation6 + $0x60] sm:$0xff]
        %v2708 = vld [vmem:[#allocation6 + $0x68] sm:$0xff]
        %v2709 = vld [vmem:[#allocation6 + $0x70] sm:$0xff]
        %v2710 = vld [vmem:[#allocation6 + $0x78] sm:$0xff]
        %v2712 = vsel %vm2622, %v2694, 0
        %2714 = vmatpush.msra.mxu0 0.0
        %2715 = vmatpush.msra.mxu0 0.0
        %2716 = vmatpush.msra.mxu0 0.0
        %2717 = vmatpush.msra.mxu0 0.0
        %2718 = vmatpush.msra.mxu0 0.0
        %2719 = vmatpush.msra.mxu0 0.0
        %2720 = vmatpush.msra.mxu0 0.0
        %2721 = vmatpush.msra.mxu0 0.0
        %2722 = vmatpush.msra.mxu0 0.0
        %2723 = vmatpush.msra.mxu0 0.0
        %2724 = vmatpush.msra.mxu0 0.0
        %2725 = vmatpush.msra.mxu0 0.0
        %2726 = vmatpush.msra.mxu0 %v2707
        %2727 = vmatpush.msra.mxu0 %v2703
        %2728 = vmatpush.msra.mxu0 %v2699
        %2729 = vmatpush.msra.mxu0 %v2695
        %2730 = vmatmul.f32.gmra.mxu0 %v2712
        %v2731 = vpop.f32.mrf.mxu0
        %v2732 = vadd.f32 0.0, %v2731
        %2733 = vdwg.mxu0
        %2734 = vmatpush.msra.mxu0 0.0
        %2735 = vmatpush.msra.mxu0 0.0
        %2736 = vmatpush.msra.mxu0 0.0
        %2737 = vmatpush.msra.mxu0 0.0
        %2738 = vmatpush.msra.mxu0 0.0
        %2739 = vmatpush.msra.mxu0 0.0
        %2740 = vmatpush.msra.mxu0 0.0
        %2741 = vmatpush.msra.mxu0 0.0
        %2742 = vmatpush.msra.mxu0 0.0
        %2743 = vmatpush.msra.mxu0 0.0
        %2744 = vmatpush.msra.mxu0 0.0
        %2745 = vmatpush.msra.mxu0 0.0
        %2746 = vmatpush.msra.mxu0 %v2708
        %2747 = vmatpush.msra.mxu0 %v2704
        %2748 = vmatpush.msra.mxu0 %v2700
        %2749 = vmatpush.msra.mxu0 %v2696
        %2750 = vmatmul.f32.gmra.mxu0 %v2712
        %v2751 = vpop.f32.mrf.mxu0
        %v2752 = vadd.f32 0.0, %v2751
        %2753 = vdwg.mxu0
        %2754 = vmatpush.msra.mxu0 0.0
        %2755 = vmatpush.msra.mxu0 0.0
        %2756 = vmatpush.msra.mxu0 0.0
        %2757 = vmatpush.msra.mxu0 0.0
        %2758 = vmatpush.msra.mxu0 0.0
        %2759 = vmatpush.msra.mxu0 0.0
        %2760 = vmatpush.msra.mxu0 0.0
        %2761 = vmatpush.msra.mxu0 0.0
        %2762 = vmatpush.msra.mxu0 0.0
        %2763 = vmatpush.msra.mxu0 0.0
        %2764 = vmatpush.msra.mxu0 0.0
        %2765 = vmatpush.msra.mxu0 0.0
        %2766 = vmatpush.msra.mxu0 %v2709
        %2767 = vmatpush.msra.mxu0 %v2705
        %2768 = vmatpush.msra.mxu0 %v2701
        %2769 = vmatpush.msra.mxu0 %v2697
        %2770 = vmatmul.f32.gmra.mxu0 %v2712
        %v2771 = vpop.f32.mrf.mxu0
        %v2772 = vadd.f32 0.0, %v2771
        %2773 = vdwg.mxu0
        %2774 = vmatpush.msra.mxu0 0.0
        %2775 = vmatpush.msra.mxu0 0.0
        %2776 = vmatpush.msra.mxu0 0.0
        %2777 = vmatpush.msra.mxu0 0.0
        %2778 = vmatpush.msra.mxu0 0.0
        %2779 = vmatpush.msra.mxu0 0.0
        %2780 = vmatpush.msra.mxu0 0.0
        %2781 = vmatpush.msra.mxu0 0.0
        %2782 = vmatpush.msra.mxu0 0.0
        %2783 = vmatpush.msra.mxu0 0.0
        %2784 = vmatpush.msra.mxu0 0.0
        %2785 = vmatpush.msra.mxu0 0.0
        %2786 = vmatpush.msra.mxu0 %v2710
        %2787 = vmatpush.msra.mxu0 %v2706
        %2788 = vmatpush.msra.mxu0 %v2702
        %2789 = vmatpush.msra.mxu0 %v2698
        %2790 = vmatmul.f32.gmra.mxu0 %v2712
        %v2791 = vpop.f32.mrf.mxu0
        %v2792 = vadd.f32 0.0, %v2791
        %2793 = vdwg.mxu0
        %v2794 = vld [vmem:[%s315] sm:$0xff]
        %v2795 = vld [vmem:[%s315 + $0x8] sm:$0xff]
        %v2796 = vld [vmem:[%s315 + $0x10] sm:$0xff]
        %v2797 = vld [vmem:[%s315 + $0x18] sm:$0xff]
        %v2798 = vld [vmem:[%s315 + $0x20] sm:$0xff]
        %v2799 = vld [vmem:[%s315 + $0x28] sm:$0xff]
        %v2800 = vld [vmem:[%s315 + $0x30] sm:$0xff]
        %v2801 = vld [vmem:[%s315 + $0x38] sm:$0xff]
        %v2802 = vperm.slane %v2732, 0
        %v2803 = vperm.slane %v2752, 0
        %v2804 = vperm.slane %v2772, 0
        %v2805 = vperm.slane %v2792, 0
        %v2806 = vmul.f32 %v2794, %v2802
        %v2807 = vmul.f32 %v2795, %v2803
        %v2808 = vmul.f32 %v2796, %v2804
        %v2809 = vmul.f32 %v2797, %v2805
        %v2810 = vmul.f32 %v2798, %v2802
        %v2811 = vmul.f32 %v2799, %v2803
        %v2812 = vmul.f32 %v2800, %v2804
        %v2813 = vmul.f32 %v2801, %v2805
        %v2814 = vld [vmem:[%s279] sm:$0xff]
        %v2815 = vld [vmem:[%s279 + $0x8] sm:$0xff]
        %v2816 = vld [vmem:[%s279 + $0x10] sm:$0xff]
        %v2817 = vld [vmem:[%s279 + $0x18] sm:$0xff]
        %v2818 = vld [vmem:[%s279 + $0x20] sm:$0xff]
        %v2819 = vld [vmem:[%s279 + $0x28] sm:$0xff]
        %v2820 = vld [vmem:[%s279 + $0x30] sm:$0xff]
        %v2821 = vld [vmem:[%s279 + $0x38] sm:$0xff]
        %v2822 = vadd.f32 %v2806, %v2814
        %v2823 = vadd.f32 %v2807, %v2815
        %v2824 = vadd.f32 %v2808, %v2816
        %v2825 = vadd.f32 %v2809, %v2817
        %v2826 = vadd.f32 %v2810, %v2818
        %v2827 = vadd.f32 %v2811, %v2819
        %v2828 = vadd.f32 %v2812, %v2820
        %v2829 = vadd.f32 %v2813, %v2821
        %2830 = vst [vmem:[%s315] sm:$0xff] %v2822
        %2831 = vst [vmem:[%s315 + $0x8] sm:$0xff] %v2823
        %2832 = vst [vmem:[%s315 + $0x10] sm:$0xff] %v2824
        %2833 = vst [vmem:[%s315 + $0x18] sm:$0xff] %v2825
        %2834 = vst [vmem:[%s315 + $0x20] sm:$0xff] %v2826
        %2835 = vst [vmem:[%s315 + $0x28] sm:$0xff] %v2827
        %2836 = vst [vmem:[%s315 + $0x30] sm:$0xff] %v2828
        %2837 = vst [vmem:[%s315 + $0x38] sm:$0xff] %v2829
        %s2838 = sand.u32 %s185, 1
        %s2839 = scalar_lea.sflag [#allocation5], %s2838
        %s2840 = sand.u32 %s185, 1
        %s2841 = smul.addr %s2840, 64
        %s2842 = scalar_lea.vmem [#allocation8], %s2841
        // Predicated region
        $region57: #{tpu_custom_call.1} parent=47 // pred_check
          %p2843 = pneg %p195
        $region58: #{tpu_custom_call.1} parent=47 // pred_check_branch
          %2845 = sbr.rel (%p2843) target = $region60
        $region59: #{tpu_custom_call.1} parent=47 // pred_region
          %2847 = vsyncadd %s2839, 0
          %s2848 = smul.addr %s25, 8
          %s2849 = smul.addr %s2848, 8
          %s2850 = scalar_lea.hbm %s7, %s2849
          %s2851 = sshll.u32 %s2842, 4
          %s2852 = int_to_ptr.vmem [resolvable:$true] %s2851
          %s2853 = sshll.u32 %s2850, 4
          %s2854 = int_to_ptr.hbm [resolvable:$true] %s2853
          %2859 = dma.vmem_to_hbm [thread:$0]  %s2852, 1024, %s2854, %s2839, 512, 512, 32
        $region60: #{tpu_custom_call.1} parent=47 // pred_fallthru
          _
      $region48: #{tpu_custom_call.1} parent=5 // pred_fallthru
        _
      %p2860 = scmp.le.s32.totalorder 2, %s20
      // Predicated region
      $region61: #{tpu_custom_call.1} parent=5 // pred_check
        %p2861 = pneg %p2860
      $region62: #{tpu_custom_call.1} parent=5 // pred_check_branch
        %2863 = sbr.rel (%p2861) target = $region64
      $region63: #{tpu_custom_call.1} parent=5 // pred_region
        %s2864 = ssub.s32 %s20, 2
        // Predicated region
        $region65: #{tpu_custom_call.1} parent=63 // pred_check
          %p2865 = pneg %p201
        $region66: #{tpu_custom_call.1} parent=63 // pred_check_branch
          %2867 = sbr.rel (%p2865) target = $region68
        $region67: #{tpu_custom_call.1} parent=63 // pred_region
          %s2868 = sand.u32 %s186, 1
          %s2869 = scalar_lea.sflag [#allocation5], %s2868
          %s2870 = sand.u32 %s186, 1
          %s2871 = smul.addr %s2870, 64
          %s2872 = scalar_lea.vmem [#allocation8], %s2871
          %2874 = dma.done %s2869, 1024
        $region68: #{tpu_custom_call.1} parent=63 // pred_fallthru
          _
      $region64: #{tpu_custom_call.1} parent=5 // pred_fallthru
        _
    $region6: #{tpu_custom_call.1} parent=1 // loop_footer
      %s24 = sadd.s32 1, %s20
    $region7: #{tpu_custom_call.1} parent=1 // loop_footer_branch
      %19 = sbr.rel target = $region3
    $region8: #{tpu_custom_call.1} parent=1 // loop_exit
      _
    %2875 = vsyncpa [#allocation4], 1
    %s2876 = scalar_lea.sflag [#allocation4], 1
    %2877 = vsyncpa %s2876, 1
    %2878 = vsyncpa [#allocation7], 1
    %2879 = vsyncpa [#allocation5], 1
    %s2880 = scalar_lea.sflag [#allocation5], 1
    %2881 = vsyncpa %s2880, 1

</llo_original>
